<compile_context>
chip_gen: v5e
topology: v5e:2x2
jax: 0.10.0
libtpu: 0.0.40
codegen_flags: <defaults>
</compile_context>

<pallas_src>
import functools
import math

import jax
import jax.numpy as jnp
from jax.experimental import pallas as pl
from jax.experimental.pallas import tpu as pltpu

NHEAD = 4
LN_EPS = 1e-5
NEG_INF = -1e9

PARAM_ORDER = [
    "wq", "bq", "wk", "bk", "wv", "bv", "wo", "bo",
    "ln1_g", "ln1_b", "ff1_w", "ff1_b", "ff2_w", "ff2_b", "ln2_g", "ln2_b",
    "dg_w1", "dg_b1", "dg_w2", "dg_b2",
    "gcn_w1", "gcn_b1", "gcn_w2", "gcn_b2",
    "fn_g", "fn_b",
]

# These are used as MXU operands -> stored / passed as bf16.
MATMUL_WEIGHT_NAMES = frozenset({
    "wq", "wk", "wv", "wo", "ff1_w", "ff2_w",
    "dg_w1", "dg_w2", "gcn_w1", "gcn_w2",
})


def _layernorm(x, gamma, beta):
    mu = jnp.mean(x, axis=-1, keepdims=True)
    var = jnp.mean(jnp.square(x - mu), axis=-1, keepdims=True)
    return (x - mu) * jax.lax.rsqrt(var + LN_EPS) * gamma + beta


def _softmax(s):
    m = jnp.max(s, axis=-1, keepdims=True)
    e = jnp.exp(s - m)
    return e * pl.reciprocal(jnp.sum(e, axis=-1, keepdims=True), approx=True)


def _mm(a, b):
    # (m,k) @ (k,n) with f32 accumulation on the MXU.
    return jnp.dot(a, b, preferred_element_type=jnp.float32)


def _mm_nt(a, b):
    # (m,k) @ (n,k)^T without materialising a transpose (standard QK^T form).
    return jax.lax.dot_general(a, b, (((1,), (1,)), ((), ())),
                               preferred_element_type=jnp.float32)


def encoder_kernel(tx_ref, gx_ref, mrow_ref, kbias_ref, seqbias_ref,
                   wq, bq, wk, bk, wv, bv, wo, bo,
                   ln1_g, ln1_b, ff1_w, ff1_b, ff2_w, ff2_b, ln2_g, ln2_b,
                   dg_w1, dg_b1, dg_w2, dg_b2,
                   gcn_w1, gcn_b1, gcn_w2, gcn_b2,
                   fn_g, fn_b,
                   out_ref):
    bf16 = jnp.bfloat16
    x = tx_ref[...]                      # (M, H) f32, M = Bt*S folded rows
    g = gx_ref[...]                      # (M, H) f32
    mrow = mrow_ref[...]                 # (M, 1)  1 = valid token, 0 = pad
    M, H = x.shape
    d = H // NHEAD

    # Additive score bias shared by attention and the graph softmax:
    # -1e9 for cross-sequence pairs (block diagonal) and for padded keys.
    score_bias = seqbias_ref[...] + kbias_ref[0]          # (M, M) f32

    x_b = x.astype(bf16)

    # ---- nn.TransformerEncoderLayer (post-norm, relu, eval-mode dropout) ----
    q = (_mm(x_b, wq[...]) + bq[...]) * (1.0 / math.sqrt(d))   # scale folded into q
    k = _mm(x_b, wk[...]) + bk[...]
    v = _mm(x_b, wv[...]) + bv[...]
    k_b = k.astype(bf16)

    lane = jax.lax.broadcasted_iota(jnp.int32, (1, H), 1)
    ctx = jnp.zeros((M, H), jnp.float32)
    for h in range(NHEAD):
        hm = ((lane >= h * d) & (lane < (h + 1) * d)).astype(jnp.float32)
        s = _mm_nt((q * hm).astype(bf16), k_b) + score_bias    # (M, M)
        p = _softmax(s)
        # head-h context lands in head-h columns; summing over heads rebuilds
        # the concatenated multi-head context without any concat/relayout.
        ctx = ctx + _mm(p.astype(bf16), (v * hm).astype(bf16))
    attn = _mm(ctx.astype(bf16), wo[...]) + bo[...]

    x1 = _layernorm(x + attn, ln1_g[...], ln1_b[...])
    ff = jnp.maximum(_mm(x1.astype(bf16), ff1_w[...]) + ff1_b[...], 0.0)
    ff = _mm(ff.astype(bf16), ff2_w[...]) + ff2_b[...]
    enc = _layernorm(x1 + ff, ln2_g[...], ln2_b[...]) * mrow   # * mask.unsqueeze(-1)

    # ---- DynamicGraphLearner: MLP node features + masked softmax adjacency ----
    ef = jnp.maximum(_mm(g.astype(bf16), dg_w1[...]) + dg_b1[...], 0.0)
    ef = _mm(ef.astype(bf16), dg_w2[...]) + dg_b2[...]
    ef_b = ef.astype(bf16)
    sim = _mm_nt((ef * (1.0 / math.sqrt(H))).astype(bf16), ef_b) + score_bias
    ew = _softmax(sim) * mrow            # block-diagonal (M, M) edge weights
    ew_b = ew.astype(bf16)

    # ---- GCN: A.relu(A.(X W1 + b1)).W2 + b2 (dropout = identity in eval) ----
    h1 = _mm(ef_b, gcn_w1[...]) + gcn_b1[...]
    h1 = jnp.maximum(_mm(ew_b, h1.astype(bf16)), 0.0)
    h2 = _mm(h1.astype(bf16), gcn_w2[...]) + gcn_b2[...]
    gcn_out = _mm(ew_b, h2.astype(bf16)) * mrow                # * mask.unsqueeze(-1)

    # ---- combine: bmm(edge_weights, gcn_out) + encoder, final LayerNorm ----
    weighted = _mm(ew_b, gcn_out.astype(bf16))
    out = _layernorm(enc + weighted, fn_g[...], fn_b[...])     # (M, H) f32

    # lane-dense store: out block is (H, M), last dim is a multiple of 128.
    out_ref[...] = out.T


def custom_transformer_encoder(tx, gx, mask, params):
    B, S, H = tx.shape
    assert H % NHEAD == 0

    # Fold enough sequences per grid step that the matmul M dim (= bt*S) is
    # >= 128 and a multiple of 8 (sublane tile).  Folding more would only grow
    # the wasted cross-sequence area of the (M, M) score matrices.
    bt = max(1, -(-128 // S))
    while (bt * S) % 8 != 0:
        bt += 1
    M = bt * S
    nblk = -(-B // bt)
    B_pad = nblk * bt

    mask_f = mask.astype(jnp.float32)
    tx = tx.astype(jnp.float32)
    gx = gx.astype(jnp.float32)
    if B_pad != B:
        pad = B_pad - B
        tx = jnp.concatenate([tx, jnp.zeros((pad, S, H), jnp.float32)], axis=0)
        gx = jnp.concatenate([gx, jnp.zeros((pad, S, H), jnp.float32)], axis=0)
        mask_f = jnp.concatenate([mask_f, jnp.zeros((pad, S), jnp.float32)], 0)

    # Flatten batch/seq once in the wrapper (free XLA reshape) so the kernel
    # blocks are already 2-D slabs.
    tx2 = tx.reshape(B_pad * S, H)
    gx2 = gx.reshape(B_pad * S, H)
    mrow = mask_f.reshape(B_pad * S, 1)
    # Key-padding additive bias, pre-laid-out along lanes (no in-kernel flip).
    kbias = jnp.where(mask_f > 0, 0.0, NEG_INF).astype(jnp.float32)
    kbias = kbias.reshape(nblk, 1, M)
    # Block-diagonal (same-sequence) additive bias, constant across blocks.
    seq_id = jnp.arange(M, dtype=jnp.int32) // S
    seq_bias = jnp.where(seq_id[:, None] == seq_id[None, :],
                         0.0, NEG_INF).astype(jnp.float32)

    # Parameter prep: MXU weights -> bf16, biases / LN params stay f32.
    weights = []
    for name in PARAM_ORDER:
        p = params[name]
        if name in MATMUL_WEIGHT_NAMES:
            weights.append(p.astype(jnp.bfloat16))
        else:
            weights.append(p.astype(jnp.float32))

    def _const_map(b, ndim):
        return (0,) * ndim

    in_specs = [
        pl.BlockSpec((M, H), lambda b: (b, 0)),         # tx rows (Bt sequences)
        pl.BlockSpec((M, H), lambda b: (b, 0)),         # gx rows
        pl.BlockSpec((M, 1), lambda b: (b, 0)),         # row mask
        pl.BlockSpec((1, 1, M), lambda b: (b, 0, 0)),   # key-padding bias
        pl.BlockSpec((M, M), lambda b: (0, 0)),         # block-diagonal bias
    ] + [
        pl.BlockSpec(w.shape, functools.partial(_const_map, ndim=w.ndim))
        for w in weights
    ]

    # Advisory cost estimate (matmul flops, softmax exps, HBM traffic).
    F = 2 * H
    mm_flops = 2 * M * (3 * H * H              # qkv projections
                        + NHEAD * 2 * M * H    # scores + head contexts
                        + H * H                # out projection
                        + 2 * H * F            # FFN
                        + 2 * H * F            # DG MLP
                        + M * H                # similarity
                        + H * F + M * F        # GCN layer 1
                        + F * H + M * H        # GCN layer 2
                        + M * H)               # weighted edge features
    bytes_per_block = (2 * M * H * 4 + M * 4 + M * 4 + M * M * 4 + M * H * 4)
    weight_bytes = sum(w.size * w.dtype.itemsize for w in weights)
    cost = pl.CostEstimate(
        flops=int(mm_flops * nblk),
        transcendentals=int((NHEAD + 1) * M * M * nblk),
        bytes_accessed=int(nblk * bytes_per_block + weight_bytes),
    )

    out_t = pl.pallas_call(
        encoder_kernel,
        out_shape=jax.ShapeDtypeStruct((H, B_pad * S), jnp.float32),
        grid=(nblk,),
        in_specs=in_specs,
        out_specs=pl.BlockSpec((H, M), lambda b: (0, b)),
        compiler_params=pltpu.CompilerParams(
            dimension_semantics=("parallel",),
            vmem_limit_bytes=32 * 1024 * 1024,
        ),
        cost_estimate=cost,
    )(tx2, gx2, mrow, kbias, seq_bias, *weights)

    # Layout plumbing back to (B, S, H).
    return out_t.T.reshape(B_pad, S, H)[:B]


def init_params(key, hidden_dim):
    H = hidden_dim
    names_shapes = {
        "wq": (H, H), "bq": (1, H), "wk": (H, H), "bk": (1, H),
        "wv": (H, H), "bv": (1, H), "wo": (H, H), "bo": (1, H),
        "ln1_g": (1, H), "ln1_b": (1, H),
        "ff1_w": (H, 2 * H), "ff1_b": (1, 2 * H),
        "ff2_w": (2 * H, H), "ff2_b": (1, H),
        "ln2_g": (1, H), "ln2_b": (1, H),
        "dg_w1": (H, 2 * H), "dg_b1": (1, 2 * H),
        "dg_w2": (2 * H, H), "dg_b2": (1, H),
        "gcn_w1": (H, 2 * H), "gcn_b1": (1, 2 * H),
        "gcn_w2": (2 * H, H), "gcn_b2": (1, H),
        "fn_g": (1, H), "fn_b": (1, H),
    }
    params = {}
    keys = jax.random.split(key, len(PARAM_ORDER))
    for k, name in zip(keys, PARAM_ORDER):
        shape = names_shapes[name]
        if name.endswith("_g"):                              # LayerNorm gamma
            params[name] = jnp.ones(shape, jnp.float32)
        elif name.startswith("b") or name.endswith("_b"):    # biases / LN beta
            params[name] = jnp.zeros(shape, jnp.float32)
        else:                                                # weight matrices
            params[name] = 0.02 * jax.random.normal(k, shape, jnp.float32)
    return params


if __name__ == "__main__":
    B, S, H = 32, 8, 32          # batch=32 (2 grid steps of 16), seq=8, hidden=32
    key = jax.random.PRNGKey(0)
    k_tx, k_gx, k_p = jax.random.split(key, 3)
    tx = jax.random.normal(k_tx, (B, S, H), jnp.float32)
    gx = jax.random.normal(k_gx, (B, S, H), jnp.float32)
    # mask: 1 = valid token, 0 = padding (second half of the batch has 2 pads)
    mask = jnp.ones((B, S), jnp.float32)
    mask = mask.at[B // 2:, S - 2:].set(0.0)

    params = init_params(k_p, H)
    out = custom_transformer_encoder(tx, gx, mask, params)
    out = jax.block_until_ready(out)
    assert out.shape == (B, S, H)
    assert bool(jnp.all(jnp.isfinite(out)))
    print("KERNEL_OK")
</pallas_src>

<mosaic_0001>
module attributes {stable_mosaic.version = 11 : i64} {
  func.func @encoder_kernel(%arg0: i32, %arg1: memref<128x32xf32, #tpu.memory_space<vmem>>, %arg2: memref<128x32xf32, #tpu.memory_space<vmem>>, %arg3: memref<128x1xf32, #tpu.memory_space<vmem>>, %arg4: memref<1x1x128xf32, #tpu.memory_space<vmem>>, %arg5: memref<128x128xf32, #tpu.memory_space<vmem>>, %arg6: memref<32x32xbf16, #tpu.memory_space<vmem>>, %arg7: memref<1x32xf32, #tpu.memory_space<vmem>>, %arg8: memref<32x32xbf16, #tpu.memory_space<vmem>>, %arg9: memref<1x32xf32, #tpu.memory_space<vmem>>, %arg10: memref<32x32xbf16, #tpu.memory_space<vmem>>, %arg11: memref<1x32xf32, #tpu.memory_space<vmem>>, %arg12: memref<32x32xbf16, #tpu.memory_space<vmem>>, %arg13: memref<1x32xf32, #tpu.memory_space<vmem>>, %arg14: memref<1x32xf32, #tpu.memory_space<vmem>>, %arg15: memref<1x32xf32, #tpu.memory_space<vmem>>, %arg16: memref<32x64xbf16, #tpu.memory_space<vmem>>, %arg17: memref<1x64xf32, #tpu.memory_space<vmem>>, %arg18: memref<64x32xbf16, #tpu.memory_space<vmem>>, %arg19: memref<1x32xf32, #tpu.memory_space<vmem>>, %arg20: memref<1x32xf32, #tpu.memory_space<vmem>>, %arg21: memref<1x32xf32, #tpu.memory_space<vmem>>, %arg22: memref<32x64xbf16, #tpu.memory_space<vmem>>, %arg23: memref<1x64xf32, #tpu.memory_space<vmem>>, %arg24: memref<64x32xbf16, #tpu.memory_space<vmem>>, %arg25: memref<1x32xf32, #tpu.memory_space<vmem>>, %arg26: memref<32x64xbf16, #tpu.memory_space<vmem>>, %arg27: memref<1x64xf32, #tpu.memory_space<vmem>>, %arg28: memref<64x32xbf16, #tpu.memory_space<vmem>>, %arg29: memref<1x32xf32, #tpu.memory_space<vmem>>, %arg30: memref<1x32xf32, #tpu.memory_space<vmem>>, %arg31: memref<1x32xf32, #tpu.memory_space<vmem>>, %arg32: memref<32x128xf32, #tpu.memory_space<vmem>>) attributes {dimension_semantics = [#tpu.dimension_semantics<parallel>], iteration_bounds = array<i64: 2>, scalar_prefetch = 0 : i64, scratch_operands = 0 : i64, tpu.core_type = #tpu.core_type<tc>, window_params = [{transform_indices = @transform_0, window_bounds = array<i64: 128, 32>}, {transform_indices = @transform_1, window_bounds = array<i64: 128, 32>}, {transform_indices = @transform_2, window_bounds = array<i64: 128, 1>}, {transform_indices = @transform_3, window_bounds = array<i64: 1, 1, 128>}, {pipeline_mode = #tpu.pipeline_mode<synchronous>, transform_indices = @transform_4, window_bounds = array<i64: 128, 128>}, {pipeline_mode = #tpu.pipeline_mode<synchronous>, transform_indices = @transform_5, window_bounds = array<i64: 32, 32>}, {pipeline_mode = #tpu.pipeline_mode<synchronous>, transform_indices = @transform_6, window_bounds = array<i64: 1, 32>}, {pipeline_mode = #tpu.pipeline_mode<synchronous>, transform_indices = @transform_7, window_bounds = array<i64: 32, 32>}, {pipeline_mode = #tpu.pipeline_mode<synchronous>, transform_indices = @transform_8, window_bounds = array<i64: 1, 32>}, {pipeline_mode = #tpu.pipeline_mode<synchronous>, transform_indices = @transform_9, window_bounds = array<i64: 32, 32>}, {pipeline_mode = #tpu.pipeline_mode<synchronous>, transform_indices = @transform_10, window_bounds = array<i64: 1, 32>}, {pipeline_mode = #tpu.pipeline_mode<synchronous>, transform_indices = @transform_11, window_bounds = array<i64: 32, 32>}, {pipeline_mode = #tpu.pipeline_mode<synchronous>, transform_indices = @transform_12, window_bounds = array<i64: 1, 32>}, {pipeline_mode = #tpu.pipeline_mode<synchronous>, transform_indices = @transform_13, window_bounds = array<i64: 1, 32>}, {pipeline_mode = #tpu.pipeline_mode<synchronous>, transform_indices = @transform_14, window_bounds = array<i64: 1, 32>}, {pipeline_mode = #tpu.pipeline_mode<synchronous>, transform_indices = @transform_15, window_bounds = array<i64: 32, 64>}, {pipeline_mode = #tpu.pipeline_mode<synchronous>, transform_indices = @transform_16, window_bounds = array<i64: 1, 64>}, {pipeline_mode = #tpu.pipeline_mode<synchronous>, transform_indices = @transform_17, window_bounds = array<i64: 64, 32>}, {pipeline_mode = #tpu.pipeline_mode<synchronous>, transform_indices = @transform_18, window_bounds = array<i64: 1, 32>}, {pipeline_mode = #tpu.pipeline_mode<synchronous>, transform_indices = @transform_19, window_bounds = array<i64: 1, 32>}, {pipeline_mode = #tpu.pipeline_mode<synchronous>, transform_indices = @transform_20, window_bounds = array<i64: 1, 32>}, {pipeline_mode = #tpu.pipeline_mode<synchronous>, transform_indices = @transform_21, window_bounds = array<i64: 32, 64>}, {pipeline_mode = #tpu.pipeline_mode<synchronous>, transform_indices = @transform_22, window_bounds = array<i64: 1, 64>}, {pipeline_mode = #tpu.pipeline_mode<synchronous>, transform_indices = @transform_23, window_bounds = array<i64: 64, 32>}, {pipeline_mode = #tpu.pipeline_mode<synchronous>, transform_indices = @transform_24, window_bounds = array<i64: 1, 32>}, {pipeline_mode = #tpu.pipeline_mode<synchronous>, transform_indices = @transform_25, window_bounds = array<i64: 32, 64>}, {pipeline_mode = #tpu.pipeline_mode<synchronous>, transform_indices = @transform_26, window_bounds = array<i64: 1, 64>}, {pipeline_mode = #tpu.pipeline_mode<synchronous>, transform_indices = @transform_27, window_bounds = array<i64: 64, 32>}, {pipeline_mode = #tpu.pipeline_mode<synchronous>, transform_indices = @transform_28, window_bounds = array<i64: 1, 32>}, {pipeline_mode = #tpu.pipeline_mode<synchronous>, transform_indices = @transform_29, window_bounds = array<i64: 1, 32>}, {pipeline_mode = #tpu.pipeline_mode<synchronous>, transform_indices = @transform_30, window_bounds = array<i64: 1, 32>}, {transform_indices = @transform_31, window_bounds = array<i64: 32, 128>}]} {
    %c0 = arith.constant 0 : index
    %c0_0 = arith.constant 0 : index
    %0 = vector.load %arg1[%c0, %c0_0] : memref<128x32xf32, #tpu.memory_space<vmem>>, vector<128x32xf32>
    %c0_1 = arith.constant 0 : index
    %c0_2 = arith.constant 0 : index
    %1 = vector.load %arg2[%c0_1, %c0_2] : memref<128x32xf32, #tpu.memory_space<vmem>>, vector<128x32xf32>
    %c0_3 = arith.constant 0 : index
    %c0_4 = arith.constant 0 : index
    %2 = vector.load %arg3[%c0_3, %c0_4] : memref<128x1xf32, #tpu.memory_space<vmem>>, vector<128x1xf32>
    %c0_5 = arith.constant 0 : index
    %c0_6 = arith.constant 0 : index
    %3 = vector.load %arg5[%c0_5, %c0_6] : memref<128x128xf32, #tpu.memory_space<vmem>>, vector<128x128xf32>
    %c0_7 = arith.constant 0 : index
    %c0_8 = arith.constant 0 : index
    %c0_9 = arith.constant 0 : index
    %4 = vector.load %arg4[%c0_7, %c0_8, %c0_9] : memref<1x1x128xf32, #tpu.memory_space<vmem>>, vector<1x1x128xf32>
    %5 = vector.shape_cast %4 : vector<1x1x128xf32> to vector<1x128xf32>
    %6 = vector.broadcast %5 : vector<1x128xf32> to vector<128x128xf32>
    %7 = arith.addf %3, %6 : vector<128x128xf32>
    %8 = arith.truncf %0 : vector<128x32xf32> to vector<128x32xbf16>
    %c0_10 = arith.constant 0 : index
    %c0_11 = arith.constant 0 : index
    %9 = vector.load %arg6[%c0_10, %c0_11] : memref<32x32xbf16, #tpu.memory_space<vmem>>, vector<32x32xbf16>
    %cst = arith.constant dense<0.000000e+00> : vector<128x32xf32>
    %10 = tpu.matmul %8, %9, %cst {dimension_numbers = #tpu.dot_dimension_numbers<[1], [0], [0], [1], [0, 0, 1, 1], [], []>} : vector<128x32xbf16>, vector<32x32xbf16>, vector<128x32xf32> -> vector<128x32xf32>
    %c0_12 = arith.constant 0 : index
    %c0_13 = arith.constant 0 : index
    %11 = vector.load %arg7[%c0_12, %c0_13] : memref<1x32xf32, #tpu.memory_space<vmem>>, vector<1x32xf32>
    %12 = vector.broadcast %11 : vector<1x32xf32> to vector<128x32xf32>
    %13 = arith.addf %10, %12 : vector<128x32xf32>
    %cst_14 = arith.constant 0.353553385 : f32
    %14 = vector.broadcast %cst_14 : f32 to vector<128x32xf32>
    %15 = arith.mulf %13, %14 : vector<128x32xf32>
    %c0_15 = arith.constant 0 : index
    %c0_16 = arith.constant 0 : index
    %16 = vector.load %arg8[%c0_15, %c0_16] : memref<32x32xbf16, #tpu.memory_space<vmem>>, vector<32x32xbf16>
    %cst_17 = arith.constant dense<0.000000e+00> : vector<128x32xf32>
    %17 = tpu.matmul %8, %16, %cst_17 {dimension_numbers = #tpu.dot_dimension_numbers<[1], [0], [0], [1], [0, 0, 1, 1], [], []>} : vector<128x32xbf16>, vector<32x32xbf16>, vector<128x32xf32> -> vector<128x32xf32>
    %c0_18 = arith.constant 0 : index
    %c0_19 = arith.constant 0 : index
    %18 = vector.load %arg9[%c0_18, %c0_19] : memref<1x32xf32, #tpu.memory_space<vmem>>, vector<1x32xf32>
    %19 = vector.broadcast %18 : vector<1x32xf32> to vector<128x32xf32>
    %20 = arith.addf %17, %19 : vector<128x32xf32>
    %c0_20 = arith.constant 0 : index
    %c0_21 = arith.constant 0 : index
    %21 = vector.load %arg10[%c0_20, %c0_21] : memref<32x32xbf16, #tpu.memory_space<vmem>>, vector<32x32xbf16>
    %cst_22 = arith.constant dense<0.000000e+00> : vector<128x32xf32>
    %22 = tpu.matmul %8, %21, %cst_22 {dimension_numbers = #tpu.dot_dimension_numbers<[1], [0], [0], [1], [0, 0, 1, 1], [], []>} : vector<128x32xbf16>, vector<32x32xbf16>, vector<128x32xf32> -> vector<128x32xf32>
    %c0_23 = arith.constant 0 : index
    %c0_24 = arith.constant 0 : index
    %23 = vector.load %arg11[%c0_23, %c0_24] : memref<1x32xf32, #tpu.memory_space<vmem>>, vector<1x32xf32>
    %24 = vector.broadcast %23 : vector<1x32xf32> to vector<128x32xf32>
    %25 = arith.addf %22, %24 : vector<128x32xf32>
    %26 = arith.truncf %20 : vector<128x32xf32> to vector<128x32xbf16>
    %27 = tpu.iota {dimensions = array<i32: 1>} : vector<1x32xi32>
    %cst_25 = arith.constant 0.000000e+00 : f32
    %28 = vector.broadcast %cst_25 : f32 to vector<128x32xf32>
    %c0_i32 = arith.constant 0 : i32
    %29 = vector.broadcast %c0_i32 : i32 to vector<1x32xi32>
    %30 = arith.cmpi sge, %27, %29 : vector<1x32xi32>
    %c8_i32 = arith.constant 8 : i32
    %31 = vector.broadcast %c8_i32 : i32 to vector<1x32xi32>
    %32 = arith.cmpi slt, %27, %31 : vector<1x32xi32>
    %33 = arith.andi %30, %32 : vector<1x32xi1>
    %34 = arith.extui %33 : vector<1x32xi1> to vector<1x32xi32>
    %35 = arith.sitofp %34 : vector<1x32xi32> to vector<1x32xf32>
    %36 = vector.broadcast %35 : vector<1x32xf32> to vector<128x32xf32>
    %37 = arith.mulf %15, %36 : vector<128x32xf32>
    %38 = arith.truncf %37 : vector<128x32xf32> to vector<128x32xbf16>
    %cst_26 = arith.constant dense<0.000000e+00> : vector<128x128xf32>
    %39 = tpu.matmul %38, %26, %cst_26 {dimension_numbers = #tpu.dot_dimension_numbers<[1], [1], [0], [0], [0, 0, 1, 0], [], []>} : vector<128x32xbf16>, vector<128x32xbf16>, vector<128x128xf32> -> vector<128x128xf32>
    %40 = arith.addf %39, %7 : vector<128x128xf32>
    %cst_27 = arith.constant dense<0xFF800000> : vector<128xf32>
    %41 = vector.multi_reduction <maximumf>, %40, %cst_27 [1] : vector<128x128xf32> to vector<128xf32>
    %42 = vector.shape_cast %41 : vector<128xf32> to vector<128x1xf32>
    %43 = vector.broadcast %42 : vector<128x1xf32> to vector<128x128xf32>
    %44 = arith.subf %40, %43 : vector<128x128xf32>
    %45 = math.exp %44 : vector<128x128xf32>
    %cst_28 = arith.constant dense<0.000000e+00> : vector<128xf32>
    %46 = vector.multi_reduction <add>, %45, %cst_28 [1] : vector<128x128xf32> to vector<128xf32>
    %47 = vector.shape_cast %46 : vector<128xf32> to vector<128x1xf32>
    %48 = tpu.reciprocal %47 {approx = true} : vector<128x1xf32> -> vector<128x1xf32>
    %49 = vector.broadcast %48 : vector<128x1xf32> to vector<128x128xf32>
    %50 = arith.mulf %45, %49 : vector<128x128xf32>
    %51 = arith.truncf %50 : vector<128x128xf32> to vector<128x128xbf16>
    %52 = vector.broadcast %35 : vector<1x32xf32> to vector<128x32xf32>
    %53 = arith.mulf %25, %52 : vector<128x32xf32>
    %54 = arith.truncf %53 : vector<128x32xf32> to vector<128x32xbf16>
    %cst_29 = arith.constant dense<0.000000e+00> : vector<128x32xf32>
    %55 = tpu.matmul %51, %54, %cst_29 {dimension_numbers = #tpu.dot_dimension_numbers<[1], [0], [0], [1], [0, 0, 1, 1], [], []>} : vector<128x128xbf16>, vector<128x32xbf16>, vector<128x32xf32> -> vector<128x32xf32>
    %56 = arith.addf %28, %55 : vector<128x32xf32>
    %c8_i32_30 = arith.constant 8 : i32
    %57 = vector.broadcast %c8_i32_30 : i32 to vector<1x32xi32>
    %58 = arith.cmpi sge, %27, %57 : vector<1x32xi32>
    %c16_i32 = arith.constant 16 : i32
    %59 = vector.broadcast %c16_i32 : i32 to vector<1x32xi32>
    %60 = arith.cmpi slt, %27, %59 : vector<1x32xi32>
    %61 = arith.andi %58, %60 : vector<1x32xi1>
    %62 = arith.extui %61 : vector<1x32xi1> to vector<1x32xi32>
    %63 = arith.sitofp %62 : vector<1x32xi32> to vector<1x32xf32>
    %64 = vector.broadcast %63 : vector<1x32xf32> to vector<128x32xf32>
    %65 = arith.mulf %15, %64 : vector<128x32xf32>
    %66 = arith.truncf %65 : vector<128x32xf32> to vector<128x32xbf16>
    %cst_31 = arith.constant dense<0.000000e+00> : vector<128x128xf32>
    %67 = tpu.matmul %66, %26, %cst_31 {dimension_numbers = #tpu.dot_dimension_numbers<[1], [1], [0], [0], [0, 0, 1, 0], [], []>} : vector<128x32xbf16>, vector<128x32xbf16>, vector<128x128xf32> -> vector<128x128xf32>
    %68 = arith.addf %67, %7 : vector<128x128xf32>
    %cst_32 = arith.constant dense<0xFF800000> : vector<128xf32>
    %69 = vector.multi_reduction <maximumf>, %68, %cst_32 [1] : vector<128x128xf32> to vector<128xf32>
    %70 = vector.shape_cast %69 : vector<128xf32> to vector<128x1xf32>
    %71 = vector.broadcast %70 : vector<128x1xf32> to vector<128x128xf32>
    %72 = arith.subf %68, %71 : vector<128x128xf32>
    %73 = math.exp %72 : vector<128x128xf32>
    %cst_33 = arith.constant dense<0.000000e+00> : vector<128xf32>
    %74 = vector.multi_reduction <add>, %73, %cst_33 [1] : vector<128x128xf32> to vector<128xf32>
    %75 = vector.shape_cast %74 : vector<128xf32> to vector<128x1xf32>
    %76 = tpu.reciprocal %75 {approx = true} : vector<128x1xf32> -> vector<128x1xf32>
    %77 = vector.broadcast %76 : vector<128x1xf32> to vector<128x128xf32>
    %78 = arith.mulf %73, %77 : vector<128x128xf32>
    %79 = arith.truncf %78 : vector<128x128xf32> to vector<128x128xbf16>
    %80 = vector.broadcast %63 : vector<1x32xf32> to vector<128x32xf32>
    %81 = arith.mulf %25, %80 : vector<128x32xf32>
    %82 = arith.truncf %81 : vector<128x32xf32> to vector<128x32xbf16>
    %cst_34 = arith.constant dense<0.000000e+00> : vector<128x32xf32>
    %83 = tpu.matmul %79, %82, %cst_34 {dimension_numbers = #tpu.dot_dimension_numbers<[1], [0], [0], [1], [0, 0, 1, 1], [], []>} : vector<128x128xbf16>, vector<128x32xbf16>, vector<128x32xf32> -> vector<128x32xf32>
    %84 = arith.addf %56, %83 : vector<128x32xf32>
    %c16_i32_35 = arith.constant 16 : i32
    %85 = vector.broadcast %c16_i32_35 : i32 to vector<1x32xi32>
    %86 = arith.cmpi sge, %27, %85 : vector<1x32xi32>
    %c24_i32 = arith.constant 24 : i32
    %87 = vector.broadcast %c24_i32 : i32 to vector<1x32xi32>
    %88 = arith.cmpi slt, %27, %87 : vector<1x32xi32>
    %89 = arith.andi %86, %88 : vector<1x32xi1>
    %90 = arith.extui %89 : vector<1x32xi1> to vector<1x32xi32>
    %91 = arith.sitofp %90 : vector<1x32xi32> to vector<1x32xf32>
    %92 = vector.broadcast %91 : vector<1x32xf32> to vector<128x32xf32>
    %93 = arith.mulf %15, %92 : vector<128x32xf32>
    %94 = arith.truncf %93 : vector<128x32xf32> to vector<128x32xbf16>
    %cst_36 = arith.constant dense<0.000000e+00> : vector<128x128xf32>
    %95 = tpu.matmul %94, %26, %cst_36 {dimension_numbers = #tpu.dot_dimension_numbers<[1], [1], [0], [0], [0, 0, 1, 0], [], []>} : vector<128x32xbf16>, vector<128x32xbf16>, vector<128x128xf32> -> vector<128x128xf32>
    %96 = arith.addf %95, %7 : vector<128x128xf32>
    %cst_37 = arith.constant dense<0xFF800000> : vector<128xf32>
    %97 = vector.multi_reduction <maximumf>, %96, %cst_37 [1] : vector<128x128xf32> to vector<128xf32>
    %98 = vector.shape_cast %97 : vector<128xf32> to vector<128x1xf32>
    %99 = vector.broadcast %98 : vector<128x1xf32> to vector<128x128xf32>
    %100 = arith.subf %96, %99 : vector<128x128xf32>
    %101 = math.exp %100 : vector<128x128xf32>
    %cst_38 = arith.constant dense<0.000000e+00> : vector<128xf32>
    %102 = vector.multi_reduction <add>, %101, %cst_38 [1] : vector<128x128xf32> to vector<128xf32>
    %103 = vector.shape_cast %102 : vector<128xf32> to vector<128x1xf32>
    %104 = tpu.reciprocal %103 {approx = true} : vector<128x1xf32> -> vector<128x1xf32>
    %105 = vector.broadcast %104 : vector<128x1xf32> to vector<128x128xf32>
    %106 = arith.mulf %101, %105 : vector<128x128xf32>
    %107 = arith.truncf %106 : vector<128x128xf32> to vector<128x128xbf16>
    %108 = vector.broadcast %91 : vector<1x32xf32> to vector<128x32xf32>
    %109 = arith.mulf %25, %108 : vector<128x32xf32>
    %110 = arith.truncf %109 : vector<128x32xf32> to vector<128x32xbf16>
    %cst_39 = arith.constant dense<0.000000e+00> : vector<128x32xf32>
    %111 = tpu.matmul %107, %110, %cst_39 {dimension_numbers = #tpu.dot_dimension_numbers<[1], [0], [0], [1], [0, 0, 1, 1], [], []>} : vector<128x128xbf16>, vector<128x32xbf16>, vector<128x32xf32> -> vector<128x32xf32>
    %112 = arith.addf %84, %111 : vector<128x32xf32>
    %c24_i32_40 = arith.constant 24 : i32
    %113 = vector.broadcast %c24_i32_40 : i32 to vector<1x32xi32>
    %114 = arith.cmpi sge, %27, %113 : vector<1x32xi32>
    %c32_i32 = arith.constant 32 : i32
    %115 = vector.broadcast %c32_i32 : i32 to vector<1x32xi32>
    %116 = arith.cmpi slt, %27, %115 : vector<1x32xi32>
    %117 = arith.andi %114, %116 : vector<1x32xi1>
    %118 = arith.extui %117 : vector<1x32xi1> to vector<1x32xi32>
    %119 = arith.sitofp %118 : vector<1x32xi32> to vector<1x32xf32>
    %120 = vector.broadcast %119 : vector<1x32xf32> to vector<128x32xf32>
    %121 = arith.mulf %15, %120 : vector<128x32xf32>
    %122 = arith.truncf %121 : vector<128x32xf32> to vector<128x32xbf16>
    %cst_41 = arith.constant dense<0.000000e+00> : vector<128x128xf32>
    %123 = tpu.matmul %122, %26, %cst_41 {dimension_numbers = #tpu.dot_dimension_numbers<[1], [1], [0], [0], [0, 0, 1, 0], [], []>} : vector<128x32xbf16>, vector<128x32xbf16>, vector<128x128xf32> -> vector<128x128xf32>
    %124 = arith.addf %123, %7 : vector<128x128xf32>
    %cst_42 = arith.constant dense<0xFF800000> : vector<128xf32>
    %125 = vector.multi_reduction <maximumf>, %124, %cst_42 [1] : vector<128x128xf32> to vector<128xf32>
    %126 = vector.shape_cast %125 : vector<128xf32> to vector<128x1xf32>
    %127 = vector.broadcast %126 : vector<128x1xf32> to vector<128x128xf32>
    %128 = arith.subf %124, %127 : vector<128x128xf32>
    %129 = math.exp %128 : vector<128x128xf32>
    %cst_43 = arith.constant dense<0.000000e+00> : vector<128xf32>
    %130 = vector.multi_reduction <add>, %129, %cst_43 [1] : vector<128x128xf32> to vector<128xf32>
    %131 = vector.shape_cast %130 : vector<128xf32> to vector<128x1xf32>
    %132 = tpu.reciprocal %131 {approx = true} : vector<128x1xf32> -> vector<128x1xf32>
    %133 = vector.broadcast %132 : vector<128x1xf32> to vector<128x128xf32>
    %134 = arith.mulf %129, %133 : vector<128x128xf32>
    %135 = arith.truncf %134 : vector<128x128xf32> to vector<128x128xbf16>
    %136 = vector.broadcast %119 : vector<1x32xf32> to vector<128x32xf32>
    %137 = arith.mulf %25, %136 : vector<128x32xf32>
    %138 = arith.truncf %137 : vector<128x32xf32> to vector<128x32xbf16>
    %cst_44 = arith.constant dense<0.000000e+00> : vector<128x32xf32>
    %139 = tpu.matmul %135, %138, %cst_44 {dimension_numbers = #tpu.dot_dimension_numbers<[1], [0], [0], [1], [0, 0, 1, 1], [], []>} : vector<128x128xbf16>, vector<128x32xbf16>, vector<128x32xf32> -> vector<128x32xf32>
    %140 = arith.addf %112, %139 : vector<128x32xf32>
    %141 = arith.truncf %140 : vector<128x32xf32> to vector<128x32xbf16>
    %c0_45 = arith.constant 0 : index
    %c0_46 = arith.constant 0 : index
    %142 = vector.load %arg12[%c0_45, %c0_46] : memref<32x32xbf16, #tpu.memory_space<vmem>>, vector<32x32xbf16>
    %cst_47 = arith.constant dense<0.000000e+00> : vector<128x32xf32>
    %143 = tpu.matmul %141, %142, %cst_47 {dimension_numbers = #tpu.dot_dimension_numbers<[1], [0], [0], [1], [0, 0, 1, 1], [], []>} : vector<128x32xbf16>, vector<32x32xbf16>, vector<128x32xf32> -> vector<128x32xf32>
    %c0_48 = arith.constant 0 : index
    %c0_49 = arith.constant 0 : index
    %144 = vector.load %arg13[%c0_48, %c0_49] : memref<1x32xf32, #tpu.memory_space<vmem>>, vector<1x32xf32>
    %145 = vector.broadcast %144 : vector<1x32xf32> to vector<128x32xf32>
    %146 = arith.addf %143, %145 : vector<128x32xf32>
    %147 = arith.addf %0, %146 : vector<128x32xf32>
    %c0_50 = arith.constant 0 : index
    %c0_51 = arith.constant 0 : index
    %148 = vector.load %arg14[%c0_50, %c0_51] : memref<1x32xf32, #tpu.memory_space<vmem>>, vector<1x32xf32>
    %c0_52 = arith.constant 0 : index
    %c0_53 = arith.constant 0 : index
    %149 = vector.load %arg15[%c0_52, %c0_53] : memref<1x32xf32, #tpu.memory_space<vmem>>, vector<1x32xf32>
    %cst_54 = arith.constant dense<0.000000e+00> : vector<128xf32>
    %150 = vector.multi_reduction <add>, %147, %cst_54 [1] : vector<128x32xf32> to vector<128xf32>
    %151 = vector.shape_cast %150 : vector<128xf32> to vector<128x1xf32>
    %cst_55 = arith.constant 3.200000e+01 : f32
    %152 = vector.broadcast %cst_55 : f32 to vector<128x1xf32>
    %153 = arith.divf %151, %152 : vector<128x1xf32>
    %154 = vector.broadcast %153 : vector<128x1xf32> to vector<128x32xf32>
    %155 = arith.subf %147, %154 : vector<128x32xf32>
    %156 = arith.mulf %155, %155 : vector<128x32xf32>
    %cst_56 = arith.constant dense<0.000000e+00> : vector<128xf32>
    %157 = vector.multi_reduction <add>, %156, %cst_56 [1] : vector<128x32xf32> to vector<128xf32>
    %158 = vector.shape_cast %157 : vector<128xf32> to vector<128x1xf32>
    %cst_57 = arith.constant 3.200000e+01 : f32
    %159 = vector.broadcast %cst_57 : f32 to vector<128x1xf32>
    %160 = arith.divf %158, %159 : vector<128x1xf32>
    %161 = vector.broadcast %153 : vector<128x1xf32> to vector<128x32xf32>
    %162 = arith.subf %147, %161 : vector<128x32xf32>
    %cst_58 = arith.constant 9.99999974E-6 : f32
    %163 = vector.broadcast %cst_58 : f32 to vector<128x1xf32>
    %164 = arith.addf %160, %163 : vector<128x1xf32>
    %165 = math.rsqrt %164 : vector<128x1xf32>
    %166 = vector.broadcast %165 : vector<128x1xf32> to vector<128x32xf32>
    %167 = arith.mulf %162, %166 : vector<128x32xf32>
    %168 = vector.broadcast %148 : vector<1x32xf32> to vector<128x32xf32>
    %169 = arith.mulf %167, %168 : vector<128x32xf32>
    %170 = vector.broadcast %149 : vector<1x32xf32> to vector<128x32xf32>
    %171 = arith.addf %169, %170 : vector<128x32xf32>
    %172 = arith.truncf %171 : vector<128x32xf32> to vector<128x32xbf16>
    %c0_59 = arith.constant 0 : index
    %c0_60 = arith.constant 0 : index
    %173 = vector.load %arg16[%c0_59, %c0_60] : memref<32x64xbf16, #tpu.memory_space<vmem>>, vector<32x64xbf16>
    %cst_61 = arith.constant dense<0.000000e+00> : vector<128x64xf32>
    %174 = tpu.matmul %172, %173, %cst_61 {dimension_numbers = #tpu.dot_dimension_numbers<[1], [0], [0], [1], [0, 0, 1, 1], [], []>} : vector<128x32xbf16>, vector<32x64xbf16>, vector<128x64xf32> -> vector<128x64xf32>
    %c0_62 = arith.constant 0 : index
    %c0_63 = arith.constant 0 : index
    %175 = vector.load %arg17[%c0_62, %c0_63] : memref<1x64xf32, #tpu.memory_space<vmem>>, vector<1x64xf32>
    %176 = vector.broadcast %175 : vector<1x64xf32> to vector<128x64xf32>
    %177 = arith.addf %174, %176 : vector<128x64xf32>
    %cst_64 = arith.constant 0.000000e+00 : f32
    %178 = vector.broadcast %cst_64 : f32 to vector<128x64xf32>
    %179 = arith.maximumf %177, %178 : vector<128x64xf32>
    %180 = arith.truncf %179 : vector<128x64xf32> to vector<128x64xbf16>
    %c0_65 = arith.constant 0 : index
    %c0_66 = arith.constant 0 : index
    %181 = vector.load %arg18[%c0_65, %c0_66] : memref<64x32xbf16, #tpu.memory_space<vmem>>, vector<64x32xbf16>
    %cst_67 = arith.constant dense<0.000000e+00> : vector<128x32xf32>
    %182 = tpu.matmul %180, %181, %cst_67 {dimension_numbers = #tpu.dot_dimension_numbers<[1], [0], [0], [1], [0, 0, 1, 1], [], []>} : vector<128x64xbf16>, vector<64x32xbf16>, vector<128x32xf32> -> vector<128x32xf32>
    %c0_68 = arith.constant 0 : index
    %c0_69 = arith.constant 0 : index
    %183 = vector.load %arg19[%c0_68, %c0_69] : memref<1x32xf32, #tpu.memory_space<vmem>>, vector<1x32xf32>
    %184 = vector.broadcast %183 : vector<1x32xf32> to vector<128x32xf32>
    %185 = arith.addf %182, %184 : vector<128x32xf32>
    %186 = arith.addf %171, %185 : vector<128x32xf32>
    %c0_70 = arith.constant 0 : index
    %c0_71 = arith.constant 0 : index
    %187 = vector.load %arg20[%c0_70, %c0_71] : memref<1x32xf32, #tpu.memory_space<vmem>>, vector<1x32xf32>
    %c0_72 = arith.constant 0 : index
    %c0_73 = arith.constant 0 : index
    %188 = vector.load %arg21[%c0_72, %c0_73] : memref<1x32xf32, #tpu.memory_space<vmem>>, vector<1x32xf32>
    %cst_74 = arith.constant dense<0.000000e+00> : vector<128xf32>
    %189 = vector.multi_reduction <add>, %186, %cst_74 [1] : vector<128x32xf32> to vector<128xf32>
    %190 = vector.shape_cast %189 : vector<128xf32> to vector<128x1xf32>
    %cst_75 = arith.constant 3.200000e+01 : f32
    %191 = vector.broadcast %cst_75 : f32 to vector<128x1xf32>
    %192 = arith.divf %190, %191 : vector<128x1xf32>
    %193 = vector.broadcast %192 : vector<128x1xf32> to vector<128x32xf32>
    %194 = arith.subf %186, %193 : vector<128x32xf32>
    %195 = arith.mulf %194, %194 : vector<128x32xf32>
    %cst_76 = arith.constant dense<0.000000e+00> : vector<128xf32>
    %196 = vector.multi_reduction <add>, %195, %cst_76 [1] : vector<128x32xf32> to vector<128xf32>
    %197 = vector.shape_cast %196 : vector<128xf32> to vector<128x1xf32>
    %cst_77 = arith.constant 3.200000e+01 : f32
    %198 = vector.broadcast %cst_77 : f32 to vector<128x1xf32>
    %199 = arith.divf %197, %198 : vector<128x1xf32>
    %200 = vector.broadcast %192 : vector<128x1xf32> to vector<128x32xf32>
    %201 = arith.subf %186, %200 : vector<128x32xf32>
    %cst_78 = arith.constant 9.99999974E-6 : f32
    %202 = vector.broadcast %cst_78 : f32 to vector<128x1xf32>
    %203 = arith.addf %199, %202 : vector<128x1xf32>
    %204 = math.rsqrt %203 : vector<128x1xf32>
    %205 = vector.broadcast %204 : vector<128x1xf32> to vector<128x32xf32>
    %206 = arith.mulf %201, %205 : vector<128x32xf32>
    %207 = vector.broadcast %187 : vector<1x32xf32> to vector<128x32xf32>
    %208 = arith.mulf %206, %207 : vector<128x32xf32>
    %209 = vector.broadcast %188 : vector<1x32xf32> to vector<128x32xf32>
    %210 = arith.addf %208, %209 : vector<128x32xf32>
    %211 = vector.broadcast %2 : vector<128x1xf32> to vector<128x32xf32>
    %212 = arith.mulf %210, %211 : vector<128x32xf32>
    %213 = arith.truncf %1 : vector<128x32xf32> to vector<128x32xbf16>
    %c0_79 = arith.constant 0 : index
    %c0_80 = arith.constant 0 : index
    %214 = vector.load %arg22[%c0_79, %c0_80] : memref<32x64xbf16, #tpu.memory_space<vmem>>, vector<32x64xbf16>
    %cst_81 = arith.constant dense<0.000000e+00> : vector<128x64xf32>
    %215 = tpu.matmul %213, %214, %cst_81 {dimension_numbers = #tpu.dot_dimension_numbers<[1], [0], [0], [1], [0, 0, 1, 1], [], []>} : vector<128x32xbf16>, vector<32x64xbf16>, vector<128x64xf32> -> vector<128x64xf32>
    %c0_82 = arith.constant 0 : index
    %c0_83 = arith.constant 0 : index
    %216 = vector.load %arg23[%c0_82, %c0_83] : memref<1x64xf32, #tpu.memory_space<vmem>>, vector<1x64xf32>
    %217 = vector.broadcast %216 : vector<1x64xf32> to vector<128x64xf32>
    %218 = arith.addf %215, %217 : vector<128x64xf32>
    %cst_84 = arith.constant 0.000000e+00 : f32
    %219 = vector.broadcast %cst_84 : f32 to vector<128x64xf32>
    %220 = arith.maximumf %218, %219 : vector<128x64xf32>
    %221 = arith.truncf %220 : vector<128x64xf32> to vector<128x64xbf16>
    %c0_85 = arith.constant 0 : index
    %c0_86 = arith.constant 0 : index
    %222 = vector.load %arg24[%c0_85, %c0_86] : memref<64x32xbf16, #tpu.memory_space<vmem>>, vector<64x32xbf16>
    %cst_87 = arith.constant dense<0.000000e+00> : vector<128x32xf32>
    %223 = tpu.matmul %221, %222, %cst_87 {dimension_numbers = #tpu.dot_dimension_numbers<[1], [0], [0], [1], [0, 0, 1, 1], [], []>} : vector<128x64xbf16>, vector<64x32xbf16>, vector<128x32xf32> -> vector<128x32xf32>
    %c0_88 = arith.constant 0 : index
    %c0_89 = arith.constant 0 : index
    %224 = vector.load %arg25[%c0_88, %c0_89] : memref<1x32xf32, #tpu.memory_space<vmem>>, vector<1x32xf32>
    %225 = vector.broadcast %224 : vector<1x32xf32> to vector<128x32xf32>
    %226 = arith.addf %223, %225 : vector<128x32xf32>
    %227 = arith.truncf %226 : vector<128x32xf32> to vector<128x32xbf16>
    %cst_90 = arith.constant 0.176776692 : f32
    %228 = vector.broadcast %cst_90 : f32 to vector<128x32xf32>
    %229 = arith.mulf %226, %228 : vector<128x32xf32>
    %230 = arith.truncf %229 : vector<128x32xf32> to vector<128x32xbf16>
    %cst_91 = arith.constant dense<0.000000e+00> : vector<128x128xf32>
    %231 = tpu.matmul %230, %227, %cst_91 {dimension_numbers = #tpu.dot_dimension_numbers<[1], [1], [0], [0], [0, 0, 1, 0], [], []>} : vector<128x32xbf16>, vector<128x32xbf16>, vector<128x128xf32> -> vector<128x128xf32>
    %232 = arith.addf %231, %7 : vector<128x128xf32>
    %cst_92 = arith.constant dense<0xFF800000> : vector<128xf32>
    %233 = vector.multi_reduction <maximumf>, %232, %cst_92 [1] : vector<128x128xf32> to vector<128xf32>
    %234 = vector.shape_cast %233 : vector<128xf32> to vector<128x1xf32>
    %235 = vector.broadcast %234 : vector<128x1xf32> to vector<128x128xf32>
    %236 = arith.subf %232, %235 : vector<128x128xf32>
    %237 = math.exp %236 : vector<128x128xf32>
    %cst_93 = arith.constant dense<0.000000e+00> : vector<128xf32>
    %238 = vector.multi_reduction <add>, %237, %cst_93 [1] : vector<128x128xf32> to vector<128xf32>
    %239 = vector.shape_cast %238 : vector<128xf32> to vector<128x1xf32>
    %240 = tpu.reciprocal %239 {approx = true} : vector<128x1xf32> -> vector<128x1xf32>
    %241 = vector.broadcast %240 : vector<128x1xf32> to vector<128x128xf32>
    %242 = arith.mulf %237, %241 : vector<128x128xf32>
    %243 = vector.broadcast %2 : vector<128x1xf32> to vector<128x128xf32>
    %244 = arith.mulf %242, %243 : vector<128x128xf32>
    %245 = arith.truncf %244 : vector<128x128xf32> to vector<128x128xbf16>
    %c0_94 = arith.constant 0 : index
    %c0_95 = arith.constant 0 : index
    %246 = vector.load %arg26[%c0_94, %c0_95] : memref<32x64xbf16, #tpu.memory_space<vmem>>, vector<32x64xbf16>
    %cst_96 = arith.constant dense<0.000000e+00> : vector<128x64xf32>
    %247 = tpu.matmul %227, %246, %cst_96 {dimension_numbers = #tpu.dot_dimension_numbers<[1], [0], [0], [1], [0, 0, 1, 1], [], []>} : vector<128x32xbf16>, vector<32x64xbf16>, vector<128x64xf32> -> vector<128x64xf32>
    %c0_97 = arith.constant 0 : index
    %c0_98 = arith.constant 0 : index
    %248 = vector.load %arg27[%c0_97, %c0_98] : memref<1x64xf32, #tpu.memory_space<vmem>>, vector<1x64xf32>
    %249 = vector.broadcast %248 : vector<1x64xf32> to vector<128x64xf32>
    %250 = arith.addf %247, %249 : vector<128x64xf32>
    %251 = arith.truncf %250 : vector<128x64xf32> to vector<128x64xbf16>
    %cst_99 = arith.constant dense<0.000000e+00> : vector<128x64xf32>
    %252 = tpu.matmul %245, %251, %cst_99 {dimension_numbers = #tpu.dot_dimension_numbers<[1], [0], [0], [1], [0, 0, 1, 1], [], []>} : vector<128x128xbf16>, vector<128x64xbf16>, vector<128x64xf32> -> vector<128x64xf32>
    %cst_100 = arith.constant 0.000000e+00 : f32
    %253 = vector.broadcast %cst_100 : f32 to vector<128x64xf32>
    %254 = arith.maximumf %252, %253 : vector<128x64xf32>
    %255 = arith.truncf %254 : vector<128x64xf32> to vector<128x64xbf16>
    %c0_101 = arith.constant 0 : index
    %c0_102 = arith.constant 0 : index
    %256 = vector.load %arg28[%c0_101, %c0_102] : memref<64x32xbf16, #tpu.memory_space<vmem>>, vector<64x32xbf16>
    %cst_103 = arith.constant dense<0.000000e+00> : vector<128x32xf32>
    %257 = tpu.matmul %255, %256, %cst_103 {dimension_numbers = #tpu.dot_dimension_numbers<[1], [0], [0], [1], [0, 0, 1, 1], [], []>} : vector<128x64xbf16>, vector<64x32xbf16>, vector<128x32xf32> -> vector<128x32xf32>
    %c0_104 = arith.constant 0 : index
    %c0_105 = arith.constant 0 : index
    %258 = vector.load %arg29[%c0_104, %c0_105] : memref<1x32xf32, #tpu.memory_space<vmem>>, vector<1x32xf32>
    %259 = vector.broadcast %258 : vector<1x32xf32> to vector<128x32xf32>
    %260 = arith.addf %257, %259 : vector<128x32xf32>
    %261 = arith.truncf %260 : vector<128x32xf32> to vector<128x32xbf16>
    %cst_106 = arith.constant dense<0.000000e+00> : vector<128x32xf32>
    %262 = tpu.matmul %245, %261, %cst_106 {dimension_numbers = #tpu.dot_dimension_numbers<[1], [0], [0], [1], [0, 0, 1, 1], [], []>} : vector<128x128xbf16>, vector<128x32xbf16>, vector<128x32xf32> -> vector<128x32xf32>
    %263 = vector.broadcast %2 : vector<128x1xf32> to vector<128x32xf32>
    %264 = arith.mulf %262, %263 : vector<128x32xf32>
    %265 = arith.truncf %264 : vector<128x32xf32> to vector<128x32xbf16>
    %cst_107 = arith.constant dense<0.000000e+00> : vector<128x32xf32>
    %266 = tpu.matmul %245, %265, %cst_107 {dimension_numbers = #tpu.dot_dimension_numbers<[1], [0], [0], [1], [0, 0, 1, 1], [], []>} : vector<128x128xbf16>, vector<128x32xbf16>, vector<128x32xf32> -> vector<128x32xf32>
    %267 = arith.addf %212, %266 : vector<128x32xf32>
    %c0_108 = arith.constant 0 : index
    %c0_109 = arith.constant 0 : index
    %268 = vector.load %arg30[%c0_108, %c0_109] : memref<1x32xf32, #tpu.memory_space<vmem>>, vector<1x32xf32>
    %c0_110 = arith.constant 0 : index
    %c0_111 = arith.constant 0 : index
    %269 = vector.load %arg31[%c0_110, %c0_111] : memref<1x32xf32, #tpu.memory_space<vmem>>, vector<1x32xf32>
    %cst_112 = arith.constant dense<0.000000e+00> : vector<128xf32>
    %270 = vector.multi_reduction <add>, %267, %cst_112 [1] : vector<128x32xf32> to vector<128xf32>
    %271 = vector.shape_cast %270 : vector<128xf32> to vector<128x1xf32>
    %cst_113 = arith.constant 3.200000e+01 : f32
    %272 = vector.broadcast %cst_113 : f32 to vector<128x1xf32>
    %273 = arith.divf %271, %272 : vector<128x1xf32>
    %274 = vector.broadcast %273 : vector<128x1xf32> to vector<128x32xf32>
    %275 = arith.subf %267, %274 : vector<128x32xf32>
    %276 = arith.mulf %275, %275 : vector<128x32xf32>
    %cst_114 = arith.constant dense<0.000000e+00> : vector<128xf32>
    %277 = vector.multi_reduction <add>, %276, %cst_114 [1] : vector<128x32xf32> to vector<128xf32>
    %278 = vector.shape_cast %277 : vector<128xf32> to vector<128x1xf32>
    %cst_115 = arith.constant 3.200000e+01 : f32
    %279 = vector.broadcast %cst_115 : f32 to vector<128x1xf32>
    %280 = arith.divf %278, %279 : vector<128x1xf32>
    %281 = vector.broadcast %273 : vector<128x1xf32> to vector<128x32xf32>
    %282 = arith.subf %267, %281 : vector<128x32xf32>
    %cst_116 = arith.constant 9.99999974E-6 : f32
    %283 = vector.broadcast %cst_116 : f32 to vector<128x1xf32>
    %284 = arith.addf %280, %283 : vector<128x1xf32>
    %285 = math.rsqrt %284 : vector<128x1xf32>
    %286 = vector.broadcast %285 : vector<128x1xf32> to vector<128x32xf32>
    %287 = arith.mulf %282, %286 : vector<128x32xf32>
    %288 = vector.broadcast %268 : vector<1x32xf32> to vector<128x32xf32>
    %289 = arith.mulf %287, %288 : vector<128x32xf32>
    %290 = vector.broadcast %269 : vector<1x32xf32> to vector<128x32xf32>
    %291 = arith.addf %289, %290 : vector<128x32xf32>
    %292 = tpu.transpose %291, [1, 0] : vector<128x32xf32> -> vector<32x128xf32>
    %c0_117 = arith.constant 0 : index
    %c0_118 = arith.constant 0 : index
    %293 = vector.load %arg32[%c0_117, %c0_118] : memref<32x128xf32, #tpu.memory_space<vmem>>, vector<32x128xf32>
    tpu.vector_store %arg32[%c0_117, %c0_118], %292 {strides = array<i32>} : memref<32x128xf32, #tpu.memory_space<vmem>>, vector<32x128xf32>,
    return
  }
  func.func @transform_0(%arg0: i32) -> (i32, i32) {
    %c0_i32 = arith.constant 0 : i32
    %c0_i32_0 = arith.constant 0 : i32
    return %arg0, %c0_i32 : i32, i32
  }
  func.func @transform_1(%arg0: i32) -> (i32, i32) {
    %c0_i32 = arith.constant 0 : i32
    %c0_i32_0 = arith.constant 0 : i32
    return %arg0, %c0_i32 : i32, i32
  }
  func.func @transform_2(%arg0: i32) -> (i32, i32) {
    %c0_i32 = arith.constant 0 : i32
    %c0_i32_0 = arith.constant 0 : i32
    return %arg0, %c0_i32 : i32, i32
  }
  func.func @transform_3(%arg0: i32) -> (i32, i32, i32) {
    %c0_i32 = arith.constant 0 : i32
    %c0_i32_0 = arith.constant 0 : i32
    %c0_i32_1 = arith.constant 0 : i32
    return %arg0, %c0_i32, %c0_i32_0 : i32, i32, i32
  }
  func.func @transform_4(%arg0: i32) -> (i32, i32) {
    %c0_i32 = arith.constant 0 : i32
    %c0_i32_0 = arith.constant 0 : i32
    %c0_i32_1 = arith.constant 0 : i32
    return %c0_i32, %c0_i32_0 : i32, i32
  }
  func.func @transform_5(%arg0: i32) -> (i32, i32) {
    %c0_i32 = arith.constant 0 : i32
    %c0_i32_0 = arith.constant 0 : i32
    %c0_i32_1 = arith.constant 0 : i32
    return %c0_i32, %c0_i32_0 : i32, i32
  }
  func.func @transform_6(%arg0: i32) -> (i32, i32) {
    %c0_i32 = arith.constant 0 : i32
    %c0_i32_0 = arith.constant 0 : i32
    %c0_i32_1 = arith.constant 0 : i32
    return %c0_i32, %c0_i32_0 : i32, i32
  }
  func.func @transform_7(%arg0: i32) -> (i32, i32) {
    %c0_i32 = arith.constant 0 : i32
    %c0_i32_0 = arith.constant 0 : i32
    %c0_i32_1 = arith.constant 0 : i32
    return %c0_i32, %c0_i32_0 : i32, i32
  }
  func.func @transform_8(%arg0: i32) -> (i32, i32) {
    %c0_i32 = arith.constant 0 : i32
    %c0_i32_0 = arith.constant 0 : i32
    %c0_i32_1 = arith.constant 0 : i32
    return %c0_i32, %c0_i32_0 : i32, i32
  }
  func.func @transform_9(%arg0: i32) -> (i32, i32) {
    %c0_i32 = arith.constant 0 : i32
    %c0_i32_0 = arith.constant 0 : i32
    %c0_i32_1 = arith.constant 0 : i32
    return %c0_i32, %c0_i32_0 : i32, i32
  }
  func.func @transform_10(%arg0: i32) -> (i32, i32) {
    %c0_i32 = arith.constant 0 : i32
    %c0_i32_0 = arith.constant 0 : i32
    %c0_i32_1 = arith.constant 0 : i32
    return %c0_i32, %c0_i32_0 : i32, i32
  }
  func.func @transform_11(%arg0: i32) -> (i32, i32) {
    %c0_i32 = arith.constant 0 : i32
    %c0_i32_0 = arith.constant 0 : i32
    %c0_i32_1 = arith.constant 0 : i32
    return %c0_i32, %c0_i32_0 : i32, i32
  }
  func.func @transform_12(%arg0: i32) -> (i32, i32) {
    %c0_i32 = arith.constant 0 : i32
    %c0_i32_0 = arith.constant 0 : i32
    %c0_i32_1 = arith.constant 0 : i32
    return %c0_i32, %c0_i32_0 : i32, i32
  }
  func.func @transform_13(%arg0: i32) -> (i32, i32) {
    %c0_i32 = arith.constant 0 : i32
    %c0_i32_0 = arith.constant 0 : i32
    %c0_i32_1 = arith.constant 0 : i32
    return %c0_i32, %c0_i32_0 : i32, i32
  }
  func.func @transform_14(%arg0: i32) -> (i32, i32) {
    %c0_i32 = arith.constant 0 : i32
    %c0_i32_0 = arith.constant 0 : i32
    %c0_i32_1 = arith.constant 0 : i32
    return %c0_i32, %c0_i32_0 : i32, i32
  }
  func.func @transform_15(%arg0: i32) -> (i32, i32) {
    %c0_i32 = arith.constant 0 : i32
    %c0_i32_0 = arith.constant 0 : i32
    %c0_i32_1 = arith.constant 0 : i32
    return %c0_i32, %c0_i32_0 : i32, i32
  }
  func.func @transform_16(%arg0: i32) -> (i32, i32) {
    %c0_i32 = arith.constant 0 : i32
    %c0_i32_0 = arith.constant 0 : i32
    %c0_i32_1 = arith.constant 0 : i32
    return %c0_i32, %c0_i32_0 : i32, i32
  }
  func.func @transform_17(%arg0: i32) -> (i32, i32) {
    %c0_i32 = arith.constant 0 : i32
    %c0_i32_0 = arith.constant 0 : i32
    %c0_i32_1 = arith.constant 0 : i32
    return %c0_i32, %c0_i32_0 : i32, i32
  }
  func.func @transform_18(%arg0: i32) -> (i32, i32) {
    %c0_i32 = arith.constant 0 : i32
    %c0_i32_0 = arith.constant 0 : i32
    %c0_i32_1 = arith.constant 0 : i32
    return %c0_i32, %c0_i32_0 : i32, i32
  }
  func.func @transform_19(%arg0: i32) -> (i32, i32) {
    %c0_i32 = arith.constant 0 : i32
    %c0_i32_0 = arith.constant 0 : i32
    %c0_i32_1 = arith.constant 0 : i32
    return %c0_i32, %c0_i32_0 : i32, i32
  }
  func.func @transform_20(%arg0: i32) -> (i32, i32) {
    %c0_i32 = arith.constant 0 : i32
    %c0_i32_0 = arith.constant 0 : i32
    %c0_i32_1 = arith.constant 0 : i32
    return %c0_i32, %c0_i32_0 : i32, i32
  }
  func.func @transform_21(%arg0: i32) -> (i32, i32) {
    %c0_i32 = arith.constant 0 : i32
    %c0_i32_0 = arith.constant 0 : i32
    %c0_i32_1 = arith.constant 0 : i32
    return %c0_i32, %c0_i32_0 : i32, i32
  }
  func.func @transform_22(%arg0: i32) -> (i32, i32) {
    %c0_i32 = arith.constant 0 : i32
    %c0_i32_0 = arith.constant 0 : i32
    %c0_i32_1 = arith.constant 0 : i32
    return %c0_i32, %c0_i32_0 : i32, i32
  }
  func.func @transform_23(%arg0: i32) -> (i32, i32) {
    %c0_i32 = arith.constant 0 : i32
    %c0_i32_0 = arith.constant 0 : i32
    %c0_i32_1 = arith.constant 0 : i32
    return %c0_i32, %c0_i32_0 : i32, i32
  }
  func.func @transform_24(%arg0: i32) -> (i32, i32) {
    %c0_i32 = arith.constant 0 : i32
    %c0_i32_0 = arith.constant 0 : i32
    %c0_i32_1 = arith.constant 0 : i32
    return %c0_i32, %c0_i32_0 : i32, i32
  }
  func.func @transform_25(%arg0: i32) -> (i32, i32) {
    %c0_i32 = arith.constant 0 : i32
    %c0_i32_0 = arith.constant 0 : i32
    %c0_i32_1 = arith.constant 0 : i32
    return %c0_i32, %c0_i32_0 : i32, i32
  }
  func.func @transform_26(%arg0: i32) -> (i32, i32) {
    %c0_i32 = arith.constant 0 : i32
    %c0_i32_0 = arith.constant 0 : i32
    %c0_i32_1 = arith.constant 0 : i32
    return %c0_i32, %c0_i32_0 : i32, i32
  }
  func.func @transform_27(%arg0: i32) -> (i32, i32) {
    %c0_i32 = arith.constant 0 : i32
    %c0_i32_0 = arith.constant 0 : i32
    %c0_i32_1 = arith.constant 0 : i32
    return %c0_i32, %c0_i32_0 : i32, i32
  }
  func.func @transform_28(%arg0: i32) -> (i32, i32) {
    %c0_i32 = arith.constant 0 : i32
    %c0_i32_0 = arith.constant 0 : i32
    %c0_i32_1 = arith.constant 0 : i32
    return %c0_i32, %c0_i32_0 : i32, i32
  }
  func.func @transform_29(%arg0: i32) -> (i32, i32) {
    %c0_i32 = arith.constant 0 : i32
    %c0_i32_0 = arith.constant 0 : i32
    %c0_i32_1 = arith.constant 0 : i32
    return %c0_i32, %c0_i32_0 : i32, i32
  }
  func.func @transform_30(%arg0: i32) -> (i32, i32) {
    %c0_i32 = arith.constant 0 : i32
    %c0_i32_0 = arith.constant 0 : i32
    %c0_i32_1 = arith.constant 0 : i32
    return %c0_i32, %c0_i32_0 : i32, i32
  }
  func.func @transform_31(%arg0: i32) -> (i32, i32) {
    %c0_i32 = arith.constant 0 : i32
    %c0_i32_0 = arith.constant 0 : i32
    return %c0_i32, %arg0 : i32, i32
  }
}

</mosaic_0001>

<llo_original>
// kernel: tpu_custom_call.1
$region0: #{tpu_custom_call.1}
  #allocation0 [shape = 'u32[]', space=smem, size = 0x4, offset = 0x4, fixed_abs, tag = 'smem constant byte address 0x4 - core index']
  #allocation1 [shape = 'u32[72,128]{1,0:T(1,128)}', space=vmem, size = 0x9000, scoped, tag = 'internal scratch']
  %s0 = inlined_call_operand.smem [shape: u32[32], index: -1, kind: input, shape index: {}]
  %s1 = sld [smem:[%s0]]
  %s2 = scalar_lea.smem %s0, 1
  %s3 = sld [smem:[%s2]]
  %s4 = scalar_lea.smem %s0, 2
  %s5 = sld [smem:[%s4]]
  %s6 = scalar_lea.smem %s0, 3
  %s7 = sld [smem:[%s6]]
  %s8 = scalar_lea.smem %s0, 4
  %s9 = sld [smem:[%s8]]
  %s10 = scalar_lea.smem %s0, 5
  %s11 = sld [smem:[%s10]]
  %s12 = scalar_lea.smem %s0, 6
  %s13 = sld [smem:[%s12]]
  %s14 = scalar_lea.smem %s0, 7
  %s15 = sld [smem:[%s14]]
  %s16 = scalar_lea.smem %s0, 8
  %s17 = sld [smem:[%s16]]
  %s18 = scalar_lea.smem %s0, 9
  %s19 = sld [smem:[%s18]]
  %s20 = scalar_lea.smem %s0, 10
  %s21 = sld [smem:[%s20]]
  %s22 = scalar_lea.smem %s0, 11
  %s23 = sld [smem:[%s22]]
  %s24 = scalar_lea.smem %s0, 12
  %s25 = sld [smem:[%s24]]
  %s26 = scalar_lea.smem %s0, 13
  %s27 = sld [smem:[%s26]]
  %s28 = scalar_lea.smem %s0, 14
  %s29 = sld [smem:[%s28]]
  %s30 = scalar_lea.smem %s0, 15
  %s31 = sld [smem:[%s30]]
  %s32 = scalar_lea.smem %s0, 16
  %s33 = sld [smem:[%s32]]
  %s34 = scalar_lea.smem %s0, 17
  %s35 = sld [smem:[%s34]]
  %s36 = scalar_lea.smem %s0, 18
  %s37 = sld [smem:[%s36]]
  %s38 = scalar_lea.smem %s0, 19
  %s39 = sld [smem:[%s38]]
  %s40 = scalar_lea.smem %s0, 20
  %s41 = sld [smem:[%s40]]
  %s42 = scalar_lea.smem %s0, 21
  %s43 = sld [smem:[%s42]]
  %s44 = scalar_lea.smem %s0, 22
  %s45 = sld [smem:[%s44]]
  %s46 = scalar_lea.smem %s0, 23
  %s47 = sld [smem:[%s46]]
  %s48 = scalar_lea.smem %s0, 24
  %s49 = sld [smem:[%s48]]
  %s50 = scalar_lea.smem %s0, 25
  %s51 = sld [smem:[%s50]]
  %s52 = scalar_lea.smem %s0, 26
  %s53 = sld [smem:[%s52]]
  %s54 = scalar_lea.smem %s0, 27
  %s55 = sld [smem:[%s54]]
  %s56 = scalar_lea.smem %s0, 28
  %s57 = sld [smem:[%s56]]
  %s58 = scalar_lea.smem %s0, 29
  %s59 = sld [smem:[%s58]]
  %s60 = scalar_lea.smem %s0, 30
  %s61 = sld [smem:[%s60]]
  %s62 = scalar_lea.smem %s0, 31
  %s63 = sld [smem:[%s62]]
  %s64 = sld [smem:[#allocation0]]
  $region157: #{tpu_custom_call.1} parent=0
    _
  %s66 = ssub.s32 1, %s64
  %s67 = scalar_select 0, %s66, %s64
  $region1: #{tpu_custom_call.1} parent=0
    #allocation2 [shape = 'u8[32768]{0}', space=vmem, size = 0x8000, scoped, tag = 'output window, operand 0']
    #allocation3 [shape = 's32[2]{0}', space=sflag, size = 0x8, scoped, tag = 'scoped memory for tpu_custom_call.1']
    %68 = vsyncpa [#allocation3], 0
    %s69 = scalar_lea.sflag [#allocation3], 1
    %70 = vsyncpa %s69, 0
    loop: start=0, step=1, limit=4
    $region2: #{tpu_custom_call.1} parent=1 // loop_pre_header
      _
    $region3: #{tpu_custom_call.1} parent=1 // loop_header
      %s72 = sphi 0, %s76
      %p73 = scmp.ge.s32.totalorder %s72, 4
      %s82 = sphi 0, %s84
      %s85 = sphi 0, %s82
      %s86 = sphi 0, %s85
      %s102 = sphi 0, %s86
      %s108 = sphi 0, %s110
      %s111 = sphi 0, %s108
      %s112 = sphi 0, %s111
      %s128 = sphi 0, %s112
      %s134 = sphi 0, %s136
      %s137 = sphi 0, %s134
      %s138 = sphi 0, %s137
      %s154 = sphi 0, %s138
      %s160 = sphi 0, %s162
      %s163 = sphi 0, %s160
      %s164 = sphi 0, %s163
      %s180 = sphi 0, %s164
      %s184 = sphi 0, %s184
      %s186 = sphi 0, %s184
      %s187 = sphi 0, %s186
      %s201 = sphi 0, %s187
      %s205 = sphi 0, %s205
      %s207 = sphi 0, %s205
      %s208 = sphi 0, %s207
      %s222 = sphi 0, %s208
      %s226 = sphi 0, %s226
      %s228 = sphi 0, %s226
      %s229 = sphi 0, %s228
      %s243 = sphi 0, %s229
      %s247 = sphi 0, %s247
      %s249 = sphi 0, %s247
      %s250 = sphi 0, %s249
      %s264 = sphi 0, %s250
      %s268 = sphi 0, %s268
      %s270 = sphi 0, %s268
      %s271 = sphi 0, %s270
      %s285 = sphi 0, %s271
      %s289 = sphi 0, %s289
      %s291 = sphi 0, %s289
      %s292 = sphi 0, %s291
      %s306 = sphi 0, %s292
      %s310 = sphi 0, %s310
      %s312 = sphi 0, %s310
      %s313 = sphi 0, %s312
      %s327 = sphi 0, %s313
      %s331 = sphi 0, %s331
      %s333 = sphi 0, %s331
      %s334 = sphi 0, %s333
      %s348 = sphi 0, %s334
      %s352 = sphi 0, %s352
      %s354 = sphi 0, %s352
      %s355 = sphi 0, %s354
      %s369 = sphi 0, %s355
      %s373 = sphi 0, %s373
      %s375 = sphi 0, %s373
      %s376 = sphi 0, %s375
      %s390 = sphi 0, %s376
      %s394 = sphi 0, %s394
      %s396 = sphi 0, %s394
      %s397 = sphi 0, %s396
      %s411 = sphi 0, %s397
      %s415 = sphi 0, %s415
      %s417 = sphi 0, %s415
      %s418 = sphi 0, %s417
      %s432 = sphi 0, %s418
      %s436 = sphi 0, %s436
      %s438 = sphi 0, %s436
      %s439 = sphi 0, %s438
      %s453 = sphi 0, %s439
      %s457 = sphi 0, %s457
      %s459 = sphi 0, %s457
      %s460 = sphi 0, %s459
      %s474 = sphi 0, %s460
      %s478 = sphi 0, %s478
      %s480 = sphi 0, %s478
      %s481 = sphi 0, %s480
      %s495 = sphi 0, %s481
      %s499 = sphi 0, %s499
      %s501 = sphi 0, %s499
      %s502 = sphi 0, %s501
      %s516 = sphi 0, %s502
      %s520 = sphi 0, %s520
      %s522 = sphi 0, %s520
      %s523 = sphi 0, %s522
      %s537 = sphi 0, %s523
      %s541 = sphi 0, %s541
      %s543 = sphi 0, %s541
      %s544 = sphi 0, %s543
      %s558 = sphi 0, %s544
      %s562 = sphi 0, %s562
      %s564 = sphi 0, %s562
      %s565 = sphi 0, %s564
      %s579 = sphi 0, %s565
      %s583 = sphi 0, %s583
      %s585 = sphi 0, %s583
      %s586 = sphi 0, %s585
      %s600 = sphi 0, %s586
      %s604 = sphi 0, %s604
      %s606 = sphi 0, %s604
      %s607 = sphi 0, %s606
      %s621 = sphi 0, %s607
      %s625 = sphi 0, %s625
      %s627 = sphi 0, %s625
      %s628 = sphi 0, %s627
      %s642 = sphi 0, %s628
      %s646 = sphi 0, %s646
      %s648 = sphi 0, %s646
      %s649 = sphi 0, %s648
      %s663 = sphi 0, %s649
      %s667 = sphi 0, %s667
      %s669 = sphi 0, %s667
      %s670 = sphi 0, %s669
      %s684 = sphi 0, %s670
      %s688 = sphi 0, %s688
      %s690 = sphi 0, %s688
      %s691 = sphi 0, %s690
      %s705 = sphi 0, %s691
      %s709 = sphi 0, %s709
      %s711 = sphi 0, %s709
      %s712 = sphi 0, %s711
      %s726 = sphi 0, %s712
      %s730 = sphi 0, %s730
      %s732 = sphi 0, %s730
      %s733 = sphi 0, %s732
      %s747 = sphi 0, %s733
      %s753 = sphi 0, %s755
      %s756 = sphi 0, %s753
      %s757 = sphi 0, %s756
      %s773 = sphi 0, %s757
    $region4: #{tpu_custom_call.1} parent=1 // loop_header_branch
      %75 = sbr.rel (%p73) target = $region8
    $region5: #{tpu_custom_call.1} parent=1 // loop_body
      %s77 = ssub.s32 %s72, 1
      %s78 = ssub.s32 %s72, 2
      %s79 = sadd.s32 %s72, 1
      %s80 = ssub.s32 %s72, %s79
      %p81 = scmp.eq.s32.totalorder %s80, 0
      %s83 = sadd.s32 %s82, 1
      %s84 = scalar_select %p81, %s82, %s83
      %p87 = pneg %p81
      %p88 = scmp.eq.s32.totalorder %s72, 1
      %p89 = por %p87, %p88
      %p90 = scmp.ne.s32.totalorder %s82, %s85
      %p91 = scmp.eq.s32.totalorder %s72, 0
      %p92 = por %p90, %p91
      %p93 = scmp.ne.s32.totalorder %s82, %s85
      %p94 = scmp.eq.s32.totalorder %s77, 1
      %p95 = por %p93, %p94
      %p96 = scmp.ne.s32.totalorder %s85, %s86
      %p97 = scmp.eq.s32.totalorder %s77, 0
      %p98 = por %p96, %p97
      %p99 = scmp.ne.s32.totalorder %s85, %s86
      %p100 = scmp.eq.s32.totalorder %s78, 1
      %p101 = por %p99, %p100
      %p103 = scmp.ne.s32.totalorder %s86, %s102
      %p104 = scmp.eq.s32.totalorder %s78, 0
      %p105 = por %p103, %p104
      %s106 = ssub.s32 %s72, %s79
      %p107 = scmp.eq.s32.totalorder %s106, 0
      %s109 = sadd.s32 %s108, 1
      %s110 = scalar_select %p107, %s108, %s109
      %p113 = pneg %p107
      %p114 = scmp.eq.s32.totalorder %s72, 1
      %p115 = por %p113, %p114
      %p116 = scmp.ne.s32.totalorder %s108, %s111
      %p117 = scmp.eq.s32.totalorder %s72, 0
      %p118 = por %p116, %p117
      %p119 = scmp.ne.s32.totalorder %s108, %s111
      %p120 = scmp.eq.s32.totalorder %s77, 1
      %p121 = por %p119, %p120
      %p122 = scmp.ne.s32.totalorder %s111, %s112
      %p123 = scmp.eq.s32.totalorder %s77, 0
      %p124 = por %p122, %p123
      %p125 = scmp.ne.s32.totalorder %s111, %s112
      %p126 = scmp.eq.s32.totalorder %s78, 1
      %p127 = por %p125, %p126
      %p129 = scmp.ne.s32.totalorder %s112, %s128
      %p130 = scmp.eq.s32.totalorder %s78, 0
      %p131 = por %p129, %p130
      %s132 = ssub.s32 %s72, %s79
      %p133 = scmp.eq.s32.totalorder %s132, 0
      %s135 = sadd.s32 %s134, 1
      %s136 = scalar_select %p133, %s134, %s135
      %p139 = pneg %p133
      %p140 = scmp.eq.s32.totalorder %s72, 1
      %p141 = por %p139, %p140
      %p142 = scmp.ne.s32.totalorder %s134, %s137
      %p143 = scmp.eq.s32.totalorder %s72, 0
      %p144 = por %p142, %p143
      %p145 = scmp.ne.s32.totalorder %s134, %s137
      %p146 = scmp.eq.s32.totalorder %s77, 1
      %p147 = por %p145, %p146
      %p148 = scmp.ne.s32.totalorder %s137, %s138
      %p149 = scmp.eq.s32.totalorder %s77, 0
      %p150 = por %p148, %p149
      %p151 = scmp.ne.s32.totalorder %s137, %s138
      %p152 = scmp.eq.s32.totalorder %s78, 1
      %p153 = por %p151, %p152
      %p155 = scmp.ne.s32.totalorder %s138, %s154
      %p156 = scmp.eq.s32.totalorder %s78, 0
      %p157 = por %p155, %p156
      %s158 = ssub.s32 %s72, %s79
      %p159 = scmp.eq.s32.totalorder %s158, 0
      %s161 = sadd.s32 %s160, 1
      %s162 = scalar_select %p159, %s160, %s161
      %p165 = pneg %p159
      %p166 = scmp.eq.s32.totalorder %s72, 1
      %p167 = por %p165, %p166
      %p168 = scmp.ne.s32.totalorder %s160, %s163
      %p169 = scmp.eq.s32.totalorder %s72, 0
      %p170 = por %p168, %p169
      %p171 = scmp.ne.s32.totalorder %s160, %s163
      %p172 = scmp.eq.s32.totalorder %s77, 1
      %p173 = por %p171, %p172
      %p174 = scmp.ne.s32.totalorder %s163, %s164
      %p175 = scmp.eq.s32.totalorder %s77, 0
      %p176 = por %p174, %p175
      %p177 = scmp.ne.s32.totalorder %s163, %s164
      %p178 = scmp.eq.s32.totalorder %s78, 1
      %p179 = por %p177, %p178
      %p181 = scmp.ne.s32.totalorder %s164, %s180
      %p182 = scmp.eq.s32.totalorder %s78, 0
      %p183 = por %p181, %p182
      %s185 = sadd.s32 %s184, 1
      %p188 = scmp.eq.s32.totalorder %s72, 1
      %p189 = scmp.ne.s32.totalorder %s184, %s186
      %p190 = scmp.eq.s32.totalorder %s72, 0
      %p191 = por %p189, %p190
      %p192 = scmp.ne.s32.totalorder %s184, %s186
      %p193 = scmp.eq.s32.totalorder %s77, 1
      %p194 = por %p192, %p193
      %p195 = scmp.ne.s32.totalorder %s186, %s187
      %p196 = scmp.eq.s32.totalorder %s77, 0
      %p197 = por %p195, %p196
      %p198 = scmp.ne.s32.totalorder %s186, %s187
      %p199 = scmp.eq.s32.totalorder %s78, 1
      %p200 = por %p198, %p199
      %p202 = scmp.ne.s32.totalorder %s187, %s201
      %p203 = scmp.eq.s32.totalorder %s78, 0
      %p204 = por %p202, %p203
      %s206 = sadd.s32 %s205, 1
      %p209 = scmp.eq.s32.totalorder %s72, 1
      %p210 = scmp.ne.s32.totalorder %s205, %s207
      %p211 = scmp.eq.s32.totalorder %s72, 0
      %p212 = por %p210, %p211
      %p213 = scmp.ne.s32.totalorder %s205, %s207
      %p214 = scmp.eq.s32.totalorder %s77, 1
      %p215 = por %p213, %p214
      %p216 = scmp.ne.s32.totalorder %s207, %s208
      %p217 = scmp.eq.s32.totalorder %s77, 0
      %p218 = por %p216, %p217
      %p219 = scmp.ne.s32.totalorder %s207, %s208
      %p220 = scmp.eq.s32.totalorder %s78, 1
      %p221 = por %p219, %p220
      %p223 = scmp.ne.s32.totalorder %s208, %s222
      %p224 = scmp.eq.s32.totalorder %s78, 0
      %p225 = por %p223, %p224
      %s227 = sadd.s32 %s226, 1
      %p230 = scmp.eq.s32.totalorder %s72, 1
      %p231 = scmp.ne.s32.totalorder %s226, %s228
      %p232 = scmp.eq.s32.totalorder %s72, 0
      %p233 = por %p231, %p232
      %p234 = scmp.ne.s32.totalorder %s226, %s228
      %p235 = scmp.eq.s32.totalorder %s77, 1
      %p236 = por %p234, %p235
      %p237 = scmp.ne.s32.totalorder %s228, %s229
      %p238 = scmp.eq.s32.totalorder %s77, 0
      %p239 = por %p237, %p238
      %p240 = scmp.ne.s32.totalorder %s228, %s229
      %p241 = scmp.eq.s32.totalorder %s78, 1
      %p242 = por %p240, %p241
      %p244 = scmp.ne.s32.totalorder %s229, %s243
      %p245 = scmp.eq.s32.totalorder %s78, 0
      %p246 = por %p244, %p245
      %s248 = sadd.s32 %s247, 1
      %p251 = scmp.eq.s32.totalorder %s72, 1
      %p252 = scmp.ne.s32.totalorder %s247, %s249
      %p253 = scmp.eq.s32.totalorder %s72, 0
      %p254 = por %p252, %p253
      %p255 = scmp.ne.s32.totalorder %s247, %s249
      %p256 = scmp.eq.s32.totalorder %s77, 1
      %p257 = por %p255, %p256
      %p258 = scmp.ne.s32.totalorder %s249, %s250
      %p259 = scmp.eq.s32.totalorder %s77, 0
      %p260 = por %p258, %p259
      %p261 = scmp.ne.s32.totalorder %s249, %s250
      %p262 = scmp.eq.s32.totalorder %s78, 1
      %p263 = por %p261, %p262
      %p265 = scmp.ne.s32.totalorder %s250, %s264
      %p266 = scmp.eq.s32.totalorder %s78, 0
      %p267 = por %p265, %p266
      %s269 = sadd.s32 %s268, 1
      %p272 = scmp.eq.s32.totalorder %s72, 1
      %p273 = scmp.ne.s32.totalorder %s268, %s270
      %p274 = scmp.eq.s32.totalorder %s72, 0
      %p275 = por %p273, %p274
      %p276 = scmp.ne.s32.totalorder %s268, %s270
      %p277 = scmp.eq.s32.totalorder %s77, 1
      %p278 = por %p276, %p277
      %p279 = scmp.ne.s32.totalorder %s270, %s271
      %p280 = scmp.eq.s32.totalorder %s77, 0
      %p281 = por %p279, %p280
      %p282 = scmp.ne.s32.totalorder %s270, %s271
      %p283 = scmp.eq.s32.totalorder %s78, 1
      %p284 = por %p282, %p283
      %p286 = scmp.ne.s32.totalorder %s271, %s285
      %p287 = scmp.eq.s32.totalorder %s78, 0
      %p288 = por %p286, %p287
      %s290 = sadd.s32 %s289, 1
      %p293 = scmp.eq.s32.totalorder %s72, 1
      %p294 = scmp.ne.s32.totalorder %s289, %s291
      %p295 = scmp.eq.s32.totalorder %s72, 0
      %p296 = por %p294, %p295
      %p297 = scmp.ne.s32.totalorder %s289, %s291
      %p298 = scmp.eq.s32.totalorder %s77, 1
      %p299 = por %p297, %p298
      %p300 = scmp.ne.s32.totalorder %s291, %s292
      %p301 = scmp.eq.s32.totalorder %s77, 0
      %p302 = por %p300, %p301
      %p303 = scmp.ne.s32.totalorder %s291, %s292
      %p304 = scmp.eq.s32.totalorder %s78, 1
      %p305 = por %p303, %p304
      %p307 = scmp.ne.s32.totalorder %s292, %s306
      %p308 = scmp.eq.s32.totalorder %s78, 0
      %p309 = por %p307, %p308
      %s311 = sadd.s32 %s310, 1
      %p314 = scmp.eq.s32.totalorder %s72, 1
      %p315 = scmp.ne.s32.totalorder %s310, %s312
      %p316 = scmp.eq.s32.totalorder %s72, 0
      %p317 = por %p315, %p316
      %p318 = scmp.ne.s32.totalorder %s310, %s312
      %p319 = scmp.eq.s32.totalorder %s77, 1
      %p320 = por %p318, %p319
      %p321 = scmp.ne.s32.totalorder %s312, %s313
      %p322 = scmp.eq.s32.totalorder %s77, 0
      %p323 = por %p321, %p322
      %p324 = scmp.ne.s32.totalorder %s312, %s313
      %p325 = scmp.eq.s32.totalorder %s78, 1
      %p326 = por %p324, %p325
      %p328 = scmp.ne.s32.totalorder %s313, %s327
      %p329 = scmp.eq.s32.totalorder %s78, 0
      %p330 = por %p328, %p329
      %s332 = sadd.s32 %s331, 1
      %p335 = scmp.eq.s32.totalorder %s72, 1
      %p336 = scmp.ne.s32.totalorder %s331, %s333
      %p337 = scmp.eq.s32.totalorder %s72, 0
      %p338 = por %p336, %p337
      %p339 = scmp.ne.s32.totalorder %s331, %s333
      %p340 = scmp.eq.s32.totalorder %s77, 1
      %p341 = por %p339, %p340
      %p342 = scmp.ne.s32.totalorder %s333, %s334
      %p343 = scmp.eq.s32.totalorder %s77, 0
      %p344 = por %p342, %p343
      %p345 = scmp.ne.s32.totalorder %s333, %s334
      %p346 = scmp.eq.s32.totalorder %s78, 1
      %p347 = por %p345, %p346
      %p349 = scmp.ne.s32.totalorder %s334, %s348
      %p350 = scmp.eq.s32.totalorder %s78, 0
      %p351 = por %p349, %p350
      %s353 = sadd.s32 %s352, 1
      %p356 = scmp.eq.s32.totalorder %s72, 1
      %p357 = scmp.ne.s32.totalorder %s352, %s354
      %p358 = scmp.eq.s32.totalorder %s72, 0
      %p359 = por %p357, %p358
      %p360 = scmp.ne.s32.totalorder %s352, %s354
      %p361 = scmp.eq.s32.totalorder %s77, 1
      %p362 = por %p360, %p361
      %p363 = scmp.ne.s32.totalorder %s354, %s355
      %p364 = scmp.eq.s32.totalorder %s77, 0
      %p365 = por %p363, %p364
      %p366 = scmp.ne.s32.totalorder %s354, %s355
      %p367 = scmp.eq.s32.totalorder %s78, 1
      %p368 = por %p366, %p367
      %p370 = scmp.ne.s32.totalorder %s355, %s369
      %p371 = scmp.eq.s32.totalorder %s78, 0
      %p372 = por %p370, %p371
      %s374 = sadd.s32 %s373, 1
      %p377 = scmp.eq.s32.totalorder %s72, 1
      %p378 = scmp.ne.s32.totalorder %s373, %s375
      %p379 = scmp.eq.s32.totalorder %s72, 0
      %p380 = por %p378, %p379
      %p381 = scmp.ne.s32.totalorder %s373, %s375
      %p382 = scmp.eq.s32.totalorder %s77, 1
      %p383 = por %p381, %p382
      %p384 = scmp.ne.s32.totalorder %s375, %s376
      %p385 = scmp.eq.s32.totalorder %s77, 0
      %p386 = por %p384, %p385
      %p387 = scmp.ne.s32.totalorder %s375, %s376
      %p388 = scmp.eq.s32.totalorder %s78, 1
      %p389 = por %p387, %p388
      %p391 = scmp.ne.s32.totalorder %s376, %s390
      %p392 = scmp.eq.s32.totalorder %s78, 0
      %p393 = por %p391, %p392
      %s395 = sadd.s32 %s394, 1
      %p398 = scmp.eq.s32.totalorder %s72, 1
      %p399 = scmp.ne.s32.totalorder %s394, %s396
      %p400 = scmp.eq.s32.totalorder %s72, 0
      %p401 = por %p399, %p400
      %p402 = scmp.ne.s32.totalorder %s394, %s396
      %p403 = scmp.eq.s32.totalorder %s77, 1
      %p404 = por %p402, %p403
      %p405 = scmp.ne.s32.totalorder %s396, %s397
      %p406 = scmp.eq.s32.totalorder %s77, 0
      %p407 = por %p405, %p406
      %p408 = scmp.ne.s32.totalorder %s396, %s397
      %p409 = scmp.eq.s32.totalorder %s78, 1
      %p410 = por %p408, %p409
      %p412 = scmp.ne.s32.totalorder %s397, %s411
      %p413 = scmp.eq.s32.totalorder %s78, 0
      %p414 = por %p412, %p413
      %s416 = sadd.s32 %s415, 1
      %p419 = scmp.eq.s32.totalorder %s72, 1
      %p420 = scmp.ne.s32.totalorder %s415, %s417
      %p421 = scmp.eq.s32.totalorder %s72, 0
      %p422 = por %p420, %p421
      %p423 = scmp.ne.s32.totalorder %s415, %s417
      %p424 = scmp.eq.s32.totalorder %s77, 1
      %p425 = por %p423, %p424
      %p426 = scmp.ne.s32.totalorder %s417, %s418
      %p427 = scmp.eq.s32.totalorder %s77, 0
      %p428 = por %p426, %p427
      %p429 = scmp.ne.s32.totalorder %s417, %s418
      %p430 = scmp.eq.s32.totalorder %s78, 1
      %p431 = por %p429, %p430
      %p433 = scmp.ne.s32.totalorder %s418, %s432
      %p434 = scmp.eq.s32.totalorder %s78, 0
      %p435 = por %p433, %p434
      %s437 = sadd.s32 %s436, 1
      %p440 = scmp.eq.s32.totalorder %s72, 1
      %p441 = scmp.ne.s32.totalorder %s436, %s438
      %p442 = scmp.eq.s32.totalorder %s72, 0
      %p443 = por %p441, %p442
      %p444 = scmp.ne.s32.totalorder %s436, %s438
      %p445 = scmp.eq.s32.totalorder %s77, 1
      %p446 = por %p444, %p445
      %p447 = scmp.ne.s32.totalorder %s438, %s439
      %p448 = scmp.eq.s32.totalorder %s77, 0
      %p449 = por %p447, %p448
      %p450 = scmp.ne.s32.totalorder %s438, %s439
      %p451 = scmp.eq.s32.totalorder %s78, 1
      %p452 = por %p450, %p451
      %p454 = scmp.ne.s32.totalorder %s439, %s453
      %p455 = scmp.eq.s32.totalorder %s78, 0
      %p456 = por %p454, %p455
      %s458 = sadd.s32 %s457, 1
      %p461 = scmp.eq.s32.totalorder %s72, 1
      %p462 = scmp.ne.s32.totalorder %s457, %s459
      %p463 = scmp.eq.s32.totalorder %s72, 0
      %p464 = por %p462, %p463
      %p465 = scmp.ne.s32.totalorder %s457, %s459
      %p466 = scmp.eq.s32.totalorder %s77, 1
      %p467 = por %p465, %p466
      %p468 = scmp.ne.s32.totalorder %s459, %s460
      %p469 = scmp.eq.s32.totalorder %s77, 0
      %p470 = por %p468, %p469
      %p471 = scmp.ne.s32.totalorder %s459, %s460
      %p472 = scmp.eq.s32.totalorder %s78, 1
      %p473 = por %p471, %p472
      %p475 = scmp.ne.s32.totalorder %s460, %s474
      %p476 = scmp.eq.s32.totalorder %s78, 0
      %p477 = por %p475, %p476
      %s479 = sadd.s32 %s478, 1
      %p482 = scmp.eq.s32.totalorder %s72, 1
      %p483 = scmp.ne.s32.totalorder %s478, %s480
      %p484 = scmp.eq.s32.totalorder %s72, 0
      %p485 = por %p483, %p484
      %p486 = scmp.ne.s32.totalorder %s478, %s480
      %p487 = scmp.eq.s32.totalorder %s77, 1
      %p488 = por %p486, %p487
      %p489 = scmp.ne.s32.totalorder %s480, %s481
      %p490 = scmp.eq.s32.totalorder %s77, 0
      %p491 = por %p489, %p490
      %p492 = scmp.ne.s32.totalorder %s480, %s481
      %p493 = scmp.eq.s32.totalorder %s78, 1
      %p494 = por %p492, %p493
      %p496 = scmp.ne.s32.totalorder %s481, %s495
      %p497 = scmp.eq.s32.totalorder %s78, 0
      %p498 = por %p496, %p497
      %s500 = sadd.s32 %s499, 1
      %p503 = scmp.eq.s32.totalorder %s72, 1
      %p504 = scmp.ne.s32.totalorder %s499, %s501
      %p505 = scmp.eq.s32.totalorder %s72, 0
      %p506 = por %p504, %p505
      %p507 = scmp.ne.s32.totalorder %s499, %s501
      %p508 = scmp.eq.s32.totalorder %s77, 1
      %p509 = por %p507, %p508
      %p510 = scmp.ne.s32.totalorder %s501, %s502
      %p511 = scmp.eq.s32.totalorder %s77, 0
      %p512 = por %p510, %p511
      %p513 = scmp.ne.s32.totalorder %s501, %s502
      %p514 = scmp.eq.s32.totalorder %s78, 1
      %p515 = por %p513, %p514
      %p517 = scmp.ne.s32.totalorder %s502, %s516
      %p518 = scmp.eq.s32.totalorder %s78, 0
      %p519 = por %p517, %p518
      %s521 = sadd.s32 %s520, 1
      %p524 = scmp.eq.s32.totalorder %s72, 1
      %p525 = scmp.ne.s32.totalorder %s520, %s522
      %p526 = scmp.eq.s32.totalorder %s72, 0
      %p527 = por %p525, %p526
      %p528 = scmp.ne.s32.totalorder %s520, %s522
      %p529 = scmp.eq.s32.totalorder %s77, 1
      %p530 = por %p528, %p529
      %p531 = scmp.ne.s32.totalorder %s522, %s523
      %p532 = scmp.eq.s32.totalorder %s77, 0
      %p533 = por %p531, %p532
      %p534 = scmp.ne.s32.totalorder %s522, %s523
      %p535 = scmp.eq.s32.totalorder %s78, 1
      %p536 = por %p534, %p535
      %p538 = scmp.ne.s32.totalorder %s523, %s537
      %p539 = scmp.eq.s32.totalorder %s78, 0
      %p540 = por %p538, %p539
      %s542 = sadd.s32 %s541, 1
      %p545 = scmp.eq.s32.totalorder %s72, 1
      %p546 = scmp.ne.s32.totalorder %s541, %s543
      %p547 = scmp.eq.s32.totalorder %s72, 0
      %p548 = por %p546, %p547
      %p549 = scmp.ne.s32.totalorder %s541, %s543
      %p550 = scmp.eq.s32.totalorder %s77, 1
      %p551 = por %p549, %p550
      %p552 = scmp.ne.s32.totalorder %s543, %s544
      %p553 = scmp.eq.s32.totalorder %s77, 0
      %p554 = por %p552, %p553
      %p555 = scmp.ne.s32.totalorder %s543, %s544
      %p556 = scmp.eq.s32.totalorder %s78, 1
      %p557 = por %p555, %p556
      %p559 = scmp.ne.s32.totalorder %s544, %s558
      %p560 = scmp.eq.s32.totalorder %s78, 0
      %p561 = por %p559, %p560
      %s563 = sadd.s32 %s562, 1
      %p566 = scmp.eq.s32.totalorder %s72, 1
      %p567 = scmp.ne.s32.totalorder %s562, %s564
      %p568 = scmp.eq.s32.totalorder %s72, 0
      %p569 = por %p567, %p568
      %p570 = scmp.ne.s32.totalorder %s562, %s564
      %p571 = scmp.eq.s32.totalorder %s77, 1
      %p572 = por %p570, %p571
      %p573 = scmp.ne.s32.totalorder %s564, %s565
      %p574 = scmp.eq.s32.totalorder %s77, 0
      %p575 = por %p573, %p574
      %p576 = scmp.ne.s32.totalorder %s564, %s565
      %p577 = scmp.eq.s32.totalorder %s78, 1
      %p578 = por %p576, %p577
      %p580 = scmp.ne.s32.totalorder %s565, %s579
      %p581 = scmp.eq.s32.totalorder %s78, 0
      %p582 = por %p580, %p581
      %s584 = sadd.s32 %s583, 1
      %p587 = scmp.eq.s32.totalorder %s72, 1
      %p588 = scmp.ne.s32.totalorder %s583, %s585
      %p589 = scmp.eq.s32.totalorder %s72, 0
      %p590 = por %p588, %p589
      %p591 = scmp.ne.s32.totalorder %s583, %s585
      %p592 = scmp.eq.s32.totalorder %s77, 1
      %p593 = por %p591, %p592
      %p594 = scmp.ne.s32.totalorder %s585, %s586
      %p595 = scmp.eq.s32.totalorder %s77, 0
      %p596 = por %p594, %p595
      %p597 = scmp.ne.s32.totalorder %s585, %s586
      %p598 = scmp.eq.s32.totalorder %s78, 1
      %p599 = por %p597, %p598
      %p601 = scmp.ne.s32.totalorder %s586, %s600
      %p602 = scmp.eq.s32.totalorder %s78, 0
      %p603 = por %p601, %p602
      %s605 = sadd.s32 %s604, 1
      %p608 = scmp.eq.s32.totalorder %s72, 1
      %p609 = scmp.ne.s32.totalorder %s604, %s606
      %p610 = scmp.eq.s32.totalorder %s72, 0
      %p611 = por %p609, %p610
      %p612 = scmp.ne.s32.totalorder %s604, %s606
      %p613 = scmp.eq.s32.totalorder %s77, 1
      %p614 = por %p612, %p613
      %p615 = scmp.ne.s32.totalorder %s606, %s607
      %p616 = scmp.eq.s32.totalorder %s77, 0
      %p617 = por %p615, %p616
      %p618 = scmp.ne.s32.totalorder %s606, %s607
      %p619 = scmp.eq.s32.totalorder %s78, 1
      %p620 = por %p618, %p619
      %p622 = scmp.ne.s32.totalorder %s607, %s621
      %p623 = scmp.eq.s32.totalorder %s78, 0
      %p624 = por %p622, %p623
      %s626 = sadd.s32 %s625, 1
      %p629 = scmp.eq.s32.totalorder %s72, 1
      %p630 = scmp.ne.s32.totalorder %s625, %s627
      %p631 = scmp.eq.s32.totalorder %s72, 0
      %p632 = por %p630, %p631
      %p633 = scmp.ne.s32.totalorder %s625, %s627
      %p634 = scmp.eq.s32.totalorder %s77, 1
      %p635 = por %p633, %p634
      %p636 = scmp.ne.s32.totalorder %s627, %s628
      %p637 = scmp.eq.s32.totalorder %s77, 0
      %p638 = por %p636, %p637
      %p639 = scmp.ne.s32.totalorder %s627, %s628
      %p640 = scmp.eq.s32.totalorder %s78, 1
      %p641 = por %p639, %p640
      %p643 = scmp.ne.s32.totalorder %s628, %s642
      %p644 = scmp.eq.s32.totalorder %s78, 0
      %p645 = por %p643, %p644
      %s647 = sadd.s32 %s646, 1
      %p650 = scmp.eq.s32.totalorder %s72, 1
      %p651 = scmp.ne.s32.totalorder %s646, %s648
      %p652 = scmp.eq.s32.totalorder %s72, 0
      %p653 = por %p651, %p652
      %p654 = scmp.ne.s32.totalorder %s646, %s648
      %p655 = scmp.eq.s32.totalorder %s77, 1
      %p656 = por %p654, %p655
      %p657 = scmp.ne.s32.totalorder %s648, %s649
      %p658 = scmp.eq.s32.totalorder %s77, 0
      %p659 = por %p657, %p658
      %p660 = scmp.ne.s32.totalorder %s648, %s649
      %p661 = scmp.eq.s32.totalorder %s78, 1
      %p662 = por %p660, %p661
      %p664 = scmp.ne.s32.totalorder %s649, %s663
      %p665 = scmp.eq.s32.totalorder %s78, 0
      %p666 = por %p664, %p665
      %s668 = sadd.s32 %s667, 1
      %p671 = scmp.eq.s32.totalorder %s72, 1
      %p672 = scmp.ne.s32.totalorder %s667, %s669
      %p673 = scmp.eq.s32.totalorder %s72, 0
      %p674 = por %p672, %p673
      %p675 = scmp.ne.s32.totalorder %s667, %s669
      %p676 = scmp.eq.s32.totalorder %s77, 1
      %p677 = por %p675, %p676
      %p678 = scmp.ne.s32.totalorder %s669, %s670
      %p679 = scmp.eq.s32.totalorder %s77, 0
      %p680 = por %p678, %p679
      %p681 = scmp.ne.s32.totalorder %s669, %s670
      %p682 = scmp.eq.s32.totalorder %s78, 1
      %p683 = por %p681, %p682
      %p685 = scmp.ne.s32.totalorder %s670, %s684
      %p686 = scmp.eq.s32.totalorder %s78, 0
      %p687 = por %p685, %p686
      %s689 = sadd.s32 %s688, 1
      %p692 = scmp.eq.s32.totalorder %s72, 1
      %p693 = scmp.ne.s32.totalorder %s688, %s690
      %p694 = scmp.eq.s32.totalorder %s72, 0
      %p695 = por %p693, %p694
      %p696 = scmp.ne.s32.totalorder %s688, %s690
      %p697 = scmp.eq.s32.totalorder %s77, 1
      %p698 = por %p696, %p697
      %p699 = scmp.ne.s32.totalorder %s690, %s691
      %p700 = scmp.eq.s32.totalorder %s77, 0
      %p701 = por %p699, %p700
      %p702 = scmp.ne.s32.totalorder %s690, %s691
      %p703 = scmp.eq.s32.totalorder %s78, 1
      %p704 = por %p702, %p703
      %p706 = scmp.ne.s32.totalorder %s691, %s705
      %p707 = scmp.eq.s32.totalorder %s78, 0
      %p708 = por %p706, %p707
      %s710 = sadd.s32 %s709, 1
      %p713 = scmp.eq.s32.totalorder %s72, 1
      %p714 = scmp.ne.s32.totalorder %s709, %s711
      %p715 = scmp.eq.s32.totalorder %s72, 0
      %p716 = por %p714, %p715
      %p717 = scmp.ne.s32.totalorder %s709, %s711
      %p718 = scmp.eq.s32.totalorder %s77, 1
      %p719 = por %p717, %p718
      %p720 = scmp.ne.s32.totalorder %s711, %s712
      %p721 = scmp.eq.s32.totalorder %s77, 0
      %p722 = por %p720, %p721
      %p723 = scmp.ne.s32.totalorder %s711, %s712
      %p724 = scmp.eq.s32.totalorder %s78, 1
      %p725 = por %p723, %p724
      %p727 = scmp.ne.s32.totalorder %s712, %s726
      %p728 = scmp.eq.s32.totalorder %s78, 0
      %p729 = por %p727, %p728
      %s731 = sadd.s32 %s730, 1
      %p734 = scmp.eq.s32.totalorder %s72, 1
      %p735 = scmp.ne.s32.totalorder %s730, %s732
      %p736 = scmp.eq.s32.totalorder %s72, 0
      %p737 = por %p735, %p736
      %p738 = scmp.ne.s32.totalorder %s730, %s732
      %p739 = scmp.eq.s32.totalorder %s77, 1
      %p740 = por %p738, %p739
      %p741 = scmp.ne.s32.totalorder %s732, %s733
      %p742 = scmp.eq.s32.totalorder %s77, 0
      %p743 = por %p741, %p742
      %p744 = scmp.ne.s32.totalorder %s732, %s733
      %p745 = scmp.eq.s32.totalorder %s78, 1
      %p746 = por %p744, %p745
      %p748 = scmp.ne.s32.totalorder %s733, %s747
      %p749 = scmp.eq.s32.totalorder %s78, 0
      %p750 = por %p748, %p749
      %s751 = ssub.s32 %s72, %s79
      %p752 = scmp.eq.s32.totalorder %s751, 0
      %s754 = sadd.s32 %s753, 1
      %s755 = scalar_select %p752, %s753, %s754
      %p758 = pneg %p752
      %p759 = scmp.eq.s32.totalorder %s72, 1
      %p760 = por %p758, %p759
      %p761 = scmp.ne.s32.totalorder %s753, %s756
      %p762 = scmp.eq.s32.totalorder %s72, 0
      %p763 = por %p761, %p762
      %p764 = scmp.ne.s32.totalorder %s753, %s756
      %p765 = scmp.eq.s32.totalorder %s77, 1
      %p766 = por %p764, %p765
      %p767 = scmp.ne.s32.totalorder %s756, %s757
      %p768 = scmp.eq.s32.totalorder %s77, 0
      %p769 = por %p767, %p768
      %p770 = scmp.ne.s32.totalorder %s756, %s757
      %p771 = scmp.eq.s32.totalorder %s78, 1
      %p772 = por %p770, %p771
      %p774 = scmp.ne.s32.totalorder %s757, %s773
      %p775 = scmp.eq.s32.totalorder %s78, 0
      %p776 = por %p774, %p775
      %p777 = scmp.le.s32.totalorder 1, %s72
      %p778 = scmp.lt.s32.totalorder %s72, 3
      %p779 = pnand %p777, %p778
      %p780 = pneg %p779
      // Predicated region
      $region9: #{tpu_custom_call.1} parent=5 // pred_check
        _
      $region10: #{tpu_custom_call.1} parent=5 // pred_check_branch
        %782 = sbr.rel (%p779) target = $region12
      $region11: #{tpu_custom_call.1} parent=5 // pred_region
        %s783 = ssub.s32 %s72, 1
        // Predicated region
        $region13: #{tpu_custom_call.1} parent=11 // pred_check
          %p784 = pneg %p197
        $region14: #{tpu_custom_call.1} parent=11 // pred_check_branch
          %786 = sbr.rel (%p784) target = $region16
        $region15: #{tpu_custom_call.1} parent=11 // pred_region
          _
        $region16: #{tpu_custom_call.1} parent=11 // pred_fallthru
          _
        // Predicated region
        $region17: #{tpu_custom_call.1} parent=11 // pred_check
          %p787 = pneg %p218
        $region18: #{tpu_custom_call.1} parent=11 // pred_check_branch
          %789 = sbr.rel (%p787) target = $region20
        $region19: #{tpu_custom_call.1} parent=11 // pred_region
          _
        $region20: #{tpu_custom_call.1} parent=11 // pred_fallthru
          _
        // Predicated region
        $region21: #{tpu_custom_call.1} parent=11 // pred_check
          %p790 = pneg %p239
        $region22: #{tpu_custom_call.1} parent=11 // pred_check_branch
          %792 = sbr.rel (%p790) target = $region24
        $region23: #{tpu_custom_call.1} parent=11 // pred_region
          _
        $region24: #{tpu_custom_call.1} parent=11 // pred_fallthru
          _
        // Predicated region
        $region25: #{tpu_custom_call.1} parent=11 // pred_check
          %p793 = pneg %p260
        $region26: #{tpu_custom_call.1} parent=11 // pred_check_branch
          %795 = sbr.rel (%p793) target = $region28
        $region27: #{tpu_custom_call.1} parent=11 // pred_region
          _
        $region28: #{tpu_custom_call.1} parent=11 // pred_fallthru
          _
        // Predicated region
        $region29: #{tpu_custom_call.1} parent=11 // pred_check
          %p796 = pneg %p281
        $region30: #{tpu_custom_call.1} parent=11 // pred_check_branch
          %798 = sbr.rel (%p796) target = $region32
        $region31: #{tpu_custom_call.1} parent=11 // pred_region
          _
        $region32: #{tpu_custom_call.1} parent=11 // pred_fallthru
          _
        // Predicated region
        $region33: #{tpu_custom_call.1} parent=11 // pred_check
          %p799 = pneg %p302
        $region34: #{tpu_custom_call.1} parent=11 // pred_check_branch
          %801 = sbr.rel (%p799) target = $region36
        $region35: #{tpu_custom_call.1} parent=11 // pred_region
          _
        $region36: #{tpu_custom_call.1} parent=11 // pred_fallthru
          _
        // Predicated region
        $region37: #{tpu_custom_call.1} parent=11 // pred_check
          %p802 = pneg %p323
        $region38: #{tpu_custom_call.1} parent=11 // pred_check_branch
          %804 = sbr.rel (%p802) target = $region40
        $region39: #{tpu_custom_call.1} parent=11 // pred_region
          _
        $region40: #{tpu_custom_call.1} parent=11 // pred_fallthru
          _
        // Predicated region
        $region41: #{tpu_custom_call.1} parent=11 // pred_check
          %p805 = pneg %p344
        $region42: #{tpu_custom_call.1} parent=11 // pred_check_branch
          %807 = sbr.rel (%p805) target = $region44
        $region43: #{tpu_custom_call.1} parent=11 // pred_region
          _
        $region44: #{tpu_custom_call.1} parent=11 // pred_fallthru
          _
        // Predicated region
        $region45: #{tpu_custom_call.1} parent=11 // pred_check
          %p808 = pneg %p365
        $region46: #{tpu_custom_call.1} parent=11 // pred_check_branch
          %810 = sbr.rel (%p808) target = $region48
        $region47: #{tpu_custom_call.1} parent=11 // pred_region
          _
        $region48: #{tpu_custom_call.1} parent=11 // pred_fallthru
          _
        // Predicated region
        $region49: #{tpu_custom_call.1} parent=11 // pred_check
          %p811 = pneg %p386
        $region50: #{tpu_custom_call.1} parent=11 // pred_check_branch
          %813 = sbr.rel (%p811) target = $region52
        $region51: #{tpu_custom_call.1} parent=11 // pred_region
          _
        $region52: #{tpu_custom_call.1} parent=11 // pred_fallthru
          _
        // Predicated region
        $region53: #{tpu_custom_call.1} parent=11 // pred_check
          %p814 = pneg %p407
        $region54: #{tpu_custom_call.1} parent=11 // pred_check_branch
          %816 = sbr.rel (%p814) target = $region56
        $region55: #{tpu_custom_call.1} parent=11 // pred_region
          _
        $region56: #{tpu_custom_call.1} parent=11 // pred_fallthru
          _
        // Predicated region
        $region57: #{tpu_custom_call.1} parent=11 // pred_check
          %p817 = pneg %p428
        $region58: #{tpu_custom_call.1} parent=11 // pred_check_branch
          %819 = sbr.rel (%p817) target = $region60
        $region59: #{tpu_custom_call.1} parent=11 // pred_region
          _
        $region60: #{tpu_custom_call.1} parent=11 // pred_fallthru
          _
        // Predicated region
        $region61: #{tpu_custom_call.1} parent=11 // pred_check
          %p820 = pneg %p449
        $region62: #{tpu_custom_call.1} parent=11 // pred_check_branch
          %822 = sbr.rel (%p820) target = $region64
        $region63: #{tpu_custom_call.1} parent=11 // pred_region
          _
        $region64: #{tpu_custom_call.1} parent=11 // pred_fallthru
          _
        // Predicated region
        $region65: #{tpu_custom_call.1} parent=11 // pred_check
          %p823 = pneg %p470
        $region66: #{tpu_custom_call.1} parent=11 // pred_check_branch
          %825 = sbr.rel (%p823) target = $region68
        $region67: #{tpu_custom_call.1} parent=11 // pred_region
          _
        $region68: #{tpu_custom_call.1} parent=11 // pred_fallthru
          _
        // Predicated region
        $region69: #{tpu_custom_call.1} parent=11 // pred_check
          %p826 = pneg %p491
        $region70: #{tpu_custom_call.1} parent=11 // pred_check_branch
          %828 = sbr.rel (%p826) target = $region72
        $region71: #{tpu_custom_call.1} parent=11 // pred_region
          _
        $region72: #{tpu_custom_call.1} parent=11 // pred_fallthru
          _
        // Predicated region
        $region73: #{tpu_custom_call.1} parent=11 // pred_check
          %p829 = pneg %p512
        $region74: #{tpu_custom_call.1} parent=11 // pred_check_branch
          %831 = sbr.rel (%p829) target = $region76
        $region75: #{tpu_custom_call.1} parent=11 // pred_region
          _
        $region76: #{tpu_custom_call.1} parent=11 // pred_fallthru
          _
        // Predicated region
        $region77: #{tpu_custom_call.1} parent=11 // pred_check
          %p832 = pneg %p533
        $region78: #{tpu_custom_call.1} parent=11 // pred_check_branch
          %834 = sbr.rel (%p832) target = $region80
        $region79: #{tpu_custom_call.1} parent=11 // pred_region
          _
        $region80: #{tpu_custom_call.1} parent=11 // pred_fallthru
          _
        // Predicated region
        $region81: #{tpu_custom_call.1} parent=11 // pred_check
          %p835 = pneg %p554
        $region82: #{tpu_custom_call.1} parent=11 // pred_check_branch
          %837 = sbr.rel (%p835) target = $region84
        $region83: #{tpu_custom_call.1} parent=11 // pred_region
          _
        $region84: #{tpu_custom_call.1} parent=11 // pred_fallthru
          _
        // Predicated region
        $region85: #{tpu_custom_call.1} parent=11 // pred_check
          %p838 = pneg %p575
        $region86: #{tpu_custom_call.1} parent=11 // pred_check_branch
          %840 = sbr.rel (%p838) target = $region88
        $region87: #{tpu_custom_call.1} parent=11 // pred_region
          _
        $region88: #{tpu_custom_call.1} parent=11 // pred_fallthru
          _
        // Predicated region
        $region89: #{tpu_custom_call.1} parent=11 // pred_check
          %p841 = pneg %p596
        $region90: #{tpu_custom_call.1} parent=11 // pred_check_branch
          %843 = sbr.rel (%p841) target = $region92
        $region91: #{tpu_custom_call.1} parent=11 // pred_region
          _
        $region92: #{tpu_custom_call.1} parent=11 // pred_fallthru
          _
        // Predicated region
        $region93: #{tpu_custom_call.1} parent=11 // pred_check
          %p844 = pneg %p617
        $region94: #{tpu_custom_call.1} parent=11 // pred_check_branch
          %846 = sbr.rel (%p844) target = $region96
        $region95: #{tpu_custom_call.1} parent=11 // pred_region
          _
        $region96: #{tpu_custom_call.1} parent=11 // pred_fallthru
          _
        // Predicated region
        $region97: #{tpu_custom_call.1} parent=11 // pred_check
          %p847 = pneg %p638
        $region98: #{tpu_custom_call.1} parent=11 // pred_check_branch
          %849 = sbr.rel (%p847) target = $region100
        $region99: #{tpu_custom_call.1} parent=11 // pred_region
          _
        $region100: #{tpu_custom_call.1} parent=11 // pred_fallthru
          _
        // Predicated region
        $region101: #{tpu_custom_call.1} parent=11 // pred_check
          %p850 = pneg %p659
        $region102: #{tpu_custom_call.1} parent=11 // pred_check_branch
          %852 = sbr.rel (%p850) target = $region104
        $region103: #{tpu_custom_call.1} parent=11 // pred_region
          _
        $region104: #{tpu_custom_call.1} parent=11 // pred_fallthru
          _
        // Predicated region
        $region105: #{tpu_custom_call.1} parent=11 // pred_check
          %p853 = pneg %p680
        $region106: #{tpu_custom_call.1} parent=11 // pred_check_branch
          %855 = sbr.rel (%p853) target = $region108
        $region107: #{tpu_custom_call.1} parent=11 // pred_region
          _
        $region108: #{tpu_custom_call.1} parent=11 // pred_fallthru
          _
        // Predicated region
        $region109: #{tpu_custom_call.1} parent=11 // pred_check
          %p856 = pneg %p701
        $region110: #{tpu_custom_call.1} parent=11 // pred_check_branch
          %858 = sbr.rel (%p856) target = $region112
        $region111: #{tpu_custom_call.1} parent=11 // pred_region
          _
        $region112: #{tpu_custom_call.1} parent=11 // pred_fallthru
          _
        // Predicated region
        $region113: #{tpu_custom_call.1} parent=11 // pred_check
          %p859 = pneg %p722
        $region114: #{tpu_custom_call.1} parent=11 // pred_check_branch
          %861 = sbr.rel (%p859) target = $region116
        $region115: #{tpu_custom_call.1} parent=11 // pred_region
          _
        $region116: #{tpu_custom_call.1} parent=11 // pred_fallthru
          _
        // Predicated region
        $region117: #{tpu_custom_call.1} parent=11 // pred_check
          %p862 = pneg %p743
        $region118: #{tpu_custom_call.1} parent=11 // pred_check_branch
          %864 = sbr.rel (%p862) target = $region120
        $region119: #{tpu_custom_call.1} parent=11 // pred_region
          _
        $region120: #{tpu_custom_call.1} parent=11 // pred_fallthru
          _
      $region12: #{tpu_custom_call.1} parent=5 // pred_fallthru
        _
      %p865 = scmp.lt.s32.totalorder %s72, 2
      // Predicated region
      $region121: #{tpu_custom_call.1} parent=5 // pred_check
        %p866 = pneg %p865
      $region122: #{tpu_custom_call.1} parent=5 // pred_check_branch
        %868 = sbr.rel (%p866) target = $region124
      $region123: #{tpu_custom_call.1} parent=5 // pred_region
        // Predicated region
        $region125: #{tpu_custom_call.1} parent=123 // pred_check
          %p869 = pneg %p92
        $region126: #{tpu_custom_call.1} parent=123 // pred_check_branch
          %871 = sbr.rel (%p869) target = $region128
        $region127: #{tpu_custom_call.1} parent=123 // pred_region
          %s872 = smul.u32 16, %s72
          %p873 = scmp.lt.s32.totalorder %s872, 31
          %s874 = scalar_select %p873, %s872, 31
          %s875 = smul.addr %s874, 8
          %s876 = scalar_lea.vmem %s1, %s875
          %s877 = smul.u32 16, %s72
        $region128: #{tpu_custom_call.1} parent=123 // pred_fallthru
          _
        // Predicated region
        $region129: #{tpu_custom_call.1} parent=123 // pred_check
          %p878 = pneg %p118
        $region130: #{tpu_custom_call.1} parent=123 // pred_check_branch
          %880 = sbr.rel (%p878) target = $region132
        $region131: #{tpu_custom_call.1} parent=123 // pred_region
          %s881 = smul.u32 16, %s72
          %p882 = scmp.lt.s32.totalorder %s881, 31
          %s883 = scalar_select %p882, %s881, 31
          %s884 = smul.addr %s883, 8
          %s885 = scalar_lea.vmem %s3, %s884
          %s886 = smul.u32 16, %s72
        $region132: #{tpu_custom_call.1} parent=123 // pred_fallthru
          _
        // Predicated region
        $region133: #{tpu_custom_call.1} parent=123 // pred_check
          %p887 = pneg %p144
        $region134: #{tpu_custom_call.1} parent=123 // pred_check_branch
          %889 = sbr.rel (%p887) target = $region136
        $region135: #{tpu_custom_call.1} parent=123 // pred_region
          %s890 = smul.u32 16, %s72
          %p891 = scmp.lt.s32.totalorder %s890, 31
          %s892 = scalar_select %p891, %s890, 31
          %s893 = smul.addr %s892, 8
          %s894 = scalar_lea.vmem %s5, %s893
          %s895 = smul.u32 16, %s72
        $region136: #{tpu_custom_call.1} parent=123 // pred_fallthru
          _
        // Predicated region
        $region137: #{tpu_custom_call.1} parent=123 // pred_check
          %p896 = pneg %p170
        $region138: #{tpu_custom_call.1} parent=123 // pred_check_branch
          %898 = sbr.rel (%p896) target = $region140
        $region139: #{tpu_custom_call.1} parent=123 // pred_region
          %p899 = scmp.lt.s32.totalorder %s72, 1
          %s900 = scalar_select %p899, %s72, 1
          %s901 = scalar_lea.vmem %s7, %s900
        $region140: #{tpu_custom_call.1} parent=123 // pred_fallthru
          _
      $region124: #{tpu_custom_call.1} parent=5 // pred_fallthru
        _
      %p902 = scmp.le.s32.totalorder 1, %s72
      %p903 = scmp.lt.s32.totalorder %s72, 3
      %p904 = pnand %p902, %p903
      %p905 = pneg %p904
      // Predicated region
      $region141: #{tpu_custom_call.1} parent=5 // pred_check
        _
      $region142: #{tpu_custom_call.1} parent=5 // pred_check_branch
        %907 = sbr.rel (%p904) target = $region144
      $region143: #{tpu_custom_call.1} parent=5 // pred_region
        %s908 = ssub.s32 %s72, 1
        %s909 = smul.u32 16, %s77
        %p910 = scmp.lt.s32.totalorder %s909, 31
        %s911 = scalar_select %p910, %s909, 31
        %s912 = smul.addr %s911, 8
        %s913 = scalar_lea.vmem %s1, %s912
        %p914 = pneg %p98
        %p915 = pneg %p95
        %s916 = smul.u32 16, %s77
        %p917 = scmp.lt.s32.totalorder %s916, 31
        %s918 = scalar_select %p917, %s916, 31
        %s919 = smul.addr %s918, 8
        %s920 = scalar_lea.vmem %s3, %s919
        %p921 = pneg %p124
        %p922 = pneg %p121
        %s923 = smul.u32 16, %s77
        %p924 = scmp.lt.s32.totalorder %s923, 31
        %s925 = scalar_select %p924, %s923, 31
        %s926 = smul.addr %s925, 8
        %s927 = scalar_lea.vmem %s5, %s926
        %p928 = pneg %p150
        %p929 = pneg %p147
        %p930 = scmp.lt.s32.totalorder %s77, 1
        %s931 = scalar_select %p930, %s77, 1
        %s932 = scalar_lea.vmem %s7, %s931
        %p933 = pneg %p176
        %p934 = pneg %p173
        %p935 = pneg %p197
        %p936 = pneg %p194
        %p937 = pneg %p218
        %p938 = pneg %p215
        %p939 = pneg %p239
        %p940 = pneg %p236
        %p941 = pneg %p260
        %p942 = pneg %p257
        %p943 = pneg %p281
        %p944 = pneg %p278
        %p945 = pneg %p302
        %p946 = pneg %p299
        %p947 = pneg %p323
        %p948 = pneg %p320
        %p949 = pneg %p344
        %p950 = pneg %p341
        %p951 = pneg %p365
        %p952 = pneg %p362
        %p953 = pneg %p386
        %p954 = pneg %p383
        %p955 = pneg %p407
        %p956 = pneg %p404
        %p957 = pneg %p428
        %p958 = pneg %p425
        %p959 = pneg %p449
        %p960 = pneg %p446
        %p961 = pneg %p470
        %p962 = pneg %p467
        %p963 = pneg %p491
        %p964 = pneg %p488
        %p965 = pneg %p512
        %p966 = pneg %p509
        %p967 = pneg %p533
        %p968 = pneg %p530
        %p969 = pneg %p554
        %p970 = pneg %p551
        %p971 = pneg %p575
        %p972 = pneg %p572
        %p973 = pneg %p596
        %p974 = pneg %p593
        %p975 = pneg %p617
        %p976 = pneg %p614
        %p977 = pneg %p638
        %p978 = pneg %p635
        %p979 = pneg %p659
        %p980 = pneg %p656
        %p981 = pneg %p680
        %p982 = pneg %p677
        %p983 = pneg %p701
        %p984 = pneg %p698
        %p985 = pneg %p722
        %p986 = pneg %p719
        %p987 = pneg %p743
        %p988 = pneg %p740
        %p989 = pneg %p769
        %p990 = pneg %p766
        %s991 = sand.u32 %s756, 1
        %s992 = scalar_lea.sflag [#allocation3], %s991
        %s993 = sand.u32 %s756, 1
        %s994 = smul.addr %s993, 32
        %s995 = scalar_lea.vmem [#allocation2], %s994
        %s996 = smul.u32 16, %s77
        %p997 = scmp.lt.s32.totalorder %s996, 31
        %s998 = scalar_select %p997, %s996, 31
        %s999 = smul.addr %s998, 8
        %s1000 = scalar_lea.vmem %s1, %s999
        %s1001 = smul.u32 16, %s77
        %s1002 = smul.u32 16, %s77
        %p1003 = scmp.lt.s32.totalorder %s1002, 31
        %s1004 = scalar_select %p1003, %s1002, 31
        %s1005 = smul.addr %s1004, 8
        %s1006 = scalar_lea.vmem %s3, %s1005
        %s1007 = smul.u32 16, %s77
        %s1008 = smul.u32 16, %s77
        %p1009 = scmp.lt.s32.totalorder %s1008, 31
        %s1010 = scalar_select %p1009, %s1008, 31
        %s1011 = smul.addr %s1010, 8
        %s1012 = scalar_lea.vmem %s5, %s1011
        %s1013 = smul.u32 16, %s77
        %p1014 = scmp.lt.s32.totalorder %s77, 1
        %s1015 = scalar_select %p1014, %s77, 1
        %s1016 = scalar_lea.vmem %s7, %s1015
        %v1018 = vld [vmem:[%s1000] sm:$0xff]
        %v1019 = vld [vmem:[%s1000 + $0x8] sm:$0xff]
        %v1020 = vld [vmem:[%s1000 + $0x10] sm:$0xff]
        %v1021 = vld [vmem:[%s1000 + $0x18] sm:$0xff]
        %v1022 = vld [vmem:[%s1000 + $0x20] sm:$0xff]
        %v1023 = vld [vmem:[%s1000 + $0x28] sm:$0xff]
        %v1024 = vld [vmem:[%s1000 + $0x30] sm:$0xff]
        %v1025 = vld [vmem:[%s1000 + $0x38] sm:$0xff]
        %v1026 = vld [vmem:[%s1000 + $0x40] sm:$0xff]
        %v1027 = vld [vmem:[%s1000 + $0x48] sm:$0xff]
        %v1028 = vld [vmem:[%s1000 + $0x50] sm:$0xff]
        %v1029 = vld [vmem:[%s1000 + $0x58] sm:$0xff]
        %v1030 = vld [vmem:[%s1000 + $0x60] sm:$0xff]
        %v1031 = vld [vmem:[%s1000 + $0x68] sm:$0xff]
        %v1032 = vld [vmem:[%s1000 + $0x70] sm:$0xff]
        %v1033 = vld [vmem:[%s1000 + $0x78] sm:$0xff]
        %v1034 = vld [vmem:[%s1006] sm:$0xff]
        %v1035 = vld [vmem:[%s1006 + $0x8] sm:$0xff]
        %v1036 = vld [vmem:[%s1006 + $0x10] sm:$0xff]
        %v1037 = vld [vmem:[%s1006 + $0x18] sm:$0xff]
        %v1038 = vld [vmem:[%s1006 + $0x20] sm:$0xff]
        %v1039 = vld [vmem:[%s1006 + $0x28] sm:$0xff]
        %v1040 = vld [vmem:[%s1006 + $0x30] sm:$0xff]
        %v1041 = vld [vmem:[%s1006 + $0x38] sm:$0xff]
        %v1042 = vld [vmem:[%s1006 + $0x40] sm:$0xff]
        %v1043 = vld [vmem:[%s1006 + $0x48] sm:$0xff]
        %v1044 = vld [vmem:[%s1006 + $0x50] sm:$0xff]
        %v1045 = vld [vmem:[%s1006 + $0x58] sm:$0xff]
        %v1046 = vld [vmem:[%s1006 + $0x60] sm:$0xff]
        %v1047 = vld [vmem:[%s1006 + $0x68] sm:$0xff]
        %v1048 = vld [vmem:[%s1006 + $0x70] sm:$0xff]
        %v1049 = vld [vmem:[%s1006 + $0x78] sm:$0xff]
        %v1050 = vld [vmem:[%s1012] sm:$0xff]
        %v1051 = vld [vmem:[%s1012 + $0x8] sm:$0xff]
        %v1052 = vld [vmem:[%s1012 + $0x10] sm:$0xff]
        %v1053 = vld [vmem:[%s1012 + $0x18] sm:$0xff]
        %v1054 = vld [vmem:[%s1012 + $0x20] sm:$0xff]
        %v1055 = vld [vmem:[%s1012 + $0x28] sm:$0xff]
        %v1056 = vld [vmem:[%s1012 + $0x30] sm:$0xff]
        %v1057 = vld [vmem:[%s1012 + $0x38] sm:$0xff]
        %v1058 = vld [vmem:[%s1012 + $0x40] sm:$0xff]
        %v1059 = vld [vmem:[%s1012 + $0x48] sm:$0xff]
        %v1060 = vld [vmem:[%s1012 + $0x50] sm:$0xff]
        %v1061 = vld [vmem:[%s1012 + $0x58] sm:$0xff]
        %v1062 = vld [vmem:[%s1012 + $0x60] sm:$0xff]
        %v1063 = vld [vmem:[%s1012 + $0x68] sm:$0xff]
        %v1064 = vld [vmem:[%s1012 + $0x70] sm:$0xff]
        %v1065 = vld [vmem:[%s1012 + $0x78] sm:$0xff]
        %v1066 = vld [vmem:[%s9] sm:$0xff]
        %v1067 = vld [vmem:[%s9 + $0x8] sm:$0xff]
        %v1068 = vld [vmem:[%s9 + $0x10] sm:$0xff]
        %v1069 = vld [vmem:[%s9 + $0x18] sm:$0xff]
        %v1070 = vld [vmem:[%s9 + $0x20] sm:$0xff]
        %v1071 = vld [vmem:[%s9 + $0x28] sm:$0xff]
        %v1072 = vld [vmem:[%s9 + $0x30] sm:$0xff]
        %v1073 = vld [vmem:[%s9 + $0x38] sm:$0xff]
        %v1074 = vld [vmem:[%s9 + $0x40] sm:$0xff]
        %v1075 = vld [vmem:[%s9 + $0x48] sm:$0xff]
        %v1076 = vld [vmem:[%s9 + $0x50] sm:$0xff]
        %v1077 = vld [vmem:[%s9 + $0x58] sm:$0xff]
        %v1078 = vld [vmem:[%s9 + $0x60] sm:$0xff]
        %v1079 = vld [vmem:[%s9 + $0x68] sm:$0xff]
        %v1080 = vld [vmem:[%s9 + $0x70] sm:$0xff]
        %v1081 = vld [vmem:[%s9 + $0x78] sm:$0xff]
        %v1082 = vld [vmem:[%s1016] sm:$0x1]
        %v1084 = vperm.slane %v1082, 0
        %v1086 = vadd.f32 %v1066, %v1084
        %v1087 = vadd.f32 %v1067, %v1084
        %v1088 = vadd.f32 %v1068, %v1084
        %v1089 = vadd.f32 %v1069, %v1084
        %v1090 = vadd.f32 %v1070, %v1084
        %v1091 = vadd.f32 %v1071, %v1084
        %v1092 = vadd.f32 %v1072, %v1084
        %v1093 = vadd.f32 %v1073, %v1084
        %v1094 = vadd.f32 %v1074, %v1084
        %v1095 = vadd.f32 %v1075, %v1084
        %v1096 = vadd.f32 %v1076, %v1084
        %v1097 = vadd.f32 %v1077, %v1084
        %v1098 = vadd.f32 %v1078, %v1084
        %v1099 = vadd.f32 %v1079, %v1084
        %v1100 = vadd.f32 %v1080, %v1084
        %v1101 = vadd.f32 %v1081, %v1084
        %v1102 = vpack.c.bf16 %v1019, %v1018
        %v1103 = vpack.c.bf16 %v1021, %v1020
        %v1104 = vpack.c.bf16 %v1023, %v1022
        %v1105 = vpack.c.bf16 %v1025, %v1024
        %v1106 = vpack.c.bf16 %v1027, %v1026
        %v1107 = vpack.c.bf16 %v1029, %v1028
        %v1108 = vpack.c.bf16 %v1031, %v1030
        %v1109 = vpack.c.bf16 %v1033, %v1032
        %v1110 = vld [vmem:[%s11] sm:$0xf]
        %v1111 = vld [vmem:[%s11 + $0x4] sm:$0xf]
        %v1112 = vld [vmem:[%s11 + $0x8] sm:$0xf]
        %v1113 = vld [vmem:[%s11 + $0xc] sm:$0xf]
        %v1114 = vld [vmem:[%s13] sm:$0x1]
        %v1116 = vperm.slane %v1114, 0
        %v1122 = vunpack.c.l.b16 %v1110
        %v1123 = vunpack.c.l.b16 %v1111
        %v1124 = vunpack.c.l.b16 %v1112
        %v1125 = vunpack.c.l.b16 %v1113
        %v1126 = vpack.c.b16 %v1123, %v1122
        %v1127 = vpack.c.b16 %v1125, %v1124
        %vm1130 = vcmask 261120
        %v1132 = vsel %vm1130, %v1102, 0
        %v1135 = vsel %vm1130, %v1103, 0
        %v1138 = vsel %vm1130, %v1104, 0
        %v1141 = vsel %vm1130, %v1105, 0
        %v1144 = vsel %vm1130, %v1106, 0
        %v1147 = vsel %vm1130, %v1107, 0
        %v1150 = vsel %vm1130, %v1108, 0
        %v1153 = vsel %vm1130, %v1109, 0
        %1155 = vmatpush.bf16.msra.mxu0 0
        %1156 = vmatpush.bf16.msra.mxu0 0
        %1157 = vmatpush.bf16.msra.mxu0 0
        %1158 = vmatpush.bf16.msra.mxu0 0
        %1159 = vmatpush.bf16.msra.mxu0 0
        %1160 = vmatpush.bf16.msra.mxu0 0
        %1161 = vmatpush.bf16.msra.mxu0 %v1127
        %1162 = vmatpush.bf16.msra.mxu0 %v1126
        %1163 = vmatmul.bf16.gmra.mxu0 %v1132
        %v1164 = vpop.f32.mrf.mxu0
        %v1165 = vadd.f32 %v1116, %v1164
        %v1166 = vpop.f32.mrf.mxu0
        %v1167 = vadd.f32 %v1116, %v1166
        %1168 = vmatmul.bf16.gmra.mxu0 %v1135
        %v1169 = vpop.f32.mrf.mxu0
        %v1170 = vadd.f32 %v1116, %v1169
        %v1171 = vpop.f32.mrf.mxu0
        %v1172 = vadd.f32 %v1116, %v1171
        %1173 = vmatmul.bf16.gmra.mxu0 %v1138
        %v1174 = vpop.f32.mrf.mxu0
        %v1175 = vadd.f32 %v1116, %v1174
        %v1176 = vpop.f32.mrf.mxu0
        %v1177 = vadd.f32 %v1116, %v1176
        %1178 = vmatmul.bf16.gmra.mxu0 %v1141
        %v1179 = vpop.f32.mrf.mxu0
        %v1180 = vadd.f32 %v1116, %v1179
        %v1181 = vpop.f32.mrf.mxu0
        %v1182 = vadd.f32 %v1116, %v1181
        %1183 = vmatmul.bf16.gmra.mxu0 %v1144
        %v1184 = vpop.f32.mrf.mxu0
        %v1185 = vadd.f32 %v1116, %v1184
        %v1186 = vpop.f32.mrf.mxu0
        %v1187 = vadd.f32 %v1116, %v1186
        %1188 = vmatmul.bf16.gmra.mxu0 %v1147
        %v1189 = vpop.f32.mrf.mxu0
        %v1190 = vadd.f32 %v1116, %v1189
        %v1191 = vpop.f32.mrf.mxu0
        %v1192 = vadd.f32 %v1116, %v1191
        %1193 = vmatmul.bf16.gmra.mxu0 %v1150
        %v1194 = vpop.f32.mrf.mxu0
        %v1195 = vadd.f32 %v1116, %v1194
        %v1196 = vpop.f32.mrf.mxu0
        %v1197 = vadd.f32 %v1116, %v1196
        %1198 = vmatmul.bf16.gmra.mxu0 %v1153
        %v1199 = vpop.f32.mrf.mxu0
        %v1200 = vadd.f32 %v1116, %v1199
        %v1201 = vpop.f32.mrf.mxu0
        %v1202 = vadd.f32 %v1116, %v1201
        %1203 = vdwg.mxu0
        %v1204 = vmul.f32 %v1165, 0.35355338
        %v1205 = vmul.f32 %v1167, 0.35355338
        %v1206 = vmul.f32 %v1170, 0.35355338
        %v1207 = vmul.f32 %v1172, 0.35355338
        %v1208 = vmul.f32 %v1175, 0.35355338
        %v1209 = vmul.f32 %v1177, 0.35355338
        %v1210 = vmul.f32 %v1180, 0.35355338
        %v1211 = vmul.f32 %v1182, 0.35355338
        %v1212 = vmul.f32 %v1185, 0.35355338
        %v1213 = vmul.f32 %v1187, 0.35355338
        %v1214 = vmul.f32 %v1190, 0.35355338
        %v1215 = vmul.f32 %v1192, 0.35355338
        %v1216 = vmul.f32 %v1195, 0.35355338
        %v1217 = vmul.f32 %v1197, 0.35355338
        %v1218 = vmul.f32 %v1200, 0.35355338
        %v1219 = vmul.f32 %v1202, 0.35355338
        %v1220 = vld [vmem:[%s15] sm:$0xf]
        %v1221 = vld [vmem:[%s15 + $0x4] sm:$0xf]
        %v1222 = vld [vmem:[%s15 + $0x8] sm:$0xf]
        %v1223 = vld [vmem:[%s15 + $0xc] sm:$0xf]
        %v1224 = vld [vmem:[%s17] sm:$0x1]
        %v1226 = vperm.slane %v1224, 0
        %v1232 = vunpack.c.l.b16 %v1220
        %v1233 = vunpack.c.l.b16 %v1221
        %v1234 = vunpack.c.l.b16 %v1222
        %v1235 = vunpack.c.l.b16 %v1223
        %v1236 = vpack.c.b16 %v1233, %v1232
        %v1237 = vpack.c.b16 %v1235, %v1234
        %1240 = vmatpush.bf16.msra.mxu0 0
        %1241 = vmatpush.bf16.msra.mxu0 0
        %1242 = vmatpush.bf16.msra.mxu0 0
        %1243 = vmatpush.bf16.msra.mxu0 0
        %1244 = vmatpush.bf16.msra.mxu0 0
        %1245 = vmatpush.bf16.msra.mxu0 0
        %1246 = vmatpush.bf16.msra.mxu0 %v1237
        %1247 = vmatpush.bf16.msra.mxu0 %v1236
        %1248 = vmatmul.bf16.gmra.mxu0 %v1132
        %v1249 = vpop.f32.mrf.mxu0
        %v1250 = vadd.f32 %v1226, %v1249
        %v1251 = vpop.f32.mrf.mxu0
        %v1252 = vadd.f32 %v1226, %v1251
        %1253 = vmatmul.bf16.gmra.mxu0 %v1135
        %v1254 = vpop.f32.mrf.mxu0
        %v1255 = vadd.f32 %v1226, %v1254
        %v1256 = vpop.f32.mrf.mxu0
        %v1257 = vadd.f32 %v1226, %v1256
        %1258 = vmatmul.bf16.gmra.mxu0 %v1138
        %v1259 = vpop.f32.mrf.mxu0
        %v1260 = vadd.f32 %v1226, %v1259
        %v1261 = vpop.f32.mrf.mxu0
        %v1262 = vadd.f32 %v1226, %v1261
        %1263 = vmatmul.bf16.gmra.mxu0 %v1141
        %v1264 = vpop.f32.mrf.mxu0
        %v1265 = vadd.f32 %v1226, %v1264
        %v1266 = vpop.f32.mrf.mxu0
        %v1267 = vadd.f32 %v1226, %v1266
        %1268 = vmatmul.bf16.gmra.mxu0 %v1144
        %v1269 = vpop.f32.mrf.mxu0
        %v1270 = vadd.f32 %v1226, %v1269
        %v1271 = vpop.f32.mrf.mxu0
        %v1272 = vadd.f32 %v1226, %v1271
        %1273 = vmatmul.bf16.gmra.mxu0 %v1147
        %v1274 = vpop.f32.mrf.mxu0
        %v1275 = vadd.f32 %v1226, %v1274
        %v1276 = vpop.f32.mrf.mxu0
        %v1277 = vadd.f32 %v1226, %v1276
        %1278 = vmatmul.bf16.gmra.mxu0 %v1150
        %v1279 = vpop.f32.mrf.mxu0
        %v1280 = vadd.f32 %v1226, %v1279
        %v1281 = vpop.f32.mrf.mxu0
        %v1282 = vadd.f32 %v1226, %v1281
        %1283 = vmatmul.bf16.gmra.mxu0 %v1153
        %v1284 = vpop.f32.mrf.mxu0
        %v1285 = vadd.f32 %v1226, %v1284
        %v1286 = vpop.f32.mrf.mxu0
        %v1287 = vadd.f32 %v1226, %v1286
        %1288 = vdwg.mxu0
        %v1289 = vld [vmem:[%s19] sm:$0xf]
        %v1290 = vld [vmem:[%s19 + $0x4] sm:$0xf]
        %v1291 = vld [vmem:[%s19 + $0x8] sm:$0xf]
        %v1292 = vld [vmem:[%s19 + $0xc] sm:$0xf]
        %v1293 = vld [vmem:[%s21] sm:$0x1]
        %v1295 = vperm.slane %v1293, 0
        %v1301 = vunpack.c.l.b16 %v1289
        %v1302 = vunpack.c.l.b16 %v1290
        %v1303 = vunpack.c.l.b16 %v1291
        %v1304 = vunpack.c.l.b16 %v1292
        %v1305 = vpack.c.b16 %v1302, %v1301
        %v1306 = vpack.c.b16 %v1304, %v1303
        %1309 = vmatpush.bf16.msra.mxu0 0
        %1310 = vmatpush.bf16.msra.mxu0 0
        %1311 = vmatpush.bf16.msra.mxu0 0
        %1312 = vmatpush.bf16.msra.mxu0 0
        %1313 = vmatpush.bf16.msra.mxu0 0
        %1314 = vmatpush.bf16.msra.mxu0 0
        %1315 = vmatpush.bf16.msra.mxu0 %v1306
        %1316 = vmatpush.bf16.msra.mxu0 %v1305
        %1317 = vmatmul.bf16.gmra.mxu0 %v1132
        %v1318 = vpop.f32.mrf.mxu0
        %v1319 = vadd.f32 %v1295, %v1318
        %v1320 = vpop.f32.mrf.mxu0
        %v1321 = vadd.f32 %v1295, %v1320
        %1322 = vmatmul.bf16.gmra.mxu0 %v1135
        %v1323 = vpop.f32.mrf.mxu0
        %v1324 = vadd.f32 %v1295, %v1323
        %v1325 = vpop.f32.mrf.mxu0
        %v1326 = vadd.f32 %v1295, %v1325
        %1327 = vmatmul.bf16.gmra.mxu0 %v1138
        %v1328 = vpop.f32.mrf.mxu0
        %v1329 = vadd.f32 %v1295, %v1328
        %v1330 = vpop.f32.mrf.mxu0
        %v1331 = vadd.f32 %v1295, %v1330
        %1332 = vmatmul.bf16.gmra.mxu0 %v1141
        %v1333 = vpop.f32.mrf.mxu0
        %v1334 = vadd.f32 %v1295, %v1333
        %v1335 = vpop.f32.mrf.mxu0
        %v1336 = vadd.f32 %v1295, %v1335
        %1337 = vmatmul.bf16.gmra.mxu0 %v1144
        %v1338 = vpop.f32.mrf.mxu0
        %v1339 = vadd.f32 %v1295, %v1338
        %v1340 = vpop.f32.mrf.mxu0
        %v1341 = vadd.f32 %v1295, %v1340
        %1342 = vmatmul.bf16.gmra.mxu0 %v1147
        %v1343 = vpop.f32.mrf.mxu0
        %v1344 = vadd.f32 %v1295, %v1343
        %v1345 = vpop.f32.mrf.mxu0
        %v1346 = vadd.f32 %v1295, %v1345
        %1347 = vmatmul.bf16.gmra.mxu0 %v1150
        %v1348 = vpop.f32.mrf.mxu0
        %v1349 = vadd.f32 %v1295, %v1348
        %v1350 = vpop.f32.mrf.mxu0
        %v1351 = vadd.f32 %v1295, %v1350
        %1352 = vmatmul.bf16.gmra.mxu0 %v1153
        %v1353 = vpop.f32.mrf.mxu0
        %v1354 = vadd.f32 %v1295, %v1353
        %v1355 = vpop.f32.mrf.mxu0
        %v1356 = vadd.f32 %v1295, %v1355
        %1357 = vdwg.mxu0
        %v1358 = vpack.c.bf16 %v1252, %v1250
        %v1359 = vpack.c.bf16 %v1257, %v1255
        %v1360 = vpack.c.bf16 %v1262, %v1260
        %v1361 = vpack.c.bf16 %v1267, %v1265
        %v1362 = vpack.c.bf16 %v1272, %v1270
        %v1363 = vpack.c.bf16 %v1277, %v1275
        %v1364 = vpack.c.bf16 %v1282, %v1280
        %v1365 = vpack.c.bf16 %v1287, %v1285
        %v1366 = vlaneseq
        %v1367 = vand.u32 %v1366, 127
        %vm1368 = vcmp.ge.s32.totalorder %v1367, 0
        %vm1369 = vcmp.lt.s32.totalorder %v1367, 8
        %vm1370 = vmand %vm1368, %vm1369
        %v1371 = vsel %vm1370, 1, 0
        %v1372 = vcvt.s32.f32 %v1371
        %v1373 = vmul.f32 %v1204, %v1372
        %v1374 = vmul.f32 %v1205, %v1372
        %v1375 = vmul.f32 %v1206, %v1372
        %v1376 = vmul.f32 %v1207, %v1372
        %v1377 = vmul.f32 %v1208, %v1372
        %v1378 = vmul.f32 %v1209, %v1372
        %v1379 = vmul.f32 %v1210, %v1372
        %v1380 = vmul.f32 %v1211, %v1372
        %v1381 = vmul.f32 %v1212, %v1372
        %v1382 = vmul.f32 %v1213, %v1372
        %v1383 = vmul.f32 %v1214, %v1372
        %v1384 = vmul.f32 %v1215, %v1372
        %v1385 = vmul.f32 %v1216, %v1372
        %v1386 = vmul.f32 %v1217, %v1372
        %v1387 = vmul.f32 %v1218, %v1372
        %v1388 = vmul.f32 %v1219, %v1372
        %v1389 = vpack.c.bf16 %v1374, %v1373
        %v1390 = vpack.c.bf16 %v1376, %v1375
        %v1391 = vpack.c.bf16 %v1378, %v1377
        %v1392 = vpack.c.bf16 %v1380, %v1379
        %v1393 = vpack.c.bf16 %v1382, %v1381
        %v1394 = vpack.c.bf16 %v1384, %v1383
        %v1395 = vpack.c.bf16 %v1386, %v1385
        %v1396 = vpack.c.bf16 %v1388, %v1387
        %v1398 = vsel %vm1130, %v1389, 0
        %v1401 = vsel %vm1130, %v1390, 0
        %v1404 = vsel %vm1130, %v1391, 0
        %v1407 = vsel %vm1130, %v1392, 0
        %v1410 = vsel %vm1130, %v1393, 0
        %v1413 = vsel %vm1130, %v1394, 0
        %v1416 = vsel %vm1130, %v1395, 0
        %v1419 = vsel %vm1130, %v1396, 0
        %v1422 = vsel %vm1130, %v1358, 0
        %v1425 = vsel %vm1130, %v1359, 0
        %v1428 = vsel %vm1130, %v1360, 0
        %v1431 = vsel %vm1130, %v1361, 0
        %v1434 = vsel %vm1130, %v1362, 0
        %v1437 = vsel %vm1130, %v1363, 0
        %v1440 = vsel %vm1130, %v1364, 0
        %v1443 = vsel %vm1130, %v1365, 0
        %1445 = vmatpush.bf16.xpose.msra.mxu0 %v1443
        %1446 = vmatpush.bf16.xpose.msra.mxu0 %v1440
        %1447 = vmatpush.bf16.xpose.msra.mxu0 %v1437
        %1448 = vmatpush.bf16.xpose.msra.mxu0 %v1434
        %1449 = vmatpush.bf16.xpose.msra.mxu0 %v1431
        %1450 = vmatpush.bf16.xpose.msra.mxu0 %v1428
        %1451 = vmatpush.bf16.xpose.msra.mxu0 %v1425
        %1452 = vmatpush.bf16.xpose.msra.mxu0 %v1422
        %1453 = vmatmul.bf16.gmra.mxu0 %v1398
        %v1454 = vpop.f32.mrf.mxu0
        %v1455 = vadd.f32 %v1086, %v1454
        %v1456 = vpop.f32.mrf.mxu0
        %v1457 = vadd.f32 %v1087, %v1456
        %1458 = vmatmul.bf16.gmra.mxu0 %v1401
        %v1459 = vpop.f32.mrf.mxu0
        %v1460 = vadd.f32 %v1088, %v1459
        %v1461 = vpop.f32.mrf.mxu0
        %v1462 = vadd.f32 %v1089, %v1461
        %1463 = vmatmul.bf16.gmra.mxu0 %v1404
        %v1464 = vpop.f32.mrf.mxu0
        %v1465 = vadd.f32 %v1090, %v1464
        %v1466 = vpop.f32.mrf.mxu0
        %v1467 = vadd.f32 %v1091, %v1466
        %1468 = vmatmul.bf16.gmra.mxu0 %v1407
        %v1469 = vpop.f32.mrf.mxu0
        %v1470 = vadd.f32 %v1092, %v1469
        %v1471 = vpop.f32.mrf.mxu0
        %v1472 = vadd.f32 %v1093, %v1471
        %1473 = vmatmul.bf16.gmra.mxu0 %v1410
        %v1474 = vpop.f32.mrf.mxu0
        %v1475 = vadd.f32 %v1094, %v1474
        %v1476 = vpop.f32.mrf.mxu0
        %v1477 = vadd.f32 %v1095, %v1476
        %1478 = vmatmul.bf16.gmra.mxu0 %v1413
        %v1479 = vpop.f32.mrf.mxu0
        %v1480 = vadd.f32 %v1096, %v1479
        %v1481 = vpop.f32.mrf.mxu0
        %v1482 = vadd.f32 %v1097, %v1481
        %1483 = vmatmul.bf16.gmra.mxu0 %v1416
        %v1484 = vpop.f32.mrf.mxu0
        %v1485 = vadd.f32 %v1098, %v1484
        %v1486 = vpop.f32.mrf.mxu0
        %v1487 = vadd.f32 %v1099, %v1486
        %1488 = vmatmul.bf16.gmra.mxu0 %v1419
        %v1489 = vpop.f32.mrf.mxu0
        %v1490 = vadd.f32 %v1100, %v1489
        %v1491 = vpop.f32.mrf.mxu0
        %v1492 = vadd.f32 %v1101, %v1491
        %1493 = vdwg.mxu0
        %1494 = vmax.xlane.f32.xlu0 %v1455
        %v1495 = vpop.xlane.xlu0 %1494
        %1496 = vmax.xlane.f32.xlu0 %v1457
        %v1497 = vpop.xlane.xlu0 %1496
        %1498 = vmax.xlane.f32.xlu0 %v1460
        %v1499 = vpop.xlane.xlu0 %1498
        %1500 = vmax.xlane.f32.xlu0 %v1462
        %v1501 = vpop.xlane.xlu0 %1500
        %1502 = vmax.xlane.f32.xlu0 %v1465
        %v1503 = vpop.xlane.xlu0 %1502
        %1504 = vmax.xlane.f32.xlu0 %v1467
        %v1505 = vpop.xlane.xlu0 %1504
        %1506 = vmax.xlane.f32.xlu0 %v1470
        %v1507 = vpop.xlane.xlu0 %1506
        %1508 = vmax.xlane.f32.xlu0 %v1472
        %v1509 = vpop.xlane.xlu0 %1508
        %1510 = vmax.xlane.f32.xlu0 %v1475
        %v1511 = vpop.xlane.xlu0 %1510
        %1512 = vmax.xlane.f32.xlu0 %v1477
        %v1513 = vpop.xlane.xlu0 %1512
        %1514 = vmax.xlane.f32.xlu0 %v1480
        %v1515 = vpop.xlane.xlu0 %1514
        %1516 = vmax.xlane.f32.xlu0 %v1482
        %v1517 = vpop.xlane.xlu0 %1516
        %1518 = vmax.xlane.f32.xlu0 %v1485
        %v1519 = vpop.xlane.xlu0 %1518
        %1520 = vmax.xlane.f32.xlu0 %v1487
        %v1521 = vpop.xlane.xlu0 %1520
        %1522 = vmax.xlane.f32.xlu0 %v1490
        %v1523 = vpop.xlane.xlu0 %1522
        %1524 = vmax.xlane.f32.xlu0 %v1492
        %v1525 = vpop.xlane.xlu0 %1524
        %v1526 = vsub.f32 %v1455, %v1495
        %v1527 = vsub.f32 %v1457, %v1497
        %v1528 = vsub.f32 %v1460, %v1499
        %v1529 = vsub.f32 %v1462, %v1501
        %v1530 = vsub.f32 %v1465, %v1503
        %v1531 = vsub.f32 %v1467, %v1505
        %v1532 = vsub.f32 %v1470, %v1507
        %v1533 = vsub.f32 %v1472, %v1509
        %v1534 = vsub.f32 %v1475, %v1511
        %v1535 = vsub.f32 %v1477, %v1513
        %v1536 = vsub.f32 %v1480, %v1515
        %v1537 = vsub.f32 %v1482, %v1517
        %v1538 = vsub.f32 %v1485, %v1519
        %v1539 = vsub.f32 %v1487, %v1521
        %v1540 = vsub.f32 %v1490, %v1523
        %v1541 = vsub.f32 %v1492, %v1525
        %v1542 = vmul.f32 %v1526, 1.442695
        %v1543 = vpow.pop %v1542
        %v1544 = vmul.f32 %v1527, 1.442695
        %v1545 = vpow.pop %v1544
        %v1546 = vmul.f32 %v1528, 1.442695
        %v1547 = vpow.pop %v1546
        %v1548 = vmul.f32 %v1529, 1.442695
        %v1549 = vpow.pop %v1548
        %v1550 = vmul.f32 %v1530, 1.442695
        %v1551 = vpow.pop %v1550
        %v1552 = vmul.f32 %v1531, 1.442695
        %v1553 = vpow.pop %v1552
        %v1554 = vmul.f32 %v1532, 1.442695
        %v1555 = vpow.pop %v1554
        %v1556 = vmul.f32 %v1533, 1.442695
        %v1557 = vpow.pop %v1556
        %v1558 = vmul.f32 %v1534, 1.442695
        %v1559 = vpow.pop %v1558
        %v1560 = vmul.f32 %v1535, 1.442695
        %v1561 = vpow.pop %v1560
        %v1562 = vmul.f32 %v1536, 1.442695
        %v1563 = vpow.pop %v1562
        %v1564 = vmul.f32 %v1537, 1.442695
        %v1565 = vpow.pop %v1564
        %v1566 = vmul.f32 %v1538, 1.442695
        %v1567 = vpow.pop %v1566
        %v1568 = vmul.f32 %v1539, 1.442695
        %v1569 = vpow.pop %v1568
        %v1570 = vmul.f32 %v1540, 1.442695
        %v1571 = vpow.pop %v1570
        %v1572 = vmul.f32 %v1541, 1.442695
        %v1573 = vpow.pop %v1572
        %1574 = vadd.xlane.f32.xlu0 %v1543
        %v1575 = vpop.xlane.xlu0 %1574
        %1576 = vadd.xlane.f32.xlu0 %v1545
        %v1577 = vpop.xlane.xlu0 %1576
        %1578 = vadd.xlane.f32.xlu0 %v1547
        %v1579 = vpop.xlane.xlu0 %1578
        %1580 = vadd.xlane.f32.xlu0 %v1549
        %v1581 = vpop.xlane.xlu0 %1580
        %1582 = vadd.xlane.f32.xlu0 %v1551
        %v1583 = vpop.xlane.xlu0 %1582
        %1584 = vadd.xlane.f32.xlu0 %v1553
        %v1585 = vpop.xlane.xlu0 %1584
        %1586 = vadd.xlane.f32.xlu0 %v1555
        %v1587 = vpop.xlane.xlu0 %1586
        %1588 = vadd.xlane.f32.xlu0 %v1557
        %v1589 = vpop.xlane.xlu0 %1588
        %1590 = vadd.xlane.f32.xlu0 %v1559
        %v1591 = vpop.xlane.xlu0 %1590
        %1592 = vadd.xlane.f32.xlu0 %v1561
        %v1593 = vpop.xlane.xlu0 %1592
        %1594 = vadd.xlane.f32.xlu0 %v1563
        %v1595 = vpop.xlane.xlu0 %1594
        %1596 = vadd.xlane.f32.xlu0 %v1565
        %v1597 = vpop.xlane.xlu0 %1596
        %1598 = vadd.xlane.f32.xlu0 %v1567
        %v1599 = vpop.xlane.xlu0 %1598
        %1600 = vadd.xlane.f32.xlu0 %v1569
        %v1601 = vpop.xlane.xlu0 %1600
        %1602 = vadd.xlane.f32.xlu0 %v1571
        %v1603 = vpop.xlane.xlu0 %1602
        %1604 = vadd.xlane.f32.xlu0 %v1573
        %v1605 = vpop.xlane.xlu0 %1604
        %v1606 = vrcp.pop %v1575
        %v1607 = vrcp.pop %v1577
        %v1608 = vrcp.pop %v1579
        %v1609 = vrcp.pop %v1581
        %v1610 = vrcp.pop %v1583
        %v1611 = vrcp.pop %v1585
        %v1612 = vrcp.pop %v1587
        %v1613 = vrcp.pop %v1589
        %v1614 = vrcp.pop %v1591
        %v1615 = vrcp.pop %v1593
        %v1616 = vrcp.pop %v1595
        %v1617 = vrcp.pop %v1597
        %v1618 = vrcp.pop %v1599
        %v1619 = vrcp.pop %v1601
        %v1620 = vrcp.pop %v1603
        %v1621 = vrcp.pop %v1605
        %v1622 = vmul.f32 %v1543, %v1606
        %v1623 = vmul.f32 %v1545, %v1607
        %v1624 = vmul.f32 %v1547, %v1608
        %v1625 = vmul.f32 %v1549, %v1609
        %v1626 = vmul.f32 %v1551, %v1610
        %v1627 = vmul.f32 %v1553, %v1611
        %v1628 = vmul.f32 %v1555, %v1612
        %v1629 = vmul.f32 %v1557, %v1613
        %v1630 = vmul.f32 %v1559, %v1614
        %v1631 = vmul.f32 %v1561, %v1615
        %v1632 = vmul.f32 %v1563, %v1616
        %v1633 = vmul.f32 %v1565, %v1617
        %v1634 = vmul.f32 %v1567, %v1618
        %v1635 = vmul.f32 %v1569, %v1619
        %v1636 = vmul.f32 %v1571, %v1620
        %v1637 = vmul.f32 %v1573, %v1621
        %v1638 = vpack.c.bf16 %v1623, %v1622
        %v1639 = vpack.c.bf16 %v1625, %v1624
        %v1640 = vpack.c.bf16 %v1627, %v1626
        %v1641 = vpack.c.bf16 %v1629, %v1628
        %v1642 = vpack.c.bf16 %v1631, %v1630
        %v1643 = vpack.c.bf16 %v1633, %v1632
        %v1644 = vpack.c.bf16 %v1635, %v1634
        %v1645 = vpack.c.bf16 %v1637, %v1636
        %v1646 = vmul.f32 %v1319, %v1372
        %v1647 = vmul.f32 %v1321, %v1372
        %v1648 = vmul.f32 %v1324, %v1372
        %v1649 = vmul.f32 %v1326, %v1372
        %v1650 = vmul.f32 %v1329, %v1372
        %v1651 = vmul.f32 %v1331, %v1372
        %v1652 = vmul.f32 %v1334, %v1372
        %v1653 = vmul.f32 %v1336, %v1372
        %v1654 = vmul.f32 %v1339, %v1372
        %v1655 = vmul.f32 %v1341, %v1372
        %v1656 = vmul.f32 %v1344, %v1372
        %v1657 = vmul.f32 %v1346, %v1372
        %v1658 = vmul.f32 %v1349, %v1372
        %v1659 = vmul.f32 %v1351, %v1372
        %v1660 = vmul.f32 %v1354, %v1372
        %v1661 = vmul.f32 %v1356, %v1372
        %v1662 = vpack.c.bf16 %v1647, %v1646
        %v1663 = vpack.c.bf16 %v1649, %v1648
        %v1664 = vpack.c.bf16 %v1651, %v1650
        %v1665 = vpack.c.bf16 %v1653, %v1652
        %v1666 = vpack.c.bf16 %v1655, %v1654
        %v1667 = vpack.c.bf16 %v1657, %v1656
        %v1668 = vpack.c.bf16 %v1659, %v1658
        %v1669 = vpack.c.bf16 %v1661, %v1660
        %vm1670 = vcmp.ge.s32.totalorder %v1367, 8
        %vm1671 = vcmp.lt.s32.totalorder %v1367, 16
        %vm1672 = vmand %vm1670, %vm1671
        %v1673 = vsel %vm1672, 1, 0
        %v1674 = vcvt.s32.f32 %v1673
        %v1675 = vmul.f32 %v1204, %v1674
        %v1676 = vmul.f32 %v1205, %v1674
        %v1677 = vmul.f32 %v1206, %v1674
        %v1678 = vmul.f32 %v1207, %v1674
        %v1679 = vmul.f32 %v1208, %v1674
        %v1680 = vmul.f32 %v1209, %v1674
        %v1681 = vmul.f32 %v1210, %v1674
        %v1682 = vmul.f32 %v1211, %v1674
        %v1683 = vmul.f32 %v1212, %v1674
        %v1684 = vmul.f32 %v1213, %v1674
        %v1685 = vmul.f32 %v1214, %v1674
        %v1686 = vmul.f32 %v1215, %v1674
        %v1687 = vmul.f32 %v1216, %v1674
        %v1688 = vmul.f32 %v1217, %v1674
        %v1689 = vmul.f32 %v1218, %v1674
        %v1690 = vmul.f32 %v1219, %v1674
        %v1691 = vpack.c.bf16 %v1676, %v1675
        %v1692 = vpack.c.bf16 %v1678, %v1677
        %v1693 = vpack.c.bf16 %v1680, %v1679
        %v1694 = vpack.c.bf16 %v1682, %v1681
        %v1695 = vpack.c.bf16 %v1684, %v1683
        %v1696 = vpack.c.bf16 %v1686, %v1685
        %v1697 = vpack.c.bf16 %v1688, %v1687
        %v1698 = vpack.c.bf16 %v1690, %v1689
        %v1700 = vsel %vm1130, %v1691, 0
        %v1703 = vsel %vm1130, %v1692, 0
        %v1706 = vsel %vm1130, %v1693, 0
        %v1709 = vsel %vm1130, %v1694, 0
        %v1712 = vsel %vm1130, %v1695, 0
        %v1715 = vsel %vm1130, %v1696, 0
        %v1718 = vsel %vm1130, %v1697, 0
        %v1721 = vsel %vm1130, %v1698, 0
        %1723 = vmatpush.bf16.xpose.msra.mxu0 %v1443
        %1724 = vmatpush.bf16.xpose.msra.mxu0 %v1440
        %1725 = vmatpush.bf16.xpose.msra.mxu0 %v1437
        %1726 = vmatpush.bf16.xpose.msra.mxu0 %v1434
        %1727 = vmatpush.bf16.xpose.msra.mxu0 %v1431
        %1728 = vmatpush.bf16.xpose.msra.mxu0 %v1428
        %1729 = vmatpush.bf16.xpose.msra.mxu0 %v1425
        %1730 = vmatpush.bf16.xpose.msra.mxu0 %v1422
        %1731 = vmatmul.bf16.gmra.mxu0 %v1700
        %v1732 = vpop.f32.mrf.mxu0
        %v1733 = vadd.f32 %v1086, %v1732
        %v1734 = vpop.f32.mrf.mxu0
        %v1735 = vadd.f32 %v1087, %v1734
        %1736 = vmatmul.bf16.gmra.mxu0 %v1703
        %v1737 = vpop.f32.mrf.mxu0
        %v1738 = vadd.f32 %v1088, %v1737
        %v1739 = vpop.f32.mrf.mxu0
        %v1740 = vadd.f32 %v1089, %v1739
        %1741 = vmatmul.bf16.gmra.mxu0 %v1706
        %v1742 = vpop.f32.mrf.mxu0
        %v1743 = vadd.f32 %v1090, %v1742
        %v1744 = vpop.f32.mrf.mxu0
        %v1745 = vadd.f32 %v1091, %v1744
        %1746 = vmatmul.bf16.gmra.mxu0 %v1709
        %v1747 = vpop.f32.mrf.mxu0
        %v1748 = vadd.f32 %v1092, %v1747
        %v1749 = vpop.f32.mrf.mxu0
        %v1750 = vadd.f32 %v1093, %v1749
        %1751 = vmatmul.bf16.gmra.mxu0 %v1712
        %v1752 = vpop.f32.mrf.mxu0
        %v1753 = vadd.f32 %v1094, %v1752
        %v1754 = vpop.f32.mrf.mxu0
        %v1755 = vadd.f32 %v1095, %v1754
        %1756 = vmatmul.bf16.gmra.mxu0 %v1715
        %v1757 = vpop.f32.mrf.mxu0
        %v1758 = vadd.f32 %v1096, %v1757
        %v1759 = vpop.f32.mrf.mxu0
        %v1760 = vadd.f32 %v1097, %v1759
        %1761 = vmatmul.bf16.gmra.mxu0 %v1718
        %v1762 = vpop.f32.mrf.mxu0
        %v1763 = vadd.f32 %v1098, %v1762
        %v1764 = vpop.f32.mrf.mxu0
        %v1765 = vadd.f32 %v1099, %v1764
        %1766 = vmatmul.bf16.gmra.mxu0 %v1721
        %v1767 = vpop.f32.mrf.mxu0
        %v1768 = vadd.f32 %v1100, %v1767
        %v1769 = vpop.f32.mrf.mxu0
        %v1770 = vadd.f32 %v1101, %v1769
        %1771 = vdwg.mxu0
        %1772 = vmax.xlane.f32.xlu0 %v1733
        %v1773 = vpop.xlane.xlu0 %1772
        %1774 = vmax.xlane.f32.xlu0 %v1735
        %v1775 = vpop.xlane.xlu0 %1774
        %1776 = vmax.xlane.f32.xlu0 %v1738
        %v1777 = vpop.xlane.xlu0 %1776
        %1778 = vmax.xlane.f32.xlu0 %v1740
        %v1779 = vpop.xlane.xlu0 %1778
        %1780 = vmax.xlane.f32.xlu0 %v1743
        %v1781 = vpop.xlane.xlu0 %1780
        %1782 = vmax.xlane.f32.xlu0 %v1745
        %v1783 = vpop.xlane.xlu0 %1782
        %1784 = vmax.xlane.f32.xlu0 %v1748
        %v1785 = vpop.xlane.xlu0 %1784
        %1786 = vmax.xlane.f32.xlu0 %v1750
        %v1787 = vpop.xlane.xlu0 %1786
        %1788 = vmax.xlane.f32.xlu0 %v1753
        %v1789 = vpop.xlane.xlu0 %1788
        %1790 = vmax.xlane.f32.xlu0 %v1755
        %v1791 = vpop.xlane.xlu0 %1790
        %1792 = vmax.xlane.f32.xlu0 %v1758
        %v1793 = vpop.xlane.xlu0 %1792
        %1794 = vmax.xlane.f32.xlu0 %v1760
        %v1795 = vpop.xlane.xlu0 %1794
        %1796 = vmax.xlane.f32.xlu0 %v1763
        %v1797 = vpop.xlane.xlu0 %1796
        %1798 = vmax.xlane.f32.xlu0 %v1765
        %v1799 = vpop.xlane.xlu0 %1798
        %1800 = vmax.xlane.f32.xlu0 %v1768
        %v1801 = vpop.xlane.xlu0 %1800
        %1802 = vmax.xlane.f32.xlu0 %v1770
        %v1803 = vpop.xlane.xlu0 %1802
        %v1804 = vsub.f32 %v1733, %v1773
        %v1805 = vsub.f32 %v1735, %v1775
        %v1806 = vsub.f32 %v1738, %v1777
        %v1807 = vsub.f32 %v1740, %v1779
        %v1808 = vsub.f32 %v1743, %v1781
        %v1809 = vsub.f32 %v1745, %v1783
        %v1810 = vsub.f32 %v1748, %v1785
        %v1811 = vsub.f32 %v1750, %v1787
        %v1812 = vsub.f32 %v1753, %v1789
        %v1813 = vsub.f32 %v1755, %v1791
        %v1814 = vsub.f32 %v1758, %v1793
        %v1815 = vsub.f32 %v1760, %v1795
        %v1816 = vsub.f32 %v1763, %v1797
        %v1817 = vsub.f32 %v1765, %v1799
        %v1818 = vsub.f32 %v1768, %v1801
        %v1819 = vsub.f32 %v1770, %v1803
        %v1820 = vmul.f32 %v1804, 1.442695
        %v1821 = vpow.pop %v1820
        %v1822 = vmul.f32 %v1805, 1.442695
        %v1823 = vpow.pop %v1822
        %v1824 = vmul.f32 %v1806, 1.442695
        %v1825 = vpow.pop %v1824
        %v1826 = vmul.f32 %v1807, 1.442695
        %v1827 = vpow.pop %v1826
        %v1828 = vmul.f32 %v1808, 1.442695
        %v1829 = vpow.pop %v1828
        %v1830 = vmul.f32 %v1809, 1.442695
        %v1831 = vpow.pop %v1830
        %v1832 = vmul.f32 %v1810, 1.442695
        %v1833 = vpow.pop %v1832
        %v1834 = vmul.f32 %v1811, 1.442695
        %v1835 = vpow.pop %v1834
        %v1836 = vmul.f32 %v1812, 1.442695
        %v1837 = vpow.pop %v1836
        %v1838 = vmul.f32 %v1813, 1.442695
        %v1839 = vpow.pop %v1838
        %v1840 = vmul.f32 %v1814, 1.442695
        %v1841 = vpow.pop %v1840
        %v1842 = vmul.f32 %v1815, 1.442695
        %v1843 = vpow.pop %v1842
        %v1844 = vmul.f32 %v1816, 1.442695
        %v1845 = vpow.pop %v1844
        %v1846 = vmul.f32 %v1817, 1.442695
        %v1847 = vpow.pop %v1846
        %v1848 = vmul.f32 %v1818, 1.442695
        %v1849 = vpow.pop %v1848
        %v1850 = vmul.f32 %v1819, 1.442695
        %v1851 = vpow.pop %v1850
        %1852 = vadd.xlane.f32.xlu0 %v1821
        %v1853 = vpop.xlane.xlu0 %1852
        %1854 = vadd.xlane.f32.xlu0 %v1823
        %v1855 = vpop.xlane.xlu0 %1854
        %1856 = vadd.xlane.f32.xlu0 %v1825
        %v1857 = vpop.xlane.xlu0 %1856
        %1858 = vadd.xlane.f32.xlu0 %v1827
        %v1859 = vpop.xlane.xlu0 %1858
        %1860 = vadd.xlane.f32.xlu0 %v1829
        %v1861 = vpop.xlane.xlu0 %1860
        %1862 = vadd.xlane.f32.xlu0 %v1831
        %v1863 = vpop.xlane.xlu0 %1862
        %1864 = vadd.xlane.f32.xlu0 %v1833
        %v1865 = vpop.xlane.xlu0 %1864
        %1866 = vadd.xlane.f32.xlu0 %v1835
        %v1867 = vpop.xlane.xlu0 %1866
        %1868 = vadd.xlane.f32.xlu0 %v1837
        %v1869 = vpop.xlane.xlu0 %1868
        %1870 = vadd.xlane.f32.xlu0 %v1839
        %v1871 = vpop.xlane.xlu0 %1870
        %1872 = vadd.xlane.f32.xlu0 %v1841
        %v1873 = vpop.xlane.xlu0 %1872
        %1874 = vadd.xlane.f32.xlu0 %v1843
        %v1875 = vpop.xlane.xlu0 %1874
        %1876 = vadd.xlane.f32.xlu0 %v1845
        %v1877 = vpop.xlane.xlu0 %1876
        %1878 = vadd.xlane.f32.xlu0 %v1847
        %v1879 = vpop.xlane.xlu0 %1878
        %1880 = vadd.xlane.f32.xlu0 %v1849
        %v1881 = vpop.xlane.xlu0 %1880
        %1882 = vadd.xlane.f32.xlu0 %v1851
        %v1883 = vpop.xlane.xlu0 %1882
        %v1884 = vrcp.pop %v1853
        %v1885 = vrcp.pop %v1855
        %v1886 = vrcp.pop %v1857
        %v1887 = vrcp.pop %v1859
        %v1888 = vrcp.pop %v1861
        %v1889 = vrcp.pop %v1863
        %v1890 = vrcp.pop %v1865
        %v1891 = vrcp.pop %v1867
        %v1892 = vrcp.pop %v1869
        %v1893 = vrcp.pop %v1871
        %v1894 = vrcp.pop %v1873
        %v1895 = vrcp.pop %v1875
        %v1896 = vrcp.pop %v1877
        %v1897 = vrcp.pop %v1879
        %v1898 = vrcp.pop %v1881
        %v1899 = vrcp.pop %v1883
        %v1900 = vmul.f32 %v1821, %v1884
        %v1901 = vmul.f32 %v1823, %v1885
        %v1902 = vmul.f32 %v1825, %v1886
        %v1903 = vmul.f32 %v1827, %v1887
        %v1904 = vmul.f32 %v1829, %v1888
        %v1905 = vmul.f32 %v1831, %v1889
        %v1906 = vmul.f32 %v1833, %v1890
        %v1907 = vmul.f32 %v1835, %v1891
        %v1908 = vmul.f32 %v1837, %v1892
        %v1909 = vmul.f32 %v1839, %v1893
        %v1910 = vmul.f32 %v1841, %v1894
        %v1911 = vmul.f32 %v1843, %v1895
        %v1912 = vmul.f32 %v1845, %v1896
        %v1913 = vmul.f32 %v1847, %v1897
        %v1914 = vmul.f32 %v1849, %v1898
        %v1915 = vmul.f32 %v1851, %v1899
        %v1916 = vpack.c.bf16 %v1901, %v1900
        %v1917 = vpack.c.bf16 %v1903, %v1902
        %v1918 = vpack.c.bf16 %v1905, %v1904
        %v1919 = vpack.c.bf16 %v1907, %v1906
        %v1920 = vpack.c.bf16 %v1909, %v1908
        %v1921 = vpack.c.bf16 %v1911, %v1910
        %v1922 = vpack.c.bf16 %v1913, %v1912
        %v1923 = vpack.c.bf16 %v1915, %v1914
        %v1924 = vmul.f32 %v1319, %v1674
        %v1925 = vmul.f32 %v1321, %v1674
        %v1926 = vmul.f32 %v1324, %v1674
        %v1927 = vmul.f32 %v1326, %v1674
        %v1928 = vmul.f32 %v1329, %v1674
        %v1929 = vmul.f32 %v1331, %v1674
        %v1930 = vmul.f32 %v1334, %v1674
        %v1931 = vmul.f32 %v1336, %v1674
        %v1932 = vmul.f32 %v1339, %v1674
        %v1933 = vmul.f32 %v1341, %v1674
        %v1934 = vmul.f32 %v1344, %v1674
        %v1935 = vmul.f32 %v1346, %v1674
        %v1936 = vmul.f32 %v1349, %v1674
        %v1937 = vmul.f32 %v1351, %v1674
        %v1938 = vmul.f32 %v1354, %v1674
        %v1939 = vmul.f32 %v1356, %v1674
        %v1940 = vpack.c.bf16 %v1925, %v1924
        %v1941 = vpack.c.bf16 %v1927, %v1926
        %v1942 = vpack.c.bf16 %v1929, %v1928
        %v1943 = vpack.c.bf16 %v1931, %v1930
        %v1944 = vpack.c.bf16 %v1933, %v1932
        %v1945 = vpack.c.bf16 %v1935, %v1934
        %v1946 = vpack.c.bf16 %v1937, %v1936
        %v1947 = vpack.c.bf16 %v1939, %v1938
        %1948 = vmatpush.bf16.msra.mxu0 %v1947
        %1949 = vmatpush.bf16.msra.mxu0 %v1946
        %1950 = vmatpush.bf16.msra.mxu0 %v1945
        %1951 = vmatpush.bf16.msra.mxu0 %v1944
        %1952 = vmatpush.bf16.msra.mxu0 %v1943
        %1953 = vmatpush.bf16.msra.mxu0 %v1942
        %1954 = vmatpush.bf16.msra.mxu0 %v1941
        %1955 = vmatpush.bf16.msra.mxu0 %v1940
        %1956 = vmatmul.bf16.gmra.mxu0 %v1916
        %v1957 = vpop.f32.mrf.mxu0
        %v1958 = vadd.f32 0.0, %v1957
        %v1959 = vpop.f32.mrf.mxu0
        %v1960 = vadd.f32 0.0, %v1959
        %1961 = vmatmul.bf16.gmra.mxu0 %v1917
        %v1962 = vpop.f32.mrf.mxu0
        %v1963 = vadd.f32 0.0, %v1962
        %v1964 = vpop.f32.mrf.mxu0
        %v1965 = vadd.f32 0.0, %v1964
        %1966 = vmatmul.bf16.gmra.mxu0 %v1918
        %v1967 = vpop.f32.mrf.mxu0
        %v1968 = vadd.f32 0.0, %v1967
        %v1969 = vpop.f32.mrf.mxu0
        %v1970 = vadd.f32 0.0, %v1969
        %1971 = vmatmul.bf16.gmra.mxu0 %v1919
        %v1972 = vpop.f32.mrf.mxu0
        %v1973 = vadd.f32 0.0, %v1972
        %v1974 = vpop.f32.mrf.mxu0
        %v1975 = vadd.f32 0.0, %v1974
        %1976 = vmatmul.bf16.gmra.mxu0 %v1920
        %v1977 = vpop.f32.mrf.mxu0
        %v1978 = vadd.f32 0.0, %v1977
        %v1979 = vpop.f32.mrf.mxu0
        %v1980 = vadd.f32 0.0, %v1979
        %1981 = vmatmul.bf16.gmra.mxu0 %v1921
        %v1982 = vpop.f32.mrf.mxu0
        %v1983 = vadd.f32 0.0, %v1982
        %v1984 = vpop.f32.mrf.mxu0
        %v1985 = vadd.f32 0.0, %v1984
        %1986 = vmatmul.bf16.gmra.mxu0 %v1922
        %v1987 = vpop.f32.mrf.mxu0
        %v1988 = vadd.f32 0.0, %v1987
        %v1989 = vpop.f32.mrf.mxu0
        %v1990 = vadd.f32 0.0, %v1989
        %1991 = vmatmul.bf16.gmra.mxu0 %v1923
        %v1992 = vpop.f32.mrf.mxu0
        %v1993 = vadd.f32 0.0, %v1992
        %v1994 = vpop.f32.mrf.mxu0
        %v1995 = vadd.f32 0.0, %v1994
        %1996 = vdwg.mxu0
        %1997 = vmatpush.bf16.msra.mxu0 %v1669
        %1998 = vmatpush.bf16.msra.mxu0 %v1668
        %1999 = vmatpush.bf16.msra.mxu0 %v1667
        %2000 = vmatpush.bf16.msra.mxu0 %v1666
        %2001 = vmatpush.bf16.msra.mxu0 %v1665
        %2002 = vmatpush.bf16.msra.mxu0 %v1664
        %2003 = vmatpush.bf16.msra.mxu0 %v1663
        %2004 = vmatpush.bf16.msra.mxu0 %v1662
        %2005 = vmatmul.bf16.gmra.mxu0 %v1638
        %v2006 = vpop.f32.mrf.mxu0
        %v2007 = vadd.f32 %v1958, %v2006
        %v2008 = vpop.f32.mrf.mxu0
        %v2009 = vadd.f32 %v1960, %v2008
        %2010 = vmatmul.bf16.gmra.mxu0 %v1639
        %v2011 = vpop.f32.mrf.mxu0
        %v2012 = vadd.f32 %v1963, %v2011
        %v2013 = vpop.f32.mrf.mxu0
        %v2014 = vadd.f32 %v1965, %v2013
        %2015 = vmatmul.bf16.gmra.mxu0 %v1640
        %v2016 = vpop.f32.mrf.mxu0
        %v2017 = vadd.f32 %v1968, %v2016
        %v2018 = vpop.f32.mrf.mxu0
        %v2019 = vadd.f32 %v1970, %v2018
        %2020 = vmatmul.bf16.gmra.mxu0 %v1641
        %v2021 = vpop.f32.mrf.mxu0
        %v2022 = vadd.f32 %v1973, %v2021
        %v2023 = vpop.f32.mrf.mxu0
        %v2024 = vadd.f32 %v1975, %v2023
        %2025 = vmatmul.bf16.gmra.mxu0 %v1642
        %v2026 = vpop.f32.mrf.mxu0
        %v2027 = vadd.f32 %v1978, %v2026
        %v2028 = vpop.f32.mrf.mxu0
        %v2029 = vadd.f32 %v1980, %v2028
        %2030 = vmatmul.bf16.gmra.mxu0 %v1643
        %v2031 = vpop.f32.mrf.mxu0
        %v2032 = vadd.f32 %v1983, %v2031
        %v2033 = vpop.f32.mrf.mxu0
        %v2034 = vadd.f32 %v1985, %v2033
        %2035 = vmatmul.bf16.gmra.mxu0 %v1644
        %v2036 = vpop.f32.mrf.mxu0
        %v2037 = vadd.f32 %v1988, %v2036
        %v2038 = vpop.f32.mrf.mxu0
        %v2039 = vadd.f32 %v1990, %v2038
        %2040 = vmatmul.bf16.gmra.mxu0 %v1645
        %v2041 = vpop.f32.mrf.mxu0
        %v2042 = vadd.f32 %v1993, %v2041
        %v2043 = vpop.f32.mrf.mxu0
        %v2044 = vadd.f32 %v1995, %v2043
        %2045 = vdwg.mxu0
        %vm2046 = vcmp.ge.s32.totalorder %v1367, 16
        %vm2047 = vcmp.lt.s32.totalorder %v1367, 24
        %vm2048 = vmand %vm2046, %vm2047
        %v2049 = vsel %vm2048, 1, 0
        %v2050 = vcvt.s32.f32 %v2049
        %v2051 = vmul.f32 %v1204, %v2050
        %v2052 = vmul.f32 %v1205, %v2050
        %v2053 = vmul.f32 %v1206, %v2050
        %v2054 = vmul.f32 %v1207, %v2050
        %v2055 = vmul.f32 %v1208, %v2050
        %v2056 = vmul.f32 %v1209, %v2050
        %v2057 = vmul.f32 %v1210, %v2050
        %v2058 = vmul.f32 %v1211, %v2050
        %v2059 = vmul.f32 %v1212, %v2050
        %v2060 = vmul.f32 %v1213, %v2050
        %v2061 = vmul.f32 %v1214, %v2050
        %v2062 = vmul.f32 %v1215, %v2050
        %v2063 = vmul.f32 %v1216, %v2050
        %v2064 = vmul.f32 %v1217, %v2050
        %v2065 = vmul.f32 %v1218, %v2050
        %v2066 = vmul.f32 %v1219, %v2050
        %v2067 = vpack.c.bf16 %v2052, %v2051
        %v2068 = vpack.c.bf16 %v2054, %v2053
        %v2069 = vpack.c.bf16 %v2056, %v2055
        %v2070 = vpack.c.bf16 %v2058, %v2057
        %v2071 = vpack.c.bf16 %v2060, %v2059
        %v2072 = vpack.c.bf16 %v2062, %v2061
        %v2073 = vpack.c.bf16 %v2064, %v2063
        %v2074 = vpack.c.bf16 %v2066, %v2065
        %v2076 = vsel %vm1130, %v2067, 0
        %v2079 = vsel %vm1130, %v2068, 0
        %v2082 = vsel %vm1130, %v2069, 0
        %v2085 = vsel %vm1130, %v2070, 0
        %v2088 = vsel %vm1130, %v2071, 0
        %v2091 = vsel %vm1130, %v2072, 0
        %v2094 = vsel %vm1130, %v2073, 0
        %v2097 = vsel %vm1130, %v2074, 0
        %2099 = vmatpush.bf16.xpose.msra.mxu0 %v1443
        %2100 = vmatpush.bf16.xpose.msra.mxu0 %v1440
        %2101 = vmatpush.bf16.xpose.msra.mxu0 %v1437
        %2102 = vmatpush.bf16.xpose.msra.mxu0 %v1434
        %2103 = vmatpush.bf16.xpose.msra.mxu0 %v1431
        %2104 = vmatpush.bf16.xpose.msra.mxu0 %v1428
        %2105 = vmatpush.bf16.xpose.msra.mxu0 %v1425
        %2106 = vmatpush.bf16.xpose.msra.mxu0 %v1422
        %2107 = vmatmul.bf16.gmra.mxu0 %v2076
        %v2108 = vpop.f32.mrf.mxu0
        %v2109 = vadd.f32 %v1086, %v2108
        %v2110 = vpop.f32.mrf.mxu0
        %v2111 = vadd.f32 %v1087, %v2110
        %2112 = vmatmul.bf16.gmra.mxu0 %v2079
        %v2113 = vpop.f32.mrf.mxu0
        %v2114 = vadd.f32 %v1088, %v2113
        %v2115 = vpop.f32.mrf.mxu0
        %v2116 = vadd.f32 %v1089, %v2115
        %2117 = vmatmul.bf16.gmra.mxu0 %v2082
        %v2118 = vpop.f32.mrf.mxu0
        %v2119 = vadd.f32 %v1090, %v2118
        %v2120 = vpop.f32.mrf.mxu0
        %v2121 = vadd.f32 %v1091, %v2120
        %2122 = vmatmul.bf16.gmra.mxu0 %v2085
        %v2123 = vpop.f32.mrf.mxu0
        %v2124 = vadd.f32 %v1092, %v2123
        %v2125 = vpop.f32.mrf.mxu0
        %v2126 = vadd.f32 %v1093, %v2125
        %2127 = vmatmul.bf16.gmra.mxu0 %v2088
        %v2128 = vpop.f32.mrf.mxu0
        %v2129 = vadd.f32 %v1094, %v2128
        %v2130 = vpop.f32.mrf.mxu0
        %v2131 = vadd.f32 %v1095, %v2130
        %2132 = vmatmul.bf16.gmra.mxu0 %v2091
        %v2133 = vpop.f32.mrf.mxu0
        %v2134 = vadd.f32 %v1096, %v2133
        %v2135 = vpop.f32.mrf.mxu0
        %v2136 = vadd.f32 %v1097, %v2135
        %2137 = vmatmul.bf16.gmra.mxu0 %v2094
        %v2138 = vpop.f32.mrf.mxu0
        %v2139 = vadd.f32 %v1098, %v2138
        %v2140 = vpop.f32.mrf.mxu0
        %v2141 = vadd.f32 %v1099, %v2140
        %2142 = vmatmul.bf16.gmra.mxu0 %v2097
        %v2143 = vpop.f32.mrf.mxu0
        %v2144 = vadd.f32 %v1100, %v2143
        %v2145 = vpop.f32.mrf.mxu0
        %v2146 = vadd.f32 %v1101, %v2145
        %2147 = vdwg.mxu0
        %2148 = vmax.xlane.f32.xlu0 %v2109
        %v2149 = vpop.xlane.xlu0 %2148
        %2150 = vmax.xlane.f32.xlu0 %v2111
        %v2151 = vpop.xlane.xlu0 %2150
        %2152 = vmax.xlane.f32.xlu0 %v2114
        %v2153 = vpop.xlane.xlu0 %2152
        %2154 = vmax.xlane.f32.xlu0 %v2116
        %v2155 = vpop.xlane.xlu0 %2154
        %2156 = vmax.xlane.f32.xlu0 %v2119
        %v2157 = vpop.xlane.xlu0 %2156
        %2158 = vmax.xlane.f32.xlu0 %v2121
        %v2159 = vpop.xlane.xlu0 %2158
        %2160 = vmax.xlane.f32.xlu0 %v2124
        %v2161 = vpop.xlane.xlu0 %2160
        %2162 = vmax.xlane.f32.xlu0 %v2126
        %v2163 = vpop.xlane.xlu0 %2162
        %2164 = vmax.xlane.f32.xlu0 %v2129
        %v2165 = vpop.xlane.xlu0 %2164
        %2166 = vmax.xlane.f32.xlu0 %v2131
        %v2167 = vpop.xlane.xlu0 %2166
        %2168 = vmax.xlane.f32.xlu0 %v2134
        %v2169 = vpop.xlane.xlu0 %2168
        %2170 = vmax.xlane.f32.xlu0 %v2136
        %v2171 = vpop.xlane.xlu0 %2170
        %2172 = vmax.xlane.f32.xlu0 %v2139
        %v2173 = vpop.xlane.xlu0 %2172
        %2174 = vmax.xlane.f32.xlu0 %v2141
        %v2175 = vpop.xlane.xlu0 %2174
        %2176 = vmax.xlane.f32.xlu0 %v2144
        %v2177 = vpop.xlane.xlu0 %2176
        %2178 = vmax.xlane.f32.xlu0 %v2146
        %v2179 = vpop.xlane.xlu0 %2178
        %v2180 = vsub.f32 %v2109, %v2149
        %v2181 = vsub.f32 %v2111, %v2151
        %v2182 = vsub.f32 %v2114, %v2153
        %v2183 = vsub.f32 %v2116, %v2155
        %v2184 = vsub.f32 %v2119, %v2157
        %v2185 = vsub.f32 %v2121, %v2159
        %v2186 = vsub.f32 %v2124, %v2161
        %v2187 = vsub.f32 %v2126, %v2163
        %v2188 = vsub.f32 %v2129, %v2165
        %v2189 = vsub.f32 %v2131, %v2167
        %v2190 = vsub.f32 %v2134, %v2169
        %v2191 = vsub.f32 %v2136, %v2171
        %v2192 = vsub.f32 %v2139, %v2173
        %v2193 = vsub.f32 %v2141, %v2175
        %v2194 = vsub.f32 %v2144, %v2177
        %v2195 = vsub.f32 %v2146, %v2179
        %v2196 = vmul.f32 %v2180, 1.442695
        %v2197 = vpow.pop %v2196
        %v2198 = vmul.f32 %v2181, 1.442695
        %v2199 = vpow.pop %v2198
        %v2200 = vmul.f32 %v2182, 1.442695
        %v2201 = vpow.pop %v2200
        %v2202 = vmul.f32 %v2183, 1.442695
        %v2203 = vpow.pop %v2202
        %v2204 = vmul.f32 %v2184, 1.442695
        %v2205 = vpow.pop %v2204
        %v2206 = vmul.f32 %v2185, 1.442695
        %v2207 = vpow.pop %v2206
        %v2208 = vmul.f32 %v2186, 1.442695
        %v2209 = vpow.pop %v2208
        %v2210 = vmul.f32 %v2187, 1.442695
        %v2211 = vpow.pop %v2210
        %v2212 = vmul.f32 %v2188, 1.442695
        %v2213 = vpow.pop %v2212
        %v2214 = vmul.f32 %v2189, 1.442695
        %v2215 = vpow.pop %v2214
        %v2216 = vmul.f32 %v2190, 1.442695
        %v2217 = vpow.pop %v2216
        %v2218 = vmul.f32 %v2191, 1.442695
        %v2219 = vpow.pop %v2218
        %v2220 = vmul.f32 %v2192, 1.442695
        %v2221 = vpow.pop %v2220
        %v2222 = vmul.f32 %v2193, 1.442695
        %v2223 = vpow.pop %v2222
        %v2224 = vmul.f32 %v2194, 1.442695
        %v2225 = vpow.pop %v2224
        %v2226 = vmul.f32 %v2195, 1.442695
        %v2227 = vpow.pop %v2226
        %2228 = vadd.xlane.f32.xlu0 %v2197
        %v2229 = vpop.xlane.xlu0 %2228
        %2230 = vadd.xlane.f32.xlu0 %v2199
        %v2231 = vpop.xlane.xlu0 %2230
        %2232 = vadd.xlane.f32.xlu0 %v2201
        %v2233 = vpop.xlane.xlu0 %2232
        %2234 = vadd.xlane.f32.xlu0 %v2203
        %v2235 = vpop.xlane.xlu0 %2234
        %2236 = vadd.xlane.f32.xlu0 %v2205
        %v2237 = vpop.xlane.xlu0 %2236
        %2238 = vadd.xlane.f32.xlu0 %v2207
        %v2239 = vpop.xlane.xlu0 %2238
        %2240 = vadd.xlane.f32.xlu0 %v2209
        %v2241 = vpop.xlane.xlu0 %2240
        %2242 = vadd.xlane.f32.xlu0 %v2211
        %v2243 = vpop.xlane.xlu0 %2242
        %2244 = vadd.xlane.f32.xlu0 %v2213
        %v2245 = vpop.xlane.xlu0 %2244
        %2246 = vadd.xlane.f32.xlu0 %v2215
        %v2247 = vpop.xlane.xlu0 %2246
        %2248 = vadd.xlane.f32.xlu0 %v2217
        %v2249 = vpop.xlane.xlu0 %2248
        %2250 = vadd.xlane.f32.xlu0 %v2219
        %v2251 = vpop.xlane.xlu0 %2250
        %2252 = vadd.xlane.f32.xlu0 %v2221
        %v2253 = vpop.xlane.xlu0 %2252
        %2254 = vadd.xlane.f32.xlu0 %v2223
        %v2255 = vpop.xlane.xlu0 %2254
        %2256 = vadd.xlane.f32.xlu0 %v2225
        %v2257 = vpop.xlane.xlu0 %2256
        %2258 = vadd.xlane.f32.xlu0 %v2227
        %v2259 = vpop.xlane.xlu0 %2258
        %v2260 = vrcp.pop %v2229
        %v2261 = vrcp.pop %v2231
        %v2262 = vrcp.pop %v2233
        %v2263 = vrcp.pop %v2235
        %v2264 = vrcp.pop %v2237
        %v2265 = vrcp.pop %v2239
        %v2266 = vrcp.pop %v2241
        %v2267 = vrcp.pop %v2243
        %v2268 = vrcp.pop %v2245
        %v2269 = vrcp.pop %v2247
        %v2270 = vrcp.pop %v2249
        %v2271 = vrcp.pop %v2251
        %v2272 = vrcp.pop %v2253
        %v2273 = vrcp.pop %v2255
        %v2274 = vrcp.pop %v2257
        %v2275 = vrcp.pop %v2259
        %v2276 = vmul.f32 %v2197, %v2260
        %v2277 = vmul.f32 %v2199, %v2261
        %v2278 = vmul.f32 %v2201, %v2262
        %v2279 = vmul.f32 %v2203, %v2263
        %v2280 = vmul.f32 %v2205, %v2264
        %v2281 = vmul.f32 %v2207, %v2265
        %v2282 = vmul.f32 %v2209, %v2266
        %v2283 = vmul.f32 %v2211, %v2267
        %v2284 = vmul.f32 %v2213, %v2268
        %v2285 = vmul.f32 %v2215, %v2269
        %v2286 = vmul.f32 %v2217, %v2270
        %v2287 = vmul.f32 %v2219, %v2271
        %v2288 = vmul.f32 %v2221, %v2272
        %v2289 = vmul.f32 %v2223, %v2273
        %v2290 = vmul.f32 %v2225, %v2274
        %v2291 = vmul.f32 %v2227, %v2275
        %v2292 = vpack.c.bf16 %v2277, %v2276
        %v2293 = vpack.c.bf16 %v2279, %v2278
        %v2294 = vpack.c.bf16 %v2281, %v2280
        %v2295 = vpack.c.bf16 %v2283, %v2282
        %v2296 = vpack.c.bf16 %v2285, %v2284
        %v2297 = vpack.c.bf16 %v2287, %v2286
        %v2298 = vpack.c.bf16 %v2289, %v2288
        %v2299 = vpack.c.bf16 %v2291, %v2290
        %v2300 = vmul.f32 %v1319, %v2050
        %v2301 = vmul.f32 %v1321, %v2050
        %v2302 = vmul.f32 %v1324, %v2050
        %v2303 = vmul.f32 %v1326, %v2050
        %v2304 = vmul.f32 %v1329, %v2050
        %v2305 = vmul.f32 %v1331, %v2050
        %v2306 = vmul.f32 %v1334, %v2050
        %v2307 = vmul.f32 %v1336, %v2050
        %v2308 = vmul.f32 %v1339, %v2050
        %v2309 = vmul.f32 %v1341, %v2050
        %v2310 = vmul.f32 %v1344, %v2050
        %v2311 = vmul.f32 %v1346, %v2050
        %v2312 = vmul.f32 %v1349, %v2050
        %v2313 = vmul.f32 %v1351, %v2050
        %v2314 = vmul.f32 %v1354, %v2050
        %v2315 = vmul.f32 %v1356, %v2050
        %v2316 = vpack.c.bf16 %v2301, %v2300
        %v2317 = vpack.c.bf16 %v2303, %v2302
        %v2318 = vpack.c.bf16 %v2305, %v2304
        %v2319 = vpack.c.bf16 %v2307, %v2306
        %v2320 = vpack.c.bf16 %v2309, %v2308
        %v2321 = vpack.c.bf16 %v2311, %v2310
        %v2322 = vpack.c.bf16 %v2313, %v2312
        %v2323 = vpack.c.bf16 %v2315, %v2314
        %2324 = vmatpush.bf16.msra.mxu0 %v2323
        %2325 = vmatpush.bf16.msra.mxu0 %v2322
        %2326 = vmatpush.bf16.msra.mxu0 %v2321
        %2327 = vmatpush.bf16.msra.mxu0 %v2320
        %2328 = vmatpush.bf16.msra.mxu0 %v2319
        %2329 = vmatpush.bf16.msra.mxu0 %v2318
        %2330 = vmatpush.bf16.msra.mxu0 %v2317
        %2331 = vmatpush.bf16.msra.mxu0 %v2316
        %2332 = vmatmul.bf16.gmra.mxu0 %v2292
        %v2333 = vpop.f32.mrf.mxu0
        %v2334 = vadd.f32 0.0, %v2333
        %v2335 = vpop.f32.mrf.mxu0
        %v2336 = vadd.f32 0.0, %v2335
        %2337 = vmatmul.bf16.gmra.mxu0 %v2293
        %v2338 = vpop.f32.mrf.mxu0
        %v2339 = vadd.f32 0.0, %v2338
        %v2340 = vpop.f32.mrf.mxu0
        %v2341 = vadd.f32 0.0, %v2340
        %2342 = vmatmul.bf16.gmra.mxu0 %v2294
        %v2343 = vpop.f32.mrf.mxu0
        %v2344 = vadd.f32 0.0, %v2343
        %v2345 = vpop.f32.mrf.mxu0
        %v2346 = vadd.f32 0.0, %v2345
        %2347 = vmatmul.bf16.gmra.mxu0 %v2295
        %v2348 = vpop.f32.mrf.mxu0
        %v2349 = vadd.f32 0.0, %v2348
        %v2350 = vpop.f32.mrf.mxu0
        %v2351 = vadd.f32 0.0, %v2350
        %2352 = vmatmul.bf16.gmra.mxu0 %v2296
        %v2353 = vpop.f32.mrf.mxu0
        %v2354 = vadd.f32 0.0, %v2353
        %v2355 = vpop.f32.mrf.mxu0
        %v2356 = vadd.f32 0.0, %v2355
        %2357 = vmatmul.bf16.gmra.mxu0 %v2297
        %v2358 = vpop.f32.mrf.mxu0
        %v2359 = vadd.f32 0.0, %v2358
        %v2360 = vpop.f32.mrf.mxu0
        %v2361 = vadd.f32 0.0, %v2360
        %2362 = vmatmul.bf16.gmra.mxu0 %v2298
        %v2363 = vpop.f32.mrf.mxu0
        %v2364 = vadd.f32 0.0, %v2363
        %v2365 = vpop.f32.mrf.mxu0
        %v2366 = vadd.f32 0.0, %v2365
        %2367 = vmatmul.bf16.gmra.mxu0 %v2299
        %v2368 = vpop.f32.mrf.mxu0
        %v2369 = vadd.f32 0.0, %v2368
        %v2370 = vpop.f32.mrf.mxu0
        %v2371 = vadd.f32 0.0, %v2370
        %2372 = vdwg.mxu0
        %v2373 = vadd.f32 %v2007, %v2334
        %v2374 = vadd.f32 %v2009, %v2336
        %v2375 = vadd.f32 %v2012, %v2339
        %v2376 = vadd.f32 %v2014, %v2341
        %v2377 = vadd.f32 %v2017, %v2344
        %v2378 = vadd.f32 %v2019, %v2346
        %v2379 = vadd.f32 %v2022, %v2349
        %v2380 = vadd.f32 %v2024, %v2351
        %v2381 = vadd.f32 %v2027, %v2354
        %v2382 = vadd.f32 %v2029, %v2356
        %v2383 = vadd.f32 %v2032, %v2359
        %v2384 = vadd.f32 %v2034, %v2361
        %v2385 = vadd.f32 %v2037, %v2364
        %v2386 = vadd.f32 %v2039, %v2366
        %v2387 = vadd.f32 %v2042, %v2369
        %v2388 = vadd.f32 %v2044, %v2371
        %vm2389 = vcmp.ge.s32.totalorder %v1367, 24
        %vm2390 = vcmp.lt.s32.totalorder %v1367, 32
        %vm2391 = vmand %vm2389, %vm2390
        %v2392 = vsel %vm2391, 1, 0
        %v2393 = vcvt.s32.f32 %v2392
        %v2394 = vmul.f32 %v1204, %v2393
        %v2395 = vmul.f32 %v1205, %v2393
        %v2396 = vmul.f32 %v1206, %v2393
        %v2397 = vmul.f32 %v1207, %v2393
        %v2398 = vmul.f32 %v1208, %v2393
        %v2399 = vmul.f32 %v1209, %v2393
        %v2400 = vmul.f32 %v1210, %v2393
        %v2401 = vmul.f32 %v1211, %v2393
        %v2402 = vmul.f32 %v1212, %v2393
        %v2403 = vmul.f32 %v1213, %v2393
        %v2404 = vmul.f32 %v1214, %v2393
        %v2405 = vmul.f32 %v1215, %v2393
        %v2406 = vmul.f32 %v1216, %v2393
        %v2407 = vmul.f32 %v1217, %v2393
        %v2408 = vmul.f32 %v1218, %v2393
        %v2409 = vmul.f32 %v1219, %v2393
        %v2410 = vpack.c.bf16 %v2395, %v2394
        %v2411 = vpack.c.bf16 %v2397, %v2396
        %v2412 = vpack.c.bf16 %v2399, %v2398
        %v2413 = vpack.c.bf16 %v2401, %v2400
        %v2414 = vpack.c.bf16 %v2403, %v2402
        %v2415 = vpack.c.bf16 %v2405, %v2404
        %v2416 = vpack.c.bf16 %v2407, %v2406
        %v2417 = vpack.c.bf16 %v2409, %v2408
        %v2419 = vsel %vm1130, %v2410, 0
        %v2422 = vsel %vm1130, %v2411, 0
        %v2425 = vsel %vm1130, %v2412, 0
        %v2428 = vsel %vm1130, %v2413, 0
        %v2431 = vsel %vm1130, %v2414, 0
        %v2434 = vsel %vm1130, %v2415, 0
        %v2437 = vsel %vm1130, %v2416, 0
        %v2440 = vsel %vm1130, %v2417, 0
        %2442 = vmatpush.bf16.xpose.msra.mxu0 %v1443
        %2443 = vmatpush.bf16.xpose.msra.mxu0 %v1440
        %2444 = vmatpush.bf16.xpose.msra.mxu0 %v1437
        %2445 = vmatpush.bf16.xpose.msra.mxu0 %v1434
        %2446 = vmatpush.bf16.xpose.msra.mxu0 %v1431
        %2447 = vmatpush.bf16.xpose.msra.mxu0 %v1428
        %2448 = vmatpush.bf16.xpose.msra.mxu0 %v1425
        %2449 = vmatpush.bf16.xpose.msra.mxu0 %v1422
        %2450 = vmatmul.bf16.gmra.mxu0 %v2419
        %v2451 = vpop.f32.mrf.mxu0
        %v2452 = vadd.f32 %v1086, %v2451
        %v2453 = vpop.f32.mrf.mxu0
        %v2454 = vadd.f32 %v1087, %v2453
        %2455 = vmatmul.bf16.gmra.mxu0 %v2422
        %v2456 = vpop.f32.mrf.mxu0
        %v2457 = vadd.f32 %v1088, %v2456
        %v2458 = vpop.f32.mrf.mxu0
        %v2459 = vadd.f32 %v1089, %v2458
        %2460 = vmatmul.bf16.gmra.mxu0 %v2425
        %v2461 = vpop.f32.mrf.mxu0
        %v2462 = vadd.f32 %v1090, %v2461
        %v2463 = vpop.f32.mrf.mxu0
        %v2464 = vadd.f32 %v1091, %v2463
        %2465 = vmatmul.bf16.gmra.mxu0 %v2428
        %v2466 = vpop.f32.mrf.mxu0
        %v2467 = vadd.f32 %v1092, %v2466
        %v2468 = vpop.f32.mrf.mxu0
        %v2469 = vadd.f32 %v1093, %v2468
        %2470 = vmatmul.bf16.gmra.mxu0 %v2431
        %v2471 = vpop.f32.mrf.mxu0
        %v2472 = vadd.f32 %v1094, %v2471
        %v2473 = vpop.f32.mrf.mxu0
        %v2474 = vadd.f32 %v1095, %v2473
        %2475 = vmatmul.bf16.gmra.mxu0 %v2434
        %v2476 = vpop.f32.mrf.mxu0
        %v2477 = vadd.f32 %v1096, %v2476
        %v2478 = vpop.f32.mrf.mxu0
        %v2479 = vadd.f32 %v1097, %v2478
        %2480 = vmatmul.bf16.gmra.mxu0 %v2437
        %v2481 = vpop.f32.mrf.mxu0
        %v2482 = vadd.f32 %v1098, %v2481
        %v2483 = vpop.f32.mrf.mxu0
        %v2484 = vadd.f32 %v1099, %v2483
        %2485 = vmatmul.bf16.gmra.mxu0 %v2440
        %v2486 = vpop.f32.mrf.mxu0
        %v2487 = vadd.f32 %v1100, %v2486
        %v2488 = vpop.f32.mrf.mxu0
        %v2489 = vadd.f32 %v1101, %v2488
        %2490 = vdwg.mxu0
        %2491 = vmax.xlane.f32.xlu0 %v2452
        %v2492 = vpop.xlane.xlu0 %2491
        %2493 = vmax.xlane.f32.xlu0 %v2454
        %v2494 = vpop.xlane.xlu0 %2493
        %2495 = vmax.xlane.f32.xlu0 %v2457
        %v2496 = vpop.xlane.xlu0 %2495
        %2497 = vmax.xlane.f32.xlu0 %v2459
        %v2498 = vpop.xlane.xlu0 %2497
        %2499 = vmax.xlane.f32.xlu0 %v2462
        %v2500 = vpop.xlane.xlu0 %2499
        %2501 = vmax.xlane.f32.xlu0 %v2464
        %v2502 = vpop.xlane.xlu0 %2501
        %2503 = vmax.xlane.f32.xlu0 %v2467
        %v2504 = vpop.xlane.xlu0 %2503
        %2505 = vmax.xlane.f32.xlu0 %v2469
        %v2506 = vpop.xlane.xlu0 %2505
        %2507 = vmax.xlane.f32.xlu0 %v2472
        %v2508 = vpop.xlane.xlu0 %2507
        %2509 = vmax.xlane.f32.xlu0 %v2474
        %v2510 = vpop.xlane.xlu0 %2509
        %2511 = vmax.xlane.f32.xlu0 %v2477
        %v2512 = vpop.xlane.xlu0 %2511
        %2513 = vmax.xlane.f32.xlu0 %v2479
        %v2514 = vpop.xlane.xlu0 %2513
        %2515 = vmax.xlane.f32.xlu0 %v2482
        %v2516 = vpop.xlane.xlu0 %2515
        %2517 = vmax.xlane.f32.xlu0 %v2484
        %v2518 = vpop.xlane.xlu0 %2517
        %2519 = vmax.xlane.f32.xlu0 %v2487
        %v2520 = vpop.xlane.xlu0 %2519
        %2521 = vmax.xlane.f32.xlu0 %v2489
        %v2522 = vpop.xlane.xlu0 %2521
        %v2523 = vsub.f32 %v2452, %v2492
        %v2524 = vsub.f32 %v2454, %v2494
        %v2525 = vsub.f32 %v2457, %v2496
        %v2526 = vsub.f32 %v2459, %v2498
        %v2527 = vsub.f32 %v2462, %v2500
        %v2528 = vsub.f32 %v2464, %v2502
        %v2529 = vsub.f32 %v2467, %v2504
        %v2530 = vsub.f32 %v2469, %v2506
        %v2531 = vsub.f32 %v2472, %v2508
        %v2532 = vsub.f32 %v2474, %v2510
        %v2533 = vsub.f32 %v2477, %v2512
        %v2534 = vsub.f32 %v2479, %v2514
        %v2535 = vsub.f32 %v2482, %v2516
        %v2536 = vsub.f32 %v2484, %v2518
        %v2537 = vsub.f32 %v2487, %v2520
        %v2538 = vsub.f32 %v2489, %v2522
        %v2539 = vmul.f32 %v2523, 1.442695
        %v2540 = vpow.pop %v2539
        %v2541 = vmul.f32 %v2524, 1.442695
        %v2542 = vpow.pop %v2541
        %v2543 = vmul.f32 %v2525, 1.442695
        %v2544 = vpow.pop %v2543
        %v2545 = vmul.f32 %v2526, 1.442695
        %v2546 = vpow.pop %v2545
        %v2547 = vmul.f32 %v2527, 1.442695
        %v2548 = vpow.pop %v2547
        %v2549 = vmul.f32 %v2528, 1.442695
        %v2550 = vpow.pop %v2549
        %v2551 = vmul.f32 %v2529, 1.442695
        %v2552 = vpow.pop %v2551
        %v2553 = vmul.f32 %v2530, 1.442695
        %v2554 = vpow.pop %v2553
        %v2555 = vmul.f32 %v2531, 1.442695
        %v2556 = vpow.pop %v2555
        %v2557 = vmul.f32 %v2532, 1.442695
        %v2558 = vpow.pop %v2557
        %v2559 = vmul.f32 %v2533, 1.442695
        %v2560 = vpow.pop %v2559
        %v2561 = vmul.f32 %v2534, 1.442695
        %v2562 = vpow.pop %v2561
        %v2563 = vmul.f32 %v2535, 1.442695
        %v2564 = vpow.pop %v2563
        %v2565 = vmul.f32 %v2536, 1.442695
        %v2566 = vpow.pop %v2565
        %v2567 = vmul.f32 %v2537, 1.442695
        %v2568 = vpow.pop %v2567
        %v2569 = vmul.f32 %v2538, 1.442695
        %v2570 = vpow.pop %v2569
        %2571 = vadd.xlane.f32.xlu0 %v2540
        %v2572 = vpop.xlane.xlu0 %2571
        %2573 = vadd.xlane.f32.xlu0 %v2542
        %v2574 = vpop.xlane.xlu0 %2573
        %2575 = vadd.xlane.f32.xlu0 %v2544
        %v2576 = vpop.xlane.xlu0 %2575
        %2577 = vadd.xlane.f32.xlu0 %v2546
        %v2578 = vpop.xlane.xlu0 %2577
        %2579 = vadd.xlane.f32.xlu0 %v2548
        %v2580 = vpop.xlane.xlu0 %2579
        %2581 = vadd.xlane.f32.xlu0 %v2550
        %v2582 = vpop.xlane.xlu0 %2581
        %2583 = vadd.xlane.f32.xlu0 %v2552
        %v2584 = vpop.xlane.xlu0 %2583
        %2585 = vadd.xlane.f32.xlu0 %v2554
        %v2586 = vpop.xlane.xlu0 %2585
        %2587 = vadd.xlane.f32.xlu0 %v2556
        %v2588 = vpop.xlane.xlu0 %2587
        %2589 = vadd.xlane.f32.xlu0 %v2558
        %v2590 = vpop.xlane.xlu0 %2589
        %2591 = vadd.xlane.f32.xlu0 %v2560
        %v2592 = vpop.xlane.xlu0 %2591
        %2593 = vadd.xlane.f32.xlu0 %v2562
        %v2594 = vpop.xlane.xlu0 %2593
        %2595 = vadd.xlane.f32.xlu0 %v2564
        %v2596 = vpop.xlane.xlu0 %2595
        %2597 = vadd.xlane.f32.xlu0 %v2566
        %v2598 = vpop.xlane.xlu0 %2597
        %2599 = vadd.xlane.f32.xlu0 %v2568
        %v2600 = vpop.xlane.xlu0 %2599
        %2601 = vadd.xlane.f32.xlu0 %v2570
        %v2602 = vpop.xlane.xlu0 %2601
        %v2603 = vrcp.pop %v2572
        %v2604 = vrcp.pop %v2574
        %v2605 = vrcp.pop %v2576
        %v2606 = vrcp.pop %v2578
        %v2607 = vrcp.pop %v2580
        %v2608 = vrcp.pop %v2582
        %v2609 = vrcp.pop %v2584
        %v2610 = vrcp.pop %v2586
        %v2611 = vrcp.pop %v2588
        %v2612 = vrcp.pop %v2590
        %v2613 = vrcp.pop %v2592
        %v2614 = vrcp.pop %v2594
        %v2615 = vrcp.pop %v2596
        %v2616 = vrcp.pop %v2598
        %v2617 = vrcp.pop %v2600
        %v2618 = vrcp.pop %v2602
        %v2619 = vmul.f32 %v2540, %v2603
        %v2620 = vmul.f32 %v2542, %v2604
        %v2621 = vmul.f32 %v2544, %v2605
        %v2622 = vmul.f32 %v2546, %v2606
        %v2623 = vmul.f32 %v2548, %v2607
        %v2624 = vmul.f32 %v2550, %v2608
        %v2625 = vmul.f32 %v2552, %v2609
        %v2626 = vmul.f32 %v2554, %v2610
        %v2627 = vmul.f32 %v2556, %v2611
        %v2628 = vmul.f32 %v2558, %v2612
        %v2629 = vmul.f32 %v2560, %v2613
        %v2630 = vmul.f32 %v2562, %v2614
        %v2631 = vmul.f32 %v2564, %v2615
        %v2632 = vmul.f32 %v2566, %v2616
        %v2633 = vmul.f32 %v2568, %v2617
        %v2634 = vmul.f32 %v2570, %v2618
        %v2635 = vpack.c.bf16 %v2620, %v2619
        %v2636 = vpack.c.bf16 %v2622, %v2621
        %v2637 = vpack.c.bf16 %v2624, %v2623
        %v2638 = vpack.c.bf16 %v2626, %v2625
        %v2639 = vpack.c.bf16 %v2628, %v2627
        %v2640 = vpack.c.bf16 %v2630, %v2629
        %v2641 = vpack.c.bf16 %v2632, %v2631
        %v2642 = vpack.c.bf16 %v2634, %v2633
        %v2643 = vmul.f32 %v1319, %v2393
        %v2644 = vmul.f32 %v1321, %v2393
        %v2645 = vmul.f32 %v1324, %v2393
        %v2646 = vmul.f32 %v1326, %v2393
        %v2647 = vmul.f32 %v1329, %v2393
        %v2648 = vmul.f32 %v1331, %v2393
        %v2649 = vmul.f32 %v1334, %v2393
        %v2650 = vmul.f32 %v1336, %v2393
        %v2651 = vmul.f32 %v1339, %v2393
        %v2652 = vmul.f32 %v1341, %v2393
        %v2653 = vmul.f32 %v1344, %v2393
        %v2654 = vmul.f32 %v1346, %v2393
        %v2655 = vmul.f32 %v1349, %v2393
        %v2656 = vmul.f32 %v1351, %v2393
        %v2657 = vmul.f32 %v1354, %v2393
        %v2658 = vmul.f32 %v1356, %v2393
        %v2659 = vpack.c.bf16 %v2644, %v2643
        %v2660 = vpack.c.bf16 %v2646, %v2645
        %v2661 = vpack.c.bf16 %v2648, %v2647
        %v2662 = vpack.c.bf16 %v2650, %v2649
        %v2663 = vpack.c.bf16 %v2652, %v2651
        %v2664 = vpack.c.bf16 %v2654, %v2653
        %v2665 = vpack.c.bf16 %v2656, %v2655
        %v2666 = vpack.c.bf16 %v2658, %v2657
        %2667 = vmatpush.bf16.msra.mxu0 %v2666
        %2668 = vmatpush.bf16.msra.mxu0 %v2665
        %2669 = vmatpush.bf16.msra.mxu0 %v2664
        %2670 = vmatpush.bf16.msra.mxu0 %v2663
        %2671 = vmatpush.bf16.msra.mxu0 %v2662
        %2672 = vmatpush.bf16.msra.mxu0 %v2661
        %2673 = vmatpush.bf16.msra.mxu0 %v2660
        %2674 = vmatpush.bf16.msra.mxu0 %v2659
        %2675 = vmatmul.bf16.gmra.mxu0 %v2635
        %v2676 = vpop.f32.mrf.mxu0
        %v2677 = vadd.f32 0.0, %v2676
        %v2678 = vpop.f32.mrf.mxu0
        %v2679 = vadd.f32 0.0, %v2678
        %2680 = vmatmul.bf16.gmra.mxu0 %v2636
        %v2681 = vpop.f32.mrf.mxu0
        %v2682 = vadd.f32 0.0, %v2681
        %v2683 = vpop.f32.mrf.mxu0
        %v2684 = vadd.f32 0.0, %v2683
        %2685 = vmatmul.bf16.gmra.mxu0 %v2637
        %v2686 = vpop.f32.mrf.mxu0
        %v2687 = vadd.f32 0.0, %v2686
        %v2688 = vpop.f32.mrf.mxu0
        %v2689 = vadd.f32 0.0, %v2688
        %2690 = vmatmul.bf16.gmra.mxu0 %v2638
        %v2691 = vpop.f32.mrf.mxu0
        %v2692 = vadd.f32 0.0, %v2691
        %v2693 = vpop.f32.mrf.mxu0
        %v2694 = vadd.f32 0.0, %v2693
        %2695 = vmatmul.bf16.gmra.mxu0 %v2639
        %v2696 = vpop.f32.mrf.mxu0
        %v2697 = vadd.f32 0.0, %v2696
        %v2698 = vpop.f32.mrf.mxu0
        %v2699 = vadd.f32 0.0, %v2698
        %2700 = vmatmul.bf16.gmra.mxu0 %v2640
        %v2701 = vpop.f32.mrf.mxu0
        %v2702 = vadd.f32 0.0, %v2701
        %v2703 = vpop.f32.mrf.mxu0
        %v2704 = vadd.f32 0.0, %v2703
        %2705 = vmatmul.bf16.gmra.mxu0 %v2641
        %v2706 = vpop.f32.mrf.mxu0
        %v2707 = vadd.f32 0.0, %v2706
        %v2708 = vpop.f32.mrf.mxu0
        %v2709 = vadd.f32 0.0, %v2708
        %2710 = vmatmul.bf16.gmra.mxu0 %v2642
        %v2711 = vpop.f32.mrf.mxu0
        %v2712 = vadd.f32 0.0, %v2711
        %v2713 = vpop.f32.mrf.mxu0
        %v2714 = vadd.f32 0.0, %v2713
        %2715 = vdwg.mxu0
        %v2716 = vadd.f32 %v2373, %v2677
        %v2717 = vadd.f32 %v2374, %v2679
        %v2718 = vadd.f32 %v2375, %v2682
        %v2719 = vadd.f32 %v2376, %v2684
        %v2720 = vadd.f32 %v2377, %v2687
        %v2721 = vadd.f32 %v2378, %v2689
        %v2722 = vadd.f32 %v2379, %v2692
        %v2723 = vadd.f32 %v2380, %v2694
        %v2724 = vadd.f32 %v2381, %v2697
        %v2725 = vadd.f32 %v2382, %v2699
        %v2726 = vadd.f32 %v2383, %v2702
        %v2727 = vadd.f32 %v2384, %v2704
        %v2728 = vadd.f32 %v2385, %v2707
        %v2729 = vadd.f32 %v2386, %v2709
        %v2730 = vadd.f32 %v2387, %v2712
        %v2731 = vadd.f32 %v2388, %v2714
        %v2732 = vpack.c.bf16 %v2717, %v2716
        %v2733 = vpack.c.bf16 %v2719, %v2718
        %v2734 = vpack.c.bf16 %v2721, %v2720
        %v2735 = vpack.c.bf16 %v2723, %v2722
        %v2736 = vpack.c.bf16 %v2725, %v2724
        %v2737 = vpack.c.bf16 %v2727, %v2726
        %v2738 = vpack.c.bf16 %v2729, %v2728
        %v2739 = vpack.c.bf16 %v2731, %v2730
        %v2740 = vld [vmem:[%s23] sm:$0xf]
        %v2741 = vld [vmem:[%s23 + $0x4] sm:$0xf]
        %v2742 = vld [vmem:[%s23 + $0x8] sm:$0xf]
        %v2743 = vld [vmem:[%s23 + $0xc] sm:$0xf]
        %v2744 = vld [vmem:[%s25] sm:$0x1]
        %v2746 = vperm.slane %v2744, 0
        %v2752 = vunpack.c.l.b16 %v2740
        %v2753 = vunpack.c.l.b16 %v2741
        %v2754 = vunpack.c.l.b16 %v2742
        %v2755 = vunpack.c.l.b16 %v2743
        %v2756 = vpack.c.b16 %v2753, %v2752
        %v2757 = vpack.c.b16 %v2755, %v2754
        %v2761 = vsel %vm1130, %v2732, 0
        %v2764 = vsel %vm1130, %v2733, 0
        %v2767 = vsel %vm1130, %v2734, 0
        %v2770 = vsel %vm1130, %v2735, 0
        %v2773 = vsel %vm1130, %v2736, 0
        %v2776 = vsel %vm1130, %v2737, 0
        %v2779 = vsel %vm1130, %v2738, 0
        %v2782 = vsel %vm1130, %v2739, 0
        %2784 = vmatpush.bf16.msra.mxu0 0
        %2785 = vmatpush.bf16.msra.mxu0 0
        %2786 = vmatpush.bf16.msra.mxu0 0
        %2787 = vmatpush.bf16.msra.mxu0 0
        %2788 = vmatpush.bf16.msra.mxu0 0
        %2789 = vmatpush.bf16.msra.mxu0 0
        %2790 = vmatpush.bf16.msra.mxu0 %v2757
        %2791 = vmatpush.bf16.msra.mxu0 %v2756
        %2792 = vmatmul.bf16.gmra.mxu0 %v2761
        %v2793 = vpop.f32.mrf.mxu0
        %v2794 = vadd.f32 %v2746, %v2793
        %v2795 = vpop.f32.mrf.mxu0
        %v2796 = vadd.f32 %v2746, %v2795
        %2797 = vmatmul.bf16.gmra.mxu0 %v2764
        %v2798 = vpop.f32.mrf.mxu0
        %v2799 = vadd.f32 %v2746, %v2798
        %v2800 = vpop.f32.mrf.mxu0
        %v2801 = vadd.f32 %v2746, %v2800
        %2802 = vmatmul.bf16.gmra.mxu0 %v2767
        %v2803 = vpop.f32.mrf.mxu0
        %v2804 = vadd.f32 %v2746, %v2803
        %v2805 = vpop.f32.mrf.mxu0
        %v2806 = vadd.f32 %v2746, %v2805
        %2807 = vmatmul.bf16.gmra.mxu0 %v2770
        %v2808 = vpop.f32.mrf.mxu0
        %v2809 = vadd.f32 %v2746, %v2808
        %v2810 = vpop.f32.mrf.mxu0
        %v2811 = vadd.f32 %v2746, %v2810
        %2812 = vmatmul.bf16.gmra.mxu0 %v2773
        %v2813 = vpop.f32.mrf.mxu0
        %v2814 = vadd.f32 %v2746, %v2813
        %v2815 = vpop.f32.mrf.mxu0
        %v2816 = vadd.f32 %v2746, %v2815
        %2817 = vmatmul.bf16.gmra.mxu0 %v2776
        %v2818 = vpop.f32.mrf.mxu0
        %v2819 = vadd.f32 %v2746, %v2818
        %v2820 = vpop.f32.mrf.mxu0
        %v2821 = vadd.f32 %v2746, %v2820
        %2822 = vmatmul.bf16.gmra.mxu0 %v2779
        %v2823 = vpop.f32.mrf.mxu0
        %v2824 = vadd.f32 %v2746, %v2823
        %v2825 = vpop.f32.mrf.mxu0
        %v2826 = vadd.f32 %v2746, %v2825
        %2827 = vmatmul.bf16.gmra.mxu0 %v2782
        %v2828 = vpop.f32.mrf.mxu0
        %v2829 = vadd.f32 %v2746, %v2828
        %v2830 = vpop.f32.mrf.mxu0
        %v2831 = vadd.f32 %v2746, %v2830
        %2832 = vdwg.mxu0
        %v2833 = vadd.f32 %v1018, %v2794
        %v2834 = vadd.f32 %v1019, %v2796
        %v2835 = vadd.f32 %v1020, %v2799
        %v2836 = vadd.f32 %v1021, %v2801
        %v2837 = vadd.f32 %v1022, %v2804
        %v2838 = vadd.f32 %v1023, %v2806
        %v2839 = vadd.f32 %v1024, %v2809
        %v2840 = vadd.f32 %v1025, %v2811
        %v2841 = vadd.f32 %v1026, %v2814
        %v2842 = vadd.f32 %v1027, %v2816
        %v2843 = vadd.f32 %v1028, %v2819
        %v2844 = vadd.f32 %v1029, %v2821
        %v2845 = vadd.f32 %v1030, %v2824
        %v2846 = vadd.f32 %v1031, %v2826
        %v2847 = vadd.f32 %v1032, %v2829
        %v2848 = vadd.f32 %v1033, %v2831
        %v2849 = vld [vmem:[%s27] sm:$0x1]
        %v2850 = vld [vmem:[%s29] sm:$0x1]
        %v2851 = vsel %vm1130, %v2833, 0.0
        %2852 = vadd.xlane.f32.xlu0 %v2851
        %v2853 = vpop.xlane.xlu0 %2852
        %v2854 = vsel %vm1130, %v2834, 0.0
        %2855 = vadd.xlane.f32.xlu0 %v2854
        %v2856 = vpop.xlane.xlu0 %2855
        %v2857 = vsel %vm1130, %v2835, 0.0
        %2858 = vadd.xlane.f32.xlu0 %v2857
        %v2859 = vpop.xlane.xlu0 %2858
        %v2860 = vsel %vm1130, %v2836, 0.0
        %2861 = vadd.xlane.f32.xlu0 %v2860
        %v2862 = vpop.xlane.xlu0 %2861
        %v2863 = vsel %vm1130, %v2837, 0.0
        %2864 = vadd.xlane.f32.xlu0 %v2863
        %v2865 = vpop.xlane.xlu0 %2864
        %v2866 = vsel %vm1130, %v2838, 0.0
        %2867 = vadd.xlane.f32.xlu0 %v2866
        %v2868 = vpop.xlane.xlu0 %2867
        %v2869 = vsel %vm1130, %v2839, 0.0
        %2870 = vadd.xlane.f32.xlu0 %v2869
        %v2871 = vpop.xlane.xlu0 %2870
        %v2872 = vsel %vm1130, %v2840, 0.0
        %2873 = vadd.xlane.f32.xlu0 %v2872
        %v2874 = vpop.xlane.xlu0 %2873
        %v2875 = vsel %vm1130, %v2841, 0.0
        %2876 = vadd.xlane.f32.xlu0 %v2875
        %v2877 = vpop.xlane.xlu0 %2876
        %v2878 = vsel %vm1130, %v2842, 0.0
        %2879 = vadd.xlane.f32.xlu0 %v2878
        %v2880 = vpop.xlane.xlu0 %2879
        %v2881 = vsel %vm1130, %v2843, 0.0
        %2882 = vadd.xlane.f32.xlu0 %v2881
        %v2883 = vpop.xlane.xlu0 %2882
        %v2884 = vsel %vm1130, %v2844, 0.0
        %2885 = vadd.xlane.f32.xlu0 %v2884
        %v2886 = vpop.xlane.xlu0 %2885
        %v2887 = vsel %vm1130, %v2845, 0.0
        %2888 = vadd.xlane.f32.xlu0 %v2887
        %v2889 = vpop.xlane.xlu0 %2888
        %v2890 = vsel %vm1130, %v2846, 0.0
        %2891 = vadd.xlane.f32.xlu0 %v2890
        %v2892 = vpop.xlane.xlu0 %2891
        %v2893 = vsel %vm1130, %v2847, 0.0
        %2894 = vadd.xlane.f32.xlu0 %v2893
        %v2895 = vpop.xlane.xlu0 %2894
        %v2896 = vsel %vm1130, %v2848, 0.0
        %2897 = vadd.xlane.f32.xlu0 %v2896
        %v2898 = vpop.xlane.xlu0 %2897
        %v2899 = vrcp.pop 32.0
        %v2900 = vmul.f32 32.0, %v2899
        %v2901 = vsub.f32 1.0, %v2900
        %v2902 = vmul.f32 %v2899, %v2901
        %v2903 = vadd.f32 %v2899, %v2902
        %vm2904 = vweird.f32 %v2899
        %v2905 = vsel %vm2904, %v2899, %v2903
        %v2906 = vmul.f32 %v2853, %v2905
        %v2907 = vmul.f32 %v2856, %v2905
        %v2908 = vmul.f32 %v2859, %v2905
        %v2909 = vmul.f32 %v2862, %v2905
        %v2910 = vmul.f32 %v2865, %v2905
        %v2911 = vmul.f32 %v2868, %v2905
        %v2912 = vmul.f32 %v2871, %v2905
        %v2913 = vmul.f32 %v2874, %v2905
        %v2914 = vmul.f32 %v2877, %v2905
        %v2915 = vmul.f32 %v2880, %v2905
        %v2916 = vmul.f32 %v2883, %v2905
        %v2917 = vmul.f32 %v2886, %v2905
        %v2918 = vmul.f32 %v2889, %v2905
        %v2919 = vmul.f32 %v2892, %v2905
        %v2920 = vmul.f32 %v2895, %v2905
        %v2921 = vmul.f32 %v2898, %v2905
        %v2922 = vsub.f32 %v2833, %v2906
        %v2923 = vsub.f32 %v2834, %v2907
        %v2924 = vsub.f32 %v2835, %v2908
        %v2925 = vsub.f32 %v2836, %v2909
        %v2926 = vsub.f32 %v2837, %v2910
        %v2927 = vsub.f32 %v2838, %v2911
        %v2928 = vsub.f32 %v2839, %v2912
        %v2929 = vsub.f32 %v2840, %v2913
        %v2930 = vsub.f32 %v2841, %v2914
        %v2931 = vsub.f32 %v2842, %v2915
        %v2932 = vsub.f32 %v2843, %v2916
        %v2933 = vsub.f32 %v2844, %v2917
        %v2934 = vsub.f32 %v2845, %v2918
        %v2935 = vsub.f32 %v2846, %v2919
        %v2936 = vsub.f32 %v2847, %v2920
        %v2937 = vsub.f32 %v2848, %v2921
        %v2938 = vmul.f32 %v2922, %v2922
        %v2939 = vmul.f32 %v2923, %v2923
        %v2940 = vmul.f32 %v2924, %v2924
        %v2941 = vmul.f32 %v2925, %v2925
        %v2942 = vmul.f32 %v2926, %v2926
        %v2943 = vmul.f32 %v2927, %v2927
        %v2944 = vmul.f32 %v2928, %v2928
        %v2945 = vmul.f32 %v2929, %v2929
        %v2946 = vmul.f32 %v2930, %v2930
        %v2947 = vmul.f32 %v2931, %v2931
        %v2948 = vmul.f32 %v2932, %v2932
        %v2949 = vmul.f32 %v2933, %v2933
        %v2950 = vmul.f32 %v2934, %v2934
        %v2951 = vmul.f32 %v2935, %v2935
        %v2952 = vmul.f32 %v2936, %v2936
        %v2953 = vmul.f32 %v2937, %v2937
        %v2954 = vsel %vm1130, %v2938, 0.0
        %2955 = vadd.xlane.f32.xlu0 %v2954
        %v2956 = vpop.xlane.xlu0 %2955
        %v2957 = vsel %vm1130, %v2939, 0.0
        %2958 = vadd.xlane.f32.xlu0 %v2957
        %v2959 = vpop.xlane.xlu0 %2958
        %v2960 = vsel %vm1130, %v2940, 0.0
        %2961 = vadd.xlane.f32.xlu0 %v2960
        %v2962 = vpop.xlane.xlu0 %2961
        %v2963 = vsel %vm1130, %v2941, 0.0
        %2964 = vadd.xlane.f32.xlu0 %v2963
        %v2965 = vpop.xlane.xlu0 %2964
        %v2966 = vsel %vm1130, %v2942, 0.0
        %2967 = vadd.xlane.f32.xlu0 %v2966
        %v2968 = vpop.xlane.xlu0 %2967
        %v2969 = vsel %vm1130, %v2943, 0.0
        %2970 = vadd.xlane.f32.xlu0 %v2969
        %v2971 = vpop.xlane.xlu0 %2970
        %v2972 = vsel %vm1130, %v2944, 0.0
        %2973 = vadd.xlane.f32.xlu0 %v2972
        %v2974 = vpop.xlane.xlu0 %2973
        %v2975 = vsel %vm1130, %v2945, 0.0
        %2976 = vadd.xlane.f32.xlu0 %v2975
        %v2977 = vpop.xlane.xlu0 %2976
        %v2978 = vsel %vm1130, %v2946, 0.0
        %2979 = vadd.xlane.f32.xlu0 %v2978
        %v2980 = vpop.xlane.xlu0 %2979
        %v2981 = vsel %vm1130, %v2947, 0.0
        %2982 = vadd.xlane.f32.xlu0 %v2981
        %v2983 = vpop.xlane.xlu0 %2982
        %v2984 = vsel %vm1130, %v2948, 0.0
        %2985 = vadd.xlane.f32.xlu0 %v2984
        %v2986 = vpop.xlane.xlu0 %2985
        %v2987 = vsel %vm1130, %v2949, 0.0
        %2988 = vadd.xlane.f32.xlu0 %v2987
        %v2989 = vpop.xlane.xlu0 %2988
        %v2990 = vsel %vm1130, %v2950, 0.0
        %2991 = vadd.xlane.f32.xlu0 %v2990
        %v2992 = vpop.xlane.xlu0 %2991
        %v2993 = vsel %vm1130, %v2951, 0.0
        %2994 = vadd.xlane.f32.xlu0 %v2993
        %v2995 = vpop.xlane.xlu0 %2994
        %v2996 = vsel %vm1130, %v2952, 0.0
        %2997 = vadd.xlane.f32.xlu0 %v2996
        %v2998 = vpop.xlane.xlu0 %2997
        %v2999 = vsel %vm1130, %v2953, 0.0
        %3000 = vadd.xlane.f32.xlu0 %v2999
        %v3001 = vpop.xlane.xlu0 %3000
        %v3002 = vmul.f32 %v2956, %v2905
        %v3003 = vmul.f32 %v2959, %v2905
        %v3004 = vmul.f32 %v2962, %v2905
        %v3005 = vmul.f32 %v2965, %v2905
        %v3006 = vmul.f32 %v2968, %v2905
        %v3007 = vmul.f32 %v2971, %v2905
        %v3008 = vmul.f32 %v2974, %v2905
        %v3009 = vmul.f32 %v2977, %v2905
        %v3010 = vmul.f32 %v2980, %v2905
        %v3011 = vmul.f32 %v2983, %v2905
        %v3012 = vmul.f32 %v2986, %v2905
        %v3013 = vmul.f32 %v2989, %v2905
        %v3014 = vmul.f32 %v2992, %v2905
        %v3015 = vmul.f32 %v2995, %v2905
        %v3016 = vmul.f32 %v2998, %v2905
        %v3017 = vmul.f32 %v3001, %v2905
        %v3018 = vadd.f32 %v3002, 1e-05
        %v3019 = vadd.f32 %v3003, 1e-05
        %v3020 = vadd.f32 %v3004, 1e-05
        %v3021 = vadd.f32 %v3005, 1e-05
        %v3022 = vadd.f32 %v3006, 1e-05
        %v3023 = vadd.f32 %v3007, 1e-05
        %v3024 = vadd.f32 %v3008, 1e-05
        %v3025 = vadd.f32 %v3009, 1e-05
        %v3026 = vadd.f32 %v3010, 1e-05
        %v3027 = vadd.f32 %v3011, 1e-05
        %v3028 = vadd.f32 %v3012, 1e-05
        %v3029 = vadd.f32 %v3013, 1e-05
        %v3030 = vadd.f32 %v3014, 1e-05
        %v3031 = vadd.f32 %v3015, 1e-05
        %v3032 = vadd.f32 %v3016, 1e-05
        %v3033 = vadd.f32 %v3017, 1e-05
        %v3034 = vrsqrt.pop %v3018
        %v3035 = vmul.f32 %v3034, %v3018
        %v3036 = vmul.f32 %v3035, %v3034
        %v3037 = vmul.f32 0.5, %v3036
        %v3038 = vsub.f32 1.5, %v3037
        %v3039 = vmul.f32 %v3034, %v3038
        %vm3040 = vweird.f32 %v3018
        %vm3041 = vweird.f32 %v3034
        %vm3042 = vmor %vm3040, %vm3041
        %v3043 = vsel %vm3042, %v3034, %v3039
        %v3044 = vrsqrt.pop %v3019
        %v3045 = vmul.f32 %v3044, %v3019
        %v3046 = vmul.f32 %v3045, %v3044
        %v3047 = vmul.f32 0.5, %v3046
        %v3048 = vsub.f32 1.5, %v3047
        %v3049 = vmul.f32 %v3044, %v3048
        %vm3050 = vweird.f32 %v3019
        %vm3051 = vweird.f32 %v3044
        %vm3052 = vmor %vm3050, %vm3051
        %v3053 = vsel %vm3052, %v3044, %v3049
        %v3054 = vrsqrt.pop %v3020
        %v3055 = vmul.f32 %v3054, %v3020
        %v3056 = vmul.f32 %v3055, %v3054
        %v3057 = vmul.f32 0.5, %v3056
        %v3058 = vsub.f32 1.5, %v3057
        %v3059 = vmul.f32 %v3054, %v3058
        %vm3060 = vweird.f32 %v3020
        %vm3061 = vweird.f32 %v3054
        %vm3062 = vmor %vm3060, %vm3061
        %v3063 = vsel %vm3062, %v3054, %v3059
        %v3064 = vrsqrt.pop %v3021
        %v3065 = vmul.f32 %v3064, %v3021
        %v3066 = vmul.f32 %v3065, %v3064
        %v3067 = vmul.f32 0.5, %v3066
        %v3068 = vsub.f32 1.5, %v3067
        %v3069 = vmul.f32 %v3064, %v3068
        %vm3070 = vweird.f32 %v3021
        %vm3071 = vweird.f32 %v3064
        %vm3072 = vmor %vm3070, %vm3071
        %v3073 = vsel %vm3072, %v3064, %v3069
        %v3074 = vrsqrt.pop %v3022
        %v3075 = vmul.f32 %v3074, %v3022
        %v3076 = vmul.f32 %v3075, %v3074
        %v3077 = vmul.f32 0.5, %v3076
        %v3078 = vsub.f32 1.5, %v3077
        %v3079 = vmul.f32 %v3074, %v3078
        %vm3080 = vweird.f32 %v3022
        %vm3081 = vweird.f32 %v3074
        %vm3082 = vmor %vm3080, %vm3081
        %v3083 = vsel %vm3082, %v3074, %v3079
        %v3084 = vrsqrt.pop %v3023
        %v3085 = vmul.f32 %v3084, %v3023
        %v3086 = vmul.f32 %v3085, %v3084
        %v3087 = vmul.f32 0.5, %v3086
        %v3088 = vsub.f32 1.5, %v3087
        %v3089 = vmul.f32 %v3084, %v3088
        %vm3090 = vweird.f32 %v3023
        %vm3091 = vweird.f32 %v3084
        %vm3092 = vmor %vm3090, %vm3091
        %v3093 = vsel %vm3092, %v3084, %v3089
        %v3094 = vrsqrt.pop %v3024
        %v3095 = vmul.f32 %v3094, %v3024
        %v3096 = vmul.f32 %v3095, %v3094
        %v3097 = vmul.f32 0.5, %v3096
        %v3098 = vsub.f32 1.5, %v3097
        %v3099 = vmul.f32 %v3094, %v3098
        %vm3100 = vweird.f32 %v3024
        %vm3101 = vweird.f32 %v3094
        %vm3102 = vmor %vm3100, %vm3101
        %v3103 = vsel %vm3102, %v3094, %v3099
        %v3104 = vrsqrt.pop %v3025
        %v3105 = vmul.f32 %v3104, %v3025
        %v3106 = vmul.f32 %v3105, %v3104
        %v3107 = vmul.f32 0.5, %v3106
        %v3108 = vsub.f32 1.5, %v3107
        %v3109 = vmul.f32 %v3104, %v3108
        %vm3110 = vweird.f32 %v3025
        %vm3111 = vweird.f32 %v3104
        %vm3112 = vmor %vm3110, %vm3111
        %v3113 = vsel %vm3112, %v3104, %v3109
        %v3114 = vrsqrt.pop %v3026
        %v3115 = vmul.f32 %v3114, %v3026
        %v3116 = vmul.f32 %v3115, %v3114
        %v3117 = vmul.f32 0.5, %v3116
        %v3118 = vsub.f32 1.5, %v3117
        %v3119 = vmul.f32 %v3114, %v3118
        %vm3120 = vweird.f32 %v3026
        %vm3121 = vweird.f32 %v3114
        %vm3122 = vmor %vm3120, %vm3121
        %v3123 = vsel %vm3122, %v3114, %v3119
        %v3124 = vrsqrt.pop %v3027
        %v3125 = vmul.f32 %v3124, %v3027
        %v3126 = vmul.f32 %v3125, %v3124
        %v3127 = vmul.f32 0.5, %v3126
        %v3128 = vsub.f32 1.5, %v3127
        %v3129 = vmul.f32 %v3124, %v3128
        %vm3130 = vweird.f32 %v3027
        %vm3131 = vweird.f32 %v3124
        %vm3132 = vmor %vm3130, %vm3131
        %v3133 = vsel %vm3132, %v3124, %v3129
        %v3134 = vrsqrt.pop %v3028
        %v3135 = vmul.f32 %v3134, %v3028
        %v3136 = vmul.f32 %v3135, %v3134
        %v3137 = vmul.f32 0.5, %v3136
        %v3138 = vsub.f32 1.5, %v3137
        %v3139 = vmul.f32 %v3134, %v3138
        %vm3140 = vweird.f32 %v3028
        %vm3141 = vweird.f32 %v3134
        %vm3142 = vmor %vm3140, %vm3141
        %v3143 = vsel %vm3142, %v3134, %v3139
        %v3144 = vrsqrt.pop %v3029
        %v3145 = vmul.f32 %v3144, %v3029
        %v3146 = vmul.f32 %v3145, %v3144
        %v3147 = vmul.f32 0.5, %v3146
        %v3148 = vsub.f32 1.5, %v3147
        %v3149 = vmul.f32 %v3144, %v3148
        %vm3150 = vweird.f32 %v3029
        %vm3151 = vweird.f32 %v3144
        %vm3152 = vmor %vm3150, %vm3151
        %v3153 = vsel %vm3152, %v3144, %v3149
        %v3154 = vrsqrt.pop %v3030
        %v3155 = vmul.f32 %v3154, %v3030
        %v3156 = vmul.f32 %v3155, %v3154
        %v3157 = vmul.f32 0.5, %v3156
        %v3158 = vsub.f32 1.5, %v3157
        %v3159 = vmul.f32 %v3154, %v3158
        %vm3160 = vweird.f32 %v3030
        %vm3161 = vweird.f32 %v3154
        %vm3162 = vmor %vm3160, %vm3161
        %v3163 = vsel %vm3162, %v3154, %v3159
        %v3164 = vrsqrt.pop %v3031
        %v3165 = vmul.f32 %v3164, %v3031
        %v3166 = vmul.f32 %v3165, %v3164
        %v3167 = vmul.f32 0.5, %v3166
        %v3168 = vsub.f32 1.5, %v3167
        %v3169 = vmul.f32 %v3164, %v3168
        %vm3170 = vweird.f32 %v3031
        %vm3171 = vweird.f32 %v3164
        %vm3172 = vmor %vm3170, %vm3171
        %v3173 = vsel %vm3172, %v3164, %v3169
        %v3174 = vrsqrt.pop %v3032
        %v3175 = vmul.f32 %v3174, %v3032
        %v3176 = vmul.f32 %v3175, %v3174
        %v3177 = vmul.f32 0.5, %v3176
        %v3178 = vsub.f32 1.5, %v3177
        %v3179 = vmul.f32 %v3174, %v3178
        %vm3180 = vweird.f32 %v3032
        %vm3181 = vweird.f32 %v3174
        %vm3182 = vmor %vm3180, %vm3181
        %v3183 = vsel %vm3182, %v3174, %v3179
        %v3184 = vrsqrt.pop %v3033
        %v3185 = vmul.f32 %v3184, %v3033
        %v3186 = vmul.f32 %v3185, %v3184
        %v3187 = vmul.f32 0.5, %v3186
        %v3188 = vsub.f32 1.5, %v3187
        %v3189 = vmul.f32 %v3184, %v3188
        %vm3190 = vweird.f32 %v3033
        %vm3191 = vweird.f32 %v3184
        %vm3192 = vmor %vm3190, %vm3191
        %v3193 = vsel %vm3192, %v3184, %v3189
        %v3194 = vmul.f32 %v2922, %v3043
        %v3195 = vmul.f32 %v2923, %v3053
        %v3196 = vmul.f32 %v2924, %v3063
        %v3197 = vmul.f32 %v2925, %v3073
        %v3198 = vmul.f32 %v2926, %v3083
        %v3199 = vmul.f32 %v2927, %v3093
        %v3200 = vmul.f32 %v2928, %v3103
        %v3201 = vmul.f32 %v2929, %v3113
        %v3202 = vmul.f32 %v2930, %v3123
        %v3203 = vmul.f32 %v2931, %v3133
        %v3204 = vmul.f32 %v2932, %v3143
        %v3205 = vmul.f32 %v2933, %v3153
        %v3206 = vmul.f32 %v2934, %v3163
        %v3207 = vmul.f32 %v2935, %v3173
        %v3208 = vmul.f32 %v2936, %v3183
        %v3209 = vmul.f32 %v2937, %v3193
        %v3211 = vperm.slane %v2849, 0
        %v3213 = vmul.f32 %v3194, %v3211
        %v3214 = vmul.f32 %v3195, %v3211
        %v3215 = vmul.f32 %v3196, %v3211
        %v3216 = vmul.f32 %v3197, %v3211
        %v3217 = vmul.f32 %v3198, %v3211
        %v3218 = vmul.f32 %v3199, %v3211
        %v3219 = vmul.f32 %v3200, %v3211
        %v3220 = vmul.f32 %v3201, %v3211
        %v3221 = vmul.f32 %v3202, %v3211
        %v3222 = vmul.f32 %v3203, %v3211
        %v3223 = vmul.f32 %v3204, %v3211
        %v3224 = vmul.f32 %v3205, %v3211
        %v3225 = vmul.f32 %v3206, %v3211
        %v3226 = vmul.f32 %v3207, %v3211
        %v3227 = vmul.f32 %v3208, %v3211
        %v3228 = vmul.f32 %v3209, %v3211
        %v3230 = vperm.slane %v2850, 0
        %v3232 = vadd.f32 %v3213, %v3230
        %v3233 = vadd.f32 %v3214, %v3230
        %v3234 = vadd.f32 %v3215, %v3230
        %v3235 = vadd.f32 %v3216, %v3230
        %v3236 = vadd.f32 %v3217, %v3230
        %v3237 = vadd.f32 %v3218, %v3230
        %v3238 = vadd.f32 %v3219, %v3230
        %v3239 = vadd.f32 %v3220, %v3230
        %v3240 = vadd.f32 %v3221, %v3230
        %v3241 = vadd.f32 %v3222, %v3230
        %v3242 = vadd.f32 %v3223, %v3230
        %v3243 = vadd.f32 %v3224, %v3230
        %v3244 = vadd.f32 %v3225, %v3230
        %v3245 = vadd.f32 %v3226, %v3230
        %v3246 = vadd.f32 %v3227, %v3230
        %v3247 = vadd.f32 %v3228, %v3230
        %v3248 = vpack.c.bf16 %v3233, %v3232
        %v3249 = vpack.c.bf16 %v3235, %v3234
        %v3250 = vpack.c.bf16 %v3237, %v3236
        %v3251 = vpack.c.bf16 %v3239, %v3238
        %v3252 = vpack.c.bf16 %v3241, %v3240
        %v3253 = vpack.c.bf16 %v3243, %v3242
        %v3254 = vpack.c.bf16 %v3245, %v3244
        %v3255 = vpack.c.bf16 %v3247, %v3246
        %v3256 = vld [vmem:[%s31] sm:$0xf]
        %v3257 = vld [vmem:[%s31 + $0x4] sm:$0xf]
        %v3258 = vld [vmem:[%s31 + $0x8] sm:$0xf]
        %v3259 = vld [vmem:[%s31 + $0xc] sm:$0xf]
        %v3260 = vld [vmem:[%s33] sm:$0x1]
        %v3262 = vperm.slane %v3260, 0
        %v3268 = vunpack.c.l.b16 %v3256
        %v3269 = vunpack.c.l.b16 %v3257
        %v3270 = vunpack.c.l.b16 %v3258
        %v3271 = vunpack.c.l.b16 %v3259
        %v3272 = vpack.c.b16 %v3269, %v3268
        %v3273 = vpack.c.b16 %v3271, %v3270
        %v3277 = vsel %vm1130, %v3248, 0
        %v3280 = vsel %vm1130, %v3249, 0
        %v3283 = vsel %vm1130, %v3250, 0
        %v3286 = vsel %vm1130, %v3251, 0
        %v3289 = vsel %vm1130, %v3252, 0
        %v3292 = vsel %vm1130, %v3253, 0
        %v3295 = vsel %vm1130, %v3254, 0
        %v3298 = vsel %vm1130, %v3255, 0
        %3300 = vmatpush.bf16.msra.mxu0 0
        %3301 = vmatpush.bf16.msra.mxu0 0
        %3302 = vmatpush.bf16.msra.mxu0 0
        %3303 = vmatpush.bf16.msra.mxu0 0
        %3304 = vmatpush.bf16.msra.mxu0 0
        %3305 = vmatpush.bf16.msra.mxu0 0
        %3306 = vmatpush.bf16.msra.mxu0 %v3273
        %3307 = vmatpush.bf16.msra.mxu0 %v3272
        %3308 = vmatmul.bf16.gmra.mxu0 %v3277
        %v3309 = vpop.f32.mrf.mxu0
        %v3310 = vadd.f32 %v3262, %v3309
        %v3311 = vpop.f32.mrf.mxu0
        %v3312 = vadd.f32 %v3262, %v3311
        %3313 = vmatmul.bf16.gmra.mxu0 %v3280
        %v3314 = vpop.f32.mrf.mxu0
        %v3315 = vadd.f32 %v3262, %v3314
        %v3316 = vpop.f32.mrf.mxu0
        %v3317 = vadd.f32 %v3262, %v3316
        %3318 = vmatmul.bf16.gmra.mxu0 %v3283
        %v3319 = vpop.f32.mrf.mxu0
        %v3320 = vadd.f32 %v3262, %v3319
        %v3321 = vpop.f32.mrf.mxu0
        %v3322 = vadd.f32 %v3262, %v3321
        %3323 = vmatmul.bf16.gmra.mxu0 %v3286
        %v3324 = vpop.f32.mrf.mxu0
        %v3325 = vadd.f32 %v3262, %v3324
        %v3326 = vpop.f32.mrf.mxu0
        %v3327 = vadd.f32 %v3262, %v3326
        %3328 = vmatmul.bf16.gmra.mxu0 %v3289
        %v3329 = vpop.f32.mrf.mxu0
        %v3330 = vadd.f32 %v3262, %v3329
        %v3331 = vpop.f32.mrf.mxu0
        %v3332 = vadd.f32 %v3262, %v3331
        %3333 = vmatmul.bf16.gmra.mxu0 %v3292
        %v3334 = vpop.f32.mrf.mxu0
        %v3335 = vadd.f32 %v3262, %v3334
        %v3336 = vpop.f32.mrf.mxu0
        %v3337 = vadd.f32 %v3262, %v3336
        %3338 = vmatmul.bf16.gmra.mxu0 %v3295
        %v3339 = vpop.f32.mrf.mxu0
        %v3340 = vadd.f32 %v3262, %v3339
        %v3341 = vpop.f32.mrf.mxu0
        %v3342 = vadd.f32 %v3262, %v3341
        %3343 = vmatmul.bf16.gmra.mxu0 %v3298
        %v3344 = vpop.f32.mrf.mxu0
        %v3345 = vadd.f32 %v3262, %v3344
        %v3346 = vpop.f32.mrf.mxu0
        %v3347 = vadd.f32 %v3262, %v3346
        %3348 = vdwg.mxu0
        %v3349 = vmax.f32 %v3310, 0.0
        %v3350 = vmax.f32 %v3312, 0.0
        %v3351 = vmax.f32 %v3315, 0.0
        %v3352 = vmax.f32 %v3317, 0.0
        %v3353 = vmax.f32 %v3320, 0.0
        %v3354 = vmax.f32 %v3322, 0.0
        %v3355 = vmax.f32 %v3325, 0.0
        %v3356 = vmax.f32 %v3327, 0.0
        %v3357 = vmax.f32 %v3330, 0.0
        %v3358 = vmax.f32 %v3332, 0.0
        %v3359 = vmax.f32 %v3335, 0.0
        %v3360 = vmax.f32 %v3337, 0.0
        %v3361 = vmax.f32 %v3340, 0.0
        %v3362 = vmax.f32 %v3342, 0.0
        %v3363 = vmax.f32 %v3345, 0.0
        %v3364 = vmax.f32 %v3347, 0.0
        %v3365 = vpack.c.bf16 %v3350, %v3349
        %v3366 = vpack.c.bf16 %v3352, %v3351
        %v3367 = vpack.c.bf16 %v3354, %v3353
        %v3368 = vpack.c.bf16 %v3356, %v3355
        %v3369 = vpack.c.bf16 %v3358, %v3357
        %v3370 = vpack.c.bf16 %v3360, %v3359
        %v3371 = vpack.c.bf16 %v3362, %v3361
        %v3372 = vpack.c.bf16 %v3364, %v3363
        %v3373 = vld [vmem:[%s35] sm:$0xf]
        %v3374 = vld [vmem:[%s35 + $0x4] sm:$0xf]
        %v3375 = vld [vmem:[%s35 + $0x8] sm:$0xf]
        %v3376 = vld [vmem:[%s35 + $0xc] sm:$0xf]
        %v3377 = vld [vmem:[%s35 + $0x10] sm:$0xf]
        %v3378 = vld [vmem:[%s35 + $0x14] sm:$0xf]
        %v3379 = vld [vmem:[%s35 + $0x18] sm:$0xf]
        %v3380 = vld [vmem:[%s35 + $0x1c] sm:$0xf]
        %v3381 = vld [vmem:[%s37] sm:$0x1]
        %v3383 = vperm.slane %v3381, 0
        %v3393 = vunpack.c.l.b16 %v3373
        %v3394 = vunpack.c.l.b16 %v3374
        %v3395 = vunpack.c.l.b16 %v3375
        %v3396 = vunpack.c.l.b16 %v3376
        %v3397 = vunpack.c.l.b16 %v3377
        %v3398 = vunpack.c.l.b16 %v3378
        %v3399 = vunpack.c.l.b16 %v3379
        %v3400 = vunpack.c.l.b16 %v3380
        %v3401 = vpack.c.b16 %v3394, %v3393
        %v3402 = vpack.c.b16 %v3396, %v3395
        %v3403 = vpack.c.b16 %v3398, %v3397
        %v3404 = vpack.c.b16 %v3400, %v3399
        %vm3409 = vcmask 523264
        %v3411 = vsel %vm3409, %v3365, 0
        %v3414 = vsel %vm3409, %v3366, 0
        %v3417 = vsel %vm3409, %v3367, 0
        %v3420 = vsel %vm3409, %v3368, 0
        %v3423 = vsel %vm3409, %v3369, 0
        %v3426 = vsel %vm3409, %v3370, 0
        %v3429 = vsel %vm3409, %v3371, 0
        %v3432 = vsel %vm3409, %v3372, 0
        %3434 = vmatpush.bf16.msra.mxu0 0
        %3435 = vmatpush.bf16.msra.mxu0 0
        %3436 = vmatpush.bf16.msra.mxu0 0
        %3437 = vmatpush.bf16.msra.mxu0 0
        %3438 = vmatpush.bf16.msra.mxu0 %v3404
        %3439 = vmatpush.bf16.msra.mxu0 %v3403
        %3440 = vmatpush.bf16.msra.mxu0 %v3402
        %3441 = vmatpush.bf16.msra.mxu0 %v3401
        %3442 = vmatmul.bf16.gmra.mxu0 %v3411
        %v3443 = vpop.f32.mrf.mxu0
        %v3444 = vadd.f32 %v3383, %v3443
        %v3445 = vpop.f32.mrf.mxu0
        %v3446 = vadd.f32 %v3383, %v3445
        %3447 = vmatmul.bf16.gmra.mxu0 %v3414
        %v3448 = vpop.f32.mrf.mxu0
        %v3449 = vadd.f32 %v3383, %v3448
        %v3450 = vpop.f32.mrf.mxu0
        %v3451 = vadd.f32 %v3383, %v3450
        %3452 = vmatmul.bf16.gmra.mxu0 %v3417
        %v3453 = vpop.f32.mrf.mxu0
        %v3454 = vadd.f32 %v3383, %v3453
        %v3455 = vpop.f32.mrf.mxu0
        %v3456 = vadd.f32 %v3383, %v3455
        %3457 = vmatmul.bf16.gmra.mxu0 %v3420
        %v3458 = vpop.f32.mrf.mxu0
        %v3459 = vadd.f32 %v3383, %v3458
        %v3460 = vpop.f32.mrf.mxu0
        %v3461 = vadd.f32 %v3383, %v3460
        %3462 = vmatmul.bf16.gmra.mxu0 %v3423
        %v3463 = vpop.f32.mrf.mxu0
        %v3464 = vadd.f32 %v3383, %v3463
        %v3465 = vpop.f32.mrf.mxu0
        %v3466 = vadd.f32 %v3383, %v3465
        %3467 = vmatmul.bf16.gmra.mxu0 %v3426
        %v3468 = vpop.f32.mrf.mxu0
        %v3469 = vadd.f32 %v3383, %v3468
        %v3470 = vpop.f32.mrf.mxu0
        %v3471 = vadd.f32 %v3383, %v3470
        %3472 = vmatmul.bf16.gmra.mxu0 %v3429
        %v3473 = vpop.f32.mrf.mxu0
        %v3474 = vadd.f32 %v3383, %v3473
        %v3475 = vpop.f32.mrf.mxu0
        %v3476 = vadd.f32 %v3383, %v3475
        %3477 = vmatmul.bf16.gmra.mxu0 %v3432
        %v3478 = vpop.f32.mrf.mxu0
        %v3479 = vadd.f32 %v3383, %v3478
        %v3480 = vpop.f32.mrf.mxu0
        %v3481 = vadd.f32 %v3383, %v3480
        %3482 = vdwg.mxu0
        %v3483 = vadd.f32 %v3232, %v3444
        %v3484 = vadd.f32 %v3233, %v3446
        %v3485 = vadd.f32 %v3234, %v3449
        %v3486 = vadd.f32 %v3235, %v3451
        %v3487 = vadd.f32 %v3236, %v3454
        %v3488 = vadd.f32 %v3237, %v3456
        %v3489 = vadd.f32 %v3238, %v3459
        %v3490 = vadd.f32 %v3239, %v3461
        %v3491 = vadd.f32 %v3240, %v3464
        %v3492 = vadd.f32 %v3241, %v3466
        %v3493 = vadd.f32 %v3242, %v3469
        %v3494 = vadd.f32 %v3243, %v3471
        %v3495 = vadd.f32 %v3244, %v3474
        %v3496 = vadd.f32 %v3245, %v3476
        %v3497 = vadd.f32 %v3246, %v3479
        %v3498 = vadd.f32 %v3247, %v3481
        %v3499 = vld [vmem:[%s39] sm:$0x1]
        %v3500 = vld [vmem:[%s41] sm:$0x1]
        %v3501 = vsel %vm1130, %v3483, 0.0
        %3502 = vadd.xlane.f32.xlu0 %v3501
        %v3503 = vpop.xlane.xlu0 %3502
        %v3504 = vsel %vm1130, %v3484, 0.0
        %3505 = vadd.xlane.f32.xlu0 %v3504
        %v3506 = vpop.xlane.xlu0 %3505
        %v3507 = vsel %vm1130, %v3485, 0.0
        %3508 = vadd.xlane.f32.xlu0 %v3507
        %v3509 = vpop.xlane.xlu0 %3508
        %v3510 = vsel %vm1130, %v3486, 0.0
        %3511 = vadd.xlane.f32.xlu0 %v3510
        %v3512 = vpop.xlane.xlu0 %3511
        %v3513 = vsel %vm1130, %v3487, 0.0
        %3514 = vadd.xlane.f32.xlu0 %v3513
        %v3515 = vpop.xlane.xlu0 %3514
        %v3516 = vsel %vm1130, %v3488, 0.0
        %3517 = vadd.xlane.f32.xlu0 %v3516
        %v3518 = vpop.xlane.xlu0 %3517
        %v3519 = vsel %vm1130, %v3489, 0.0
        %3520 = vadd.xlane.f32.xlu0 %v3519
        %v3521 = vpop.xlane.xlu0 %3520
        %v3522 = vsel %vm1130, %v3490, 0.0
        %3523 = vadd.xlane.f32.xlu0 %v3522
        %v3524 = vpop.xlane.xlu0 %3523
        %v3525 = vsel %vm1130, %v3491, 0.0
        %3526 = vadd.xlane.f32.xlu0 %v3525
        %v3527 = vpop.xlane.xlu0 %3526
        %v3528 = vsel %vm1130, %v3492, 0.0
        %3529 = vadd.xlane.f32.xlu0 %v3528
        %v3530 = vpop.xlane.xlu0 %3529
        %v3531 = vsel %vm1130, %v3493, 0.0
        %3532 = vadd.xlane.f32.xlu0 %v3531
        %v3533 = vpop.xlane.xlu0 %3532
        %v3534 = vsel %vm1130, %v3494, 0.0
        %3535 = vadd.xlane.f32.xlu0 %v3534
        %v3536 = vpop.xlane.xlu0 %3535
        %v3537 = vsel %vm1130, %v3495, 0.0
        %3538 = vadd.xlane.f32.xlu0 %v3537
        %v3539 = vpop.xlane.xlu0 %3538
        %v3540 = vsel %vm1130, %v3496, 0.0
        %3541 = vadd.xlane.f32.xlu0 %v3540
        %v3542 = vpop.xlane.xlu0 %3541
        %v3543 = vsel %vm1130, %v3497, 0.0
        %3544 = vadd.xlane.f32.xlu0 %v3543
        %v3545 = vpop.xlane.xlu0 %3544
        %v3546 = vsel %vm1130, %v3498, 0.0
        %3547 = vadd.xlane.f32.xlu0 %v3546
        %v3548 = vpop.xlane.xlu0 %3547
        %v3549 = vmul.f32 %v3503, %v2905
        %v3550 = vmul.f32 %v3506, %v2905
        %v3551 = vmul.f32 %v3509, %v2905
        %v3552 = vmul.f32 %v3512, %v2905
        %v3553 = vmul.f32 %v3515, %v2905
        %v3554 = vmul.f32 %v3518, %v2905
        %v3555 = vmul.f32 %v3521, %v2905
        %v3556 = vmul.f32 %v3524, %v2905
        %v3557 = vmul.f32 %v3527, %v2905
        %v3558 = vmul.f32 %v3530, %v2905
        %v3559 = vmul.f32 %v3533, %v2905
        %v3560 = vmul.f32 %v3536, %v2905
        %v3561 = vmul.f32 %v3539, %v2905
        %v3562 = vmul.f32 %v3542, %v2905
        %v3563 = vmul.f32 %v3545, %v2905
        %v3564 = vmul.f32 %v3548, %v2905
        %v3565 = vsub.f32 %v3483, %v3549
        %v3566 = vsub.f32 %v3484, %v3550
        %v3567 = vsub.f32 %v3485, %v3551
        %v3568 = vsub.f32 %v3486, %v3552
        %v3569 = vsub.f32 %v3487, %v3553
        %v3570 = vsub.f32 %v3488, %v3554
        %v3571 = vsub.f32 %v3489, %v3555
        %v3572 = vsub.f32 %v3490, %v3556
        %v3573 = vsub.f32 %v3491, %v3557
        %v3574 = vsub.f32 %v3492, %v3558
        %v3575 = vsub.f32 %v3493, %v3559
        %v3576 = vsub.f32 %v3494, %v3560
        %v3577 = vsub.f32 %v3495, %v3561
        %v3578 = vsub.f32 %v3496, %v3562
        %v3579 = vsub.f32 %v3497, %v3563
        %v3580 = vsub.f32 %v3498, %v3564
        %v3581 = vmul.f32 %v3565, %v3565
        %v3582 = vmul.f32 %v3566, %v3566
        %v3583 = vmul.f32 %v3567, %v3567
        %v3584 = vmul.f32 %v3568, %v3568
        %v3585 = vmul.f32 %v3569, %v3569
        %v3586 = vmul.f32 %v3570, %v3570
        %v3587 = vmul.f32 %v3571, %v3571
        %v3588 = vmul.f32 %v3572, %v3572
        %v3589 = vmul.f32 %v3573, %v3573
        %v3590 = vmul.f32 %v3574, %v3574
        %v3591 = vmul.f32 %v3575, %v3575
        %v3592 = vmul.f32 %v3576, %v3576
        %v3593 = vmul.f32 %v3577, %v3577
        %v3594 = vmul.f32 %v3578, %v3578
        %v3595 = vmul.f32 %v3579, %v3579
        %v3596 = vmul.f32 %v3580, %v3580
        %v3597 = vsel %vm1130, %v3581, 0.0
        %3598 = vadd.xlane.f32.xlu0 %v3597
        %v3599 = vpop.xlane.xlu0 %3598
        %v3600 = vsel %vm1130, %v3582, 0.0
        %3601 = vadd.xlane.f32.xlu0 %v3600
        %v3602 = vpop.xlane.xlu0 %3601
        %v3603 = vsel %vm1130, %v3583, 0.0
        %3604 = vadd.xlane.f32.xlu0 %v3603
        %v3605 = vpop.xlane.xlu0 %3604
        %v3606 = vsel %vm1130, %v3584, 0.0
        %3607 = vadd.xlane.f32.xlu0 %v3606
        %v3608 = vpop.xlane.xlu0 %3607
        %v3609 = vsel %vm1130, %v3585, 0.0
        %3610 = vadd.xlane.f32.xlu0 %v3609
        %v3611 = vpop.xlane.xlu0 %3610
        %v3612 = vsel %vm1130, %v3586, 0.0
        %3613 = vadd.xlane.f32.xlu0 %v3612
        %v3614 = vpop.xlane.xlu0 %3613
        %v3615 = vsel %vm1130, %v3587, 0.0
        %3616 = vadd.xlane.f32.xlu0 %v3615
        %v3617 = vpop.xlane.xlu0 %3616
        %v3618 = vsel %vm1130, %v3588, 0.0
        %3619 = vadd.xlane.f32.xlu0 %v3618
        %v3620 = vpop.xlane.xlu0 %3619
        %v3621 = vsel %vm1130, %v3589, 0.0
        %3622 = vadd.xlane.f32.xlu0 %v3621
        %v3623 = vpop.xlane.xlu0 %3622
        %v3624 = vsel %vm1130, %v3590, 0.0
        %3625 = vadd.xlane.f32.xlu0 %v3624
        %v3626 = vpop.xlane.xlu0 %3625
        %v3627 = vsel %vm1130, %v3591, 0.0
        %3628 = vadd.xlane.f32.xlu0 %v3627
        %v3629 = vpop.xlane.xlu0 %3628
        %v3630 = vsel %vm1130, %v3592, 0.0
        %3631 = vadd.xlane.f32.xlu0 %v3630
        %v3632 = vpop.xlane.xlu0 %3631
        %v3633 = vsel %vm1130, %v3593, 0.0
        %3634 = vadd.xlane.f32.xlu0 %v3633
        %v3635 = vpop.xlane.xlu0 %3634
        %v3636 = vsel %vm1130, %v3594, 0.0
        %3637 = vadd.xlane.f32.xlu0 %v3636
        %v3638 = vpop.xlane.xlu0 %3637
        %v3639 = vsel %vm1130, %v3595, 0.0
        %3640 = vadd.xlane.f32.xlu0 %v3639
        %v3641 = vpop.xlane.xlu0 %3640
        %v3642 = vsel %vm1130, %v3596, 0.0
        %3643 = vadd.xlane.f32.xlu0 %v3642
        %v3644 = vpop.xlane.xlu0 %3643
        %v3645 = vmul.f32 %v3599, %v2905
        %v3646 = vmul.f32 %v3602, %v2905
        %v3647 = vmul.f32 %v3605, %v2905
        %v3648 = vmul.f32 %v3608, %v2905
        %v3649 = vmul.f32 %v3611, %v2905
        %v3650 = vmul.f32 %v3614, %v2905
        %v3651 = vmul.f32 %v3617, %v2905
        %v3652 = vmul.f32 %v3620, %v2905
        %v3653 = vmul.f32 %v3623, %v2905
        %v3654 = vmul.f32 %v3626, %v2905
        %v3655 = vmul.f32 %v3629, %v2905
        %v3656 = vmul.f32 %v3632, %v2905
        %v3657 = vmul.f32 %v3635, %v2905
        %v3658 = vmul.f32 %v3638, %v2905
        %v3659 = vmul.f32 %v3641, %v2905
        %v3660 = vmul.f32 %v3644, %v2905
        %v3661 = vadd.f32 %v3645, 1e-05
        %v3662 = vadd.f32 %v3646, 1e-05
        %v3663 = vadd.f32 %v3647, 1e-05
        %v3664 = vadd.f32 %v3648, 1e-05
        %v3665 = vadd.f32 %v3649, 1e-05
        %v3666 = vadd.f32 %v3650, 1e-05
        %v3667 = vadd.f32 %v3651, 1e-05
        %v3668 = vadd.f32 %v3652, 1e-05
        %v3669 = vadd.f32 %v3653, 1e-05
        %v3670 = vadd.f32 %v3654, 1e-05
        %v3671 = vadd.f32 %v3655, 1e-05
        %v3672 = vadd.f32 %v3656, 1e-05
        %v3673 = vadd.f32 %v3657, 1e-05
        %v3674 = vadd.f32 %v3658, 1e-05
        %v3675 = vadd.f32 %v3659, 1e-05
        %v3676 = vadd.f32 %v3660, 1e-05
        %v3677 = vrsqrt.pop %v3661
        %v3678 = vmul.f32 %v3677, %v3661
        %v3679 = vmul.f32 %v3678, %v3677
        %v3680 = vmul.f32 0.5, %v3679
        %v3681 = vsub.f32 1.5, %v3680
        %v3682 = vmul.f32 %v3677, %v3681
        %vm3683 = vweird.f32 %v3661
        %vm3684 = vweird.f32 %v3677
        %vm3685 = vmor %vm3683, %vm3684
        %v3686 = vsel %vm3685, %v3677, %v3682
        %v3687 = vrsqrt.pop %v3662
        %v3688 = vmul.f32 %v3687, %v3662
        %v3689 = vmul.f32 %v3688, %v3687
        %v3690 = vmul.f32 0.5, %v3689
        %v3691 = vsub.f32 1.5, %v3690
        %v3692 = vmul.f32 %v3687, %v3691
        %vm3693 = vweird.f32 %v3662
        %vm3694 = vweird.f32 %v3687
        %vm3695 = vmor %vm3693, %vm3694
        %v3696 = vsel %vm3695, %v3687, %v3692
        %v3697 = vrsqrt.pop %v3663
        %v3698 = vmul.f32 %v3697, %v3663
        %v3699 = vmul.f32 %v3698, %v3697
        %v3700 = vmul.f32 0.5, %v3699
        %v3701 = vsub.f32 1.5, %v3700
        %v3702 = vmul.f32 %v3697, %v3701
        %vm3703 = vweird.f32 %v3663
        %vm3704 = vweird.f32 %v3697
        %vm3705 = vmor %vm3703, %vm3704
        %v3706 = vsel %vm3705, %v3697, %v3702
        %v3707 = vrsqrt.pop %v3664
        %v3708 = vmul.f32 %v3707, %v3664
        %v3709 = vmul.f32 %v3708, %v3707
        %v3710 = vmul.f32 0.5, %v3709
        %v3711 = vsub.f32 1.5, %v3710
        %v3712 = vmul.f32 %v3707, %v3711
        %vm3713 = vweird.f32 %v3664
        %vm3714 = vweird.f32 %v3707
        %vm3715 = vmor %vm3713, %vm3714
        %v3716 = vsel %vm3715, %v3707, %v3712
        %v3717 = vrsqrt.pop %v3665
        %v3718 = vmul.f32 %v3717, %v3665
        %v3719 = vmul.f32 %v3718, %v3717
        %v3720 = vmul.f32 0.5, %v3719
        %v3721 = vsub.f32 1.5, %v3720
        %v3722 = vmul.f32 %v3717, %v3721
        %vm3723 = vweird.f32 %v3665
        %vm3724 = vweird.f32 %v3717
        %vm3725 = vmor %vm3723, %vm3724
        %v3726 = vsel %vm3725, %v3717, %v3722
        %v3727 = vrsqrt.pop %v3666
        %v3728 = vmul.f32 %v3727, %v3666
        %v3729 = vmul.f32 %v3728, %v3727
        %v3730 = vmul.f32 0.5, %v3729
        %v3731 = vsub.f32 1.5, %v3730
        %v3732 = vmul.f32 %v3727, %v3731
        %vm3733 = vweird.f32 %v3666
        %vm3734 = vweird.f32 %v3727
        %vm3735 = vmor %vm3733, %vm3734
        %v3736 = vsel %vm3735, %v3727, %v3732
        %v3737 = vrsqrt.pop %v3667
        %v3738 = vmul.f32 %v3737, %v3667
        %v3739 = vmul.f32 %v3738, %v3737
        %v3740 = vmul.f32 0.5, %v3739
        %v3741 = vsub.f32 1.5, %v3740
        %v3742 = vmul.f32 %v3737, %v3741
        %vm3743 = vweird.f32 %v3667
        %vm3744 = vweird.f32 %v3737
        %vm3745 = vmor %vm3743, %vm3744
        %v3746 = vsel %vm3745, %v3737, %v3742
        %v3747 = vrsqrt.pop %v3668
        %v3748 = vmul.f32 %v3747, %v3668
        %v3749 = vmul.f32 %v3748, %v3747
        %v3750 = vmul.f32 0.5, %v3749
        %v3751 = vsub.f32 1.5, %v3750
        %v3752 = vmul.f32 %v3747, %v3751
        %vm3753 = vweird.f32 %v3668
        %vm3754 = vweird.f32 %v3747
        %vm3755 = vmor %vm3753, %vm3754
        %v3756 = vsel %vm3755, %v3747, %v3752
        %v3757 = vrsqrt.pop %v3669
        %v3758 = vmul.f32 %v3757, %v3669
        %v3759 = vmul.f32 %v3758, %v3757
        %v3760 = vmul.f32 0.5, %v3759
        %v3761 = vsub.f32 1.5, %v3760
        %v3762 = vmul.f32 %v3757, %v3761
        %vm3763 = vweird.f32 %v3669
        %vm3764 = vweird.f32 %v3757
        %vm3765 = vmor %vm3763, %vm3764
        %v3766 = vsel %vm3765, %v3757, %v3762
        %v3767 = vrsqrt.pop %v3670
        %v3768 = vmul.f32 %v3767, %v3670
        %v3769 = vmul.f32 %v3768, %v3767
        %v3770 = vmul.f32 0.5, %v3769
        %v3771 = vsub.f32 1.5, %v3770
        %v3772 = vmul.f32 %v3767, %v3771
        %vm3773 = vweird.f32 %v3670
        %vm3774 = vweird.f32 %v3767
        %vm3775 = vmor %vm3773, %vm3774
        %v3776 = vsel %vm3775, %v3767, %v3772
        %v3777 = vrsqrt.pop %v3671
        %v3778 = vmul.f32 %v3777, %v3671
        %v3779 = vmul.f32 %v3778, %v3777
        %v3780 = vmul.f32 0.5, %v3779
        %v3781 = vsub.f32 1.5, %v3780
        %v3782 = vmul.f32 %v3777, %v3781
        %vm3783 = vweird.f32 %v3671
        %vm3784 = vweird.f32 %v3777
        %vm3785 = vmor %vm3783, %vm3784
        %v3786 = vsel %vm3785, %v3777, %v3782
        %v3787 = vrsqrt.pop %v3672
        %v3788 = vmul.f32 %v3787, %v3672
        %v3789 = vmul.f32 %v3788, %v3787
        %v3790 = vmul.f32 0.5, %v3789
        %v3791 = vsub.f32 1.5, %v3790
        %v3792 = vmul.f32 %v3787, %v3791
        %vm3793 = vweird.f32 %v3672
        %vm3794 = vweird.f32 %v3787
        %vm3795 = vmor %vm3793, %vm3794
        %v3796 = vsel %vm3795, %v3787, %v3792
        %v3797 = vrsqrt.pop %v3673
        %v3798 = vmul.f32 %v3797, %v3673
        %v3799 = vmul.f32 %v3798, %v3797
        %v3800 = vmul.f32 0.5, %v3799
        %v3801 = vsub.f32 1.5, %v3800
        %v3802 = vmul.f32 %v3797, %v3801
        %vm3803 = vweird.f32 %v3673
        %vm3804 = vweird.f32 %v3797
        %vm3805 = vmor %vm3803, %vm3804
        %v3806 = vsel %vm3805, %v3797, %v3802
        %v3807 = vrsqrt.pop %v3674
        %v3808 = vmul.f32 %v3807, %v3674
        %v3809 = vmul.f32 %v3808, %v3807
        %v3810 = vmul.f32 0.5, %v3809
        %v3811 = vsub.f32 1.5, %v3810
        %v3812 = vmul.f32 %v3807, %v3811
        %vm3813 = vweird.f32 %v3674
        %vm3814 = vweird.f32 %v3807
        %vm3815 = vmor %vm3813, %vm3814
        %v3816 = vsel %vm3815, %v3807, %v3812
        %v3817 = vrsqrt.pop %v3675
        %v3818 = vmul.f32 %v3817, %v3675
        %v3819 = vmul.f32 %v3818, %v3817
        %v3820 = vmul.f32 0.5, %v3819
        %v3821 = vsub.f32 1.5, %v3820
        %v3822 = vmul.f32 %v3817, %v3821
        %vm3823 = vweird.f32 %v3675
        %vm3824 = vweird.f32 %v3817
        %vm3825 = vmor %vm3823, %vm3824
        %v3826 = vsel %vm3825, %v3817, %v3822
        %v3827 = vrsqrt.pop %v3676
        %v3828 = vmul.f32 %v3827, %v3676
        %v3829 = vmul.f32 %v3828, %v3827
        %v3830 = vmul.f32 0.5, %v3829
        %v3831 = vsub.f32 1.5, %v3830
        %v3832 = vmul.f32 %v3827, %v3831
        %vm3833 = vweird.f32 %v3676
        %vm3834 = vweird.f32 %v3827
        %vm3835 = vmor %vm3833, %vm3834
        %v3836 = vsel %vm3835, %v3827, %v3832
        %v3837 = vmul.f32 %v3565, %v3686
        %v3838 = vmul.f32 %v3566, %v3696
        %v3839 = vmul.f32 %v3567, %v3706
        %v3840 = vmul.f32 %v3568, %v3716
        %v3841 = vmul.f32 %v3569, %v3726
        %v3842 = vmul.f32 %v3570, %v3736
        %v3843 = vmul.f32 %v3571, %v3746
        %v3844 = vmul.f32 %v3572, %v3756
        %v3845 = vmul.f32 %v3573, %v3766
        %v3846 = vmul.f32 %v3574, %v3776
        %v3847 = vmul.f32 %v3575, %v3786
        %v3848 = vmul.f32 %v3576, %v3796
        %v3849 = vmul.f32 %v3577, %v3806
        %v3850 = vmul.f32 %v3578, %v3816
        %v3851 = vmul.f32 %v3579, %v3826
        %v3852 = vmul.f32 %v3580, %v3836
        %v3854 = vperm.slane %v3499, 0
        %v3856 = vmul.f32 %v3837, %v3854
        %v3857 = vmul.f32 %v3838, %v3854
        %v3858 = vmul.f32 %v3839, %v3854
        %v3859 = vmul.f32 %v3840, %v3854
        %v3860 = vmul.f32 %v3841, %v3854
        %v3861 = vmul.f32 %v3842, %v3854
        %v3862 = vmul.f32 %v3843, %v3854
        %v3863 = vmul.f32 %v3844, %v3854
        %v3864 = vmul.f32 %v3845, %v3854
        %v3865 = vmul.f32 %v3846, %v3854
        %v3866 = vmul.f32 %v3847, %v3854
        %v3867 = vmul.f32 %v3848, %v3854
        %v3868 = vmul.f32 %v3849, %v3854
        %v3869 = vmul.f32 %v3850, %v3854
        %v3870 = vmul.f32 %v3851, %v3854
        %v3871 = vmul.f32 %v3852, %v3854
        %v3873 = vperm.slane %v3500, 0
        %v3875 = vadd.f32 %v3856, %v3873
        %v3876 = vadd.f32 %v3857, %v3873
        %v3877 = vadd.f32 %v3858, %v3873
        %v3878 = vadd.f32 %v3859, %v3873
        %v3879 = vadd.f32 %v3860, %v3873
        %v3880 = vadd.f32 %v3861, %v3873
        %v3881 = vadd.f32 %v3862, %v3873
        %v3882 = vadd.f32 %v3863, %v3873
        %v3883 = vadd.f32 %v3864, %v3873
        %v3884 = vadd.f32 %v3865, %v3873
        %v3885 = vadd.f32 %v3866, %v3873
        %v3886 = vadd.f32 %v3867, %v3873
        %v3887 = vadd.f32 %v3868, %v3873
        %v3888 = vadd.f32 %v3869, %v3873
        %v3889 = vadd.f32 %v3870, %v3873
        %v3890 = vadd.f32 %v3871, %v3873
        %3892 = vset.pattern.permute.xlu0 0
        %3893 = vperm.xlu0 %3892, %v1050
        %v3894 = vpop.permute.xlu0 %3893
        %3897 = vset.pattern.permute.xlu0 0
        %3898 = vperm.xlu0 %3897, %v1051
        %v3899 = vpop.permute.xlu0 %3898
        %3902 = vset.pattern.permute.xlu0 0
        %3903 = vperm.xlu0 %3902, %v1052
        %v3904 = vpop.permute.xlu0 %3903
        %3907 = vset.pattern.permute.xlu0 0
        %3908 = vperm.xlu0 %3907, %v1053
        %v3909 = vpop.permute.xlu0 %3908
        %3912 = vset.pattern.permute.xlu0 0
        %3913 = vperm.xlu0 %3912, %v1054
        %v3914 = vpop.permute.xlu0 %3913
        %3917 = vset.pattern.permute.xlu0 0
        %3918 = vperm.xlu0 %3917, %v1055
        %v3919 = vpop.permute.xlu0 %3918
        %3922 = vset.pattern.permute.xlu0 0
        %3923 = vperm.xlu0 %3922, %v1056
        %v3924 = vpop.permute.xlu0 %3923
        %3927 = vset.pattern.permute.xlu0 0
        %3928 = vperm.xlu0 %3927, %v1057
        %v3929 = vpop.permute.xlu0 %3928
        %3932 = vset.pattern.permute.xlu0 0
        %3933 = vperm.xlu0 %3932, %v1058
        %v3934 = vpop.permute.xlu0 %3933
        %3937 = vset.pattern.permute.xlu0 0
        %3938 = vperm.xlu0 %3937, %v1059
        %v3939 = vpop.permute.xlu0 %3938
        %3942 = vset.pattern.permute.xlu0 0
        %3943 = vperm.xlu0 %3942, %v1060
        %v3944 = vpop.permute.xlu0 %3943
        %3947 = vset.pattern.permute.xlu0 0
        %3948 = vperm.xlu0 %3947, %v1061
        %v3949 = vpop.permute.xlu0 %3948
        %3952 = vset.pattern.permute.xlu0 0
        %3953 = vperm.xlu0 %3952, %v1062
        %v3954 = vpop.permute.xlu0 %3953
        %3957 = vset.pattern.permute.xlu0 0
        %3958 = vperm.xlu0 %3957, %v1063
        %v3959 = vpop.permute.xlu0 %3958
        %3962 = vset.pattern.permute.xlu0 0
        %3963 = vperm.xlu0 %3962, %v1064
        %v3964 = vpop.permute.xlu0 %3963
        %3967 = vset.pattern.permute.xlu0 0
        %3968 = vperm.xlu0 %3967, %v1065
        %v3969 = vpop.permute.xlu0 %3968
        %v3971 = vmul.f32 %v3875, %v3894
        %v3972 = vmul.f32 %v3876, %v3899
        %v3973 = vmul.f32 %v3877, %v3904
        %v3974 = vmul.f32 %v3878, %v3909
        %v3975 = vmul.f32 %v3879, %v3914
        %v3976 = vmul.f32 %v3880, %v3919
        %v3977 = vmul.f32 %v3881, %v3924
        %v3978 = vmul.f32 %v3882, %v3929
        %v3979 = vmul.f32 %v3883, %v3934
        %v3980 = vmul.f32 %v3884, %v3939
        %v3981 = vmul.f32 %v3885, %v3944
        %v3982 = vmul.f32 %v3886, %v3949
        %v3983 = vmul.f32 %v3887, %v3954
        %v3984 = vmul.f32 %v3888, %v3959
        %v3985 = vmul.f32 %v3889, %v3964
        %v3986 = vmul.f32 %v3890, %v3969
        %v3987 = vpack.c.bf16 %v1035, %v1034
        %v3988 = vpack.c.bf16 %v1037, %v1036
        %v3989 = vpack.c.bf16 %v1039, %v1038
        %v3990 = vpack.c.bf16 %v1041, %v1040
        %v3991 = vpack.c.bf16 %v1043, %v1042
        %v3992 = vpack.c.bf16 %v1045, %v1044
        %v3993 = vpack.c.bf16 %v1047, %v1046
        %v3994 = vpack.c.bf16 %v1049, %v1048
        %v3995 = vld [vmem:[%s43] sm:$0xf]
        %v3996 = vld [vmem:[%s43 + $0x4] sm:$0xf]
        %v3997 = vld [vmem:[%s43 + $0x8] sm:$0xf]
        %v3998 = vld [vmem:[%s43 + $0xc] sm:$0xf]
        %v3999 = vld [vmem:[%s45] sm:$0x1]
        %v4001 = vperm.slane %v3999, 0
        %v4007 = vunpack.c.l.b16 %v3995
        %v4008 = vunpack.c.l.b16 %v3996
        %v4009 = vunpack.c.l.b16 %v3997
        %v4010 = vunpack.c.l.b16 %v3998
        %v4011 = vpack.c.b16 %v4008, %v4007
        %v4012 = vpack.c.b16 %v4010, %v4009
        %v4016 = vsel %vm1130, %v3987, 0
        %v4019 = vsel %vm1130, %v3988, 0
        %v4022 = vsel %vm1130, %v3989, 0
        %v4025 = vsel %vm1130, %v3990, 0
        %v4028 = vsel %vm1130, %v3991, 0
        %v4031 = vsel %vm1130, %v3992, 0
        %v4034 = vsel %vm1130, %v3993, 0
        %v4037 = vsel %vm1130, %v3994, 0
        %4039 = vmatpush.bf16.msra.mxu0 0
        %4040 = vmatpush.bf16.msra.mxu0 0
        %4041 = vmatpush.bf16.msra.mxu0 0
        %4042 = vmatpush.bf16.msra.mxu0 0
        %4043 = vmatpush.bf16.msra.mxu0 0
        %4044 = vmatpush.bf16.msra.mxu0 0
        %4045 = vmatpush.bf16.msra.mxu0 %v4012
        %4046 = vmatpush.bf16.msra.mxu0 %v4011
        %4047 = vmatmul.bf16.gmra.mxu0 %v4016
        %v4048 = vpop.f32.mrf.mxu0
        %v4049 = vadd.f32 %v4001, %v4048
        %v4050 = vpop.f32.mrf.mxu0
        %v4051 = vadd.f32 %v4001, %v4050
        %4052 = vmatmul.bf16.gmra.mxu0 %v4019
        %v4053 = vpop.f32.mrf.mxu0
        %v4054 = vadd.f32 %v4001, %v4053
        %v4055 = vpop.f32.mrf.mxu0
        %v4056 = vadd.f32 %v4001, %v4055
        %4057 = vmatmul.bf16.gmra.mxu0 %v4022
        %v4058 = vpop.f32.mrf.mxu0
        %v4059 = vadd.f32 %v4001, %v4058
        %v4060 = vpop.f32.mrf.mxu0
        %v4061 = vadd.f32 %v4001, %v4060
        %4062 = vmatmul.bf16.gmra.mxu0 %v4025
        %v4063 = vpop.f32.mrf.mxu0
        %v4064 = vadd.f32 %v4001, %v4063
        %v4065 = vpop.f32.mrf.mxu0
        %v4066 = vadd.f32 %v4001, %v4065
        %4067 = vmatmul.bf16.gmra.mxu0 %v4028
        %v4068 = vpop.f32.mrf.mxu0
        %v4069 = vadd.f32 %v4001, %v4068
        %v4070 = vpop.f32.mrf.mxu0
        %v4071 = vadd.f32 %v4001, %v4070
        %4072 = vmatmul.bf16.gmra.mxu0 %v4031
        %v4073 = vpop.f32.mrf.mxu0
        %v4074 = vadd.f32 %v4001, %v4073
        %v4075 = vpop.f32.mrf.mxu0
        %v4076 = vadd.f32 %v4001, %v4075
        %4077 = vmatmul.bf16.gmra.mxu0 %v4034
        %v4078 = vpop.f32.mrf.mxu0
        %v4079 = vadd.f32 %v4001, %v4078
        %v4080 = vpop.f32.mrf.mxu0
        %v4081 = vadd.f32 %v4001, %v4080
        %4082 = vmatmul.bf16.gmra.mxu0 %v4037
        %v4083 = vpop.f32.mrf.mxu0
        %v4084 = vadd.f32 %v4001, %v4083
        %v4085 = vpop.f32.mrf.mxu0
        %v4086 = vadd.f32 %v4001, %v4085
        %4087 = vdwg.mxu0
        %v4088 = vmax.f32 %v4049, 0.0
        %v4089 = vmax.f32 %v4051, 0.0
        %v4090 = vmax.f32 %v4054, 0.0
        %v4091 = vmax.f32 %v4056, 0.0
        %v4092 = vmax.f32 %v4059, 0.0
        %v4093 = vmax.f32 %v4061, 0.0
        %v4094 = vmax.f32 %v4064, 0.0
        %v4095 = vmax.f32 %v4066, 0.0
        %v4096 = vmax.f32 %v4069, 0.0
        %v4097 = vmax.f32 %v4071, 0.0
        %v4098 = vmax.f32 %v4074, 0.0
        %v4099 = vmax.f32 %v4076, 0.0
        %v4100 = vmax.f32 %v4079, 0.0
        %v4101 = vmax.f32 %v4081, 0.0
        %v4102 = vmax.f32 %v4084, 0.0
        %v4103 = vmax.f32 %v4086, 0.0
        %v4104 = vpack.c.bf16 %v4089, %v4088
        %v4105 = vpack.c.bf16 %v4091, %v4090
        %v4106 = vpack.c.bf16 %v4093, %v4092
        %v4107 = vpack.c.bf16 %v4095, %v4094
        %v4108 = vpack.c.bf16 %v4097, %v4096
        %v4109 = vpack.c.bf16 %v4099, %v4098
        %v4110 = vpack.c.bf16 %v4101, %v4100
        %v4111 = vpack.c.bf16 %v4103, %v4102
        %v4112 = vld [vmem:[%s47] sm:$0xf]
        %v4113 = vld [vmem:[%s47 + $0x4] sm:$0xf]
        %v4114 = vld [vmem:[%s47 + $0x8] sm:$0xf]
        %v4115 = vld [vmem:[%s47 + $0xc] sm:$0xf]
        %v4116 = vld [vmem:[%s47 + $0x10] sm:$0xf]
        %v4117 = vld [vmem:[%s47 + $0x14] sm:$0xf]
        %v4118 = vld [vmem:[%s47 + $0x18] sm:$0xf]
        %v4119 = vld [vmem:[%s47 + $0x1c] sm:$0xf]
        %v4120 = vld [vmem:[%s49] sm:$0x1]
        %v4122 = vperm.slane %v4120, 0
        %v4132 = vunpack.c.l.b16 %v4112
        %v4133 = vunpack.c.l.b16 %v4113
        %v4134 = vunpack.c.l.b16 %v4114
        %v4135 = vunpack.c.l.b16 %v4115
        %v4136 = vunpack.c.l.b16 %v4116
        %v4137 = vunpack.c.l.b16 %v4117
        %v4138 = vunpack.c.l.b16 %v4118
        %v4139 = vunpack.c.l.b16 %v4119
        %v4140 = vpack.c.b16 %v4133, %v4132
        %v4141 = vpack.c.b16 %v4135, %v4134
        %v4142 = vpack.c.b16 %v4137, %v4136
        %v4143 = vpack.c.b16 %v4139, %v4138
        %v4149 = vsel %vm3409, %v4104, 0
        %v4152 = vsel %vm3409, %v4105, 0
        %v4155 = vsel %vm3409, %v4106, 0
        %v4158 = vsel %vm3409, %v4107, 0
        %v4161 = vsel %vm3409, %v4108, 0
        %v4164 = vsel %vm3409, %v4109, 0
        %v4167 = vsel %vm3409, %v4110, 0
        %v4170 = vsel %vm3409, %v4111, 0
        %4172 = vmatpush.bf16.msra.mxu0 0
        %4173 = vmatpush.bf16.msra.mxu0 0
        %4174 = vmatpush.bf16.msra.mxu0 0
        %4175 = vmatpush.bf16.msra.mxu0 0
        %4176 = vmatpush.bf16.msra.mxu0 %v4143
        %4177 = vmatpush.bf16.msra.mxu0 %v4142
        %4178 = vmatpush.bf16.msra.mxu0 %v4141
        %4179 = vmatpush.bf16.msra.mxu0 %v4140
        %4180 = vmatmul.bf16.gmra.mxu0 %v4149
        %v4181 = vpop.f32.mrf.mxu0
        %v4182 = vadd.f32 %v4122, %v4181
        %v4183 = vpop.f32.mrf.mxu0
        %v4184 = vadd.f32 %v4122, %v4183
        %4185 = vmatmul.bf16.gmra.mxu0 %v4152
        %v4186 = vpop.f32.mrf.mxu0
        %v4187 = vadd.f32 %v4122, %v4186
        %v4188 = vpop.f32.mrf.mxu0
        %v4189 = vadd.f32 %v4122, %v4188
        %4190 = vmatmul.bf16.gmra.mxu0 %v4155
        %v4191 = vpop.f32.mrf.mxu0
        %v4192 = vadd.f32 %v4122, %v4191
        %v4193 = vpop.f32.mrf.mxu0
        %v4194 = vadd.f32 %v4122, %v4193
        %4195 = vmatmul.bf16.gmra.mxu0 %v4158
        %v4196 = vpop.f32.mrf.mxu0
        %v4197 = vadd.f32 %v4122, %v4196
        %v4198 = vpop.f32.mrf.mxu0
        %v4199 = vadd.f32 %v4122, %v4198
        %4200 = vmatmul.bf16.gmra.mxu0 %v4161
        %v4201 = vpop.f32.mrf.mxu0
        %v4202 = vadd.f32 %v4122, %v4201
        %v4203 = vpop.f32.mrf.mxu0
        %v4204 = vadd.f32 %v4122, %v4203
        %4205 = vmatmul.bf16.gmra.mxu0 %v4164
        %v4206 = vpop.f32.mrf.mxu0
        %v4207 = vadd.f32 %v4122, %v4206
        %v4208 = vpop.f32.mrf.mxu0
        %v4209 = vadd.f32 %v4122, %v4208
        %4210 = vmatmul.bf16.gmra.mxu0 %v4167
        %v4211 = vpop.f32.mrf.mxu0
        %v4212 = vadd.f32 %v4122, %v4211
        %v4213 = vpop.f32.mrf.mxu0
        %v4214 = vadd.f32 %v4122, %v4213
        %4215 = vmatmul.bf16.gmra.mxu0 %v4170
        %v4216 = vpop.f32.mrf.mxu0
        %v4217 = vadd.f32 %v4122, %v4216
        %v4218 = vpop.f32.mrf.mxu0
        %v4219 = vadd.f32 %v4122, %v4218
        %4220 = vdwg.mxu0
        %v4221 = vpack.c.bf16 %v4184, %v4182
        %v4222 = vpack.c.bf16 %v4189, %v4187
        %v4223 = vpack.c.bf16 %v4194, %v4192
        %v4224 = vpack.c.bf16 %v4199, %v4197
        %v4225 = vpack.c.bf16 %v4204, %v4202
        %v4226 = vpack.c.bf16 %v4209, %v4207
        %v4227 = vpack.c.bf16 %v4214, %v4212
        %v4228 = vpack.c.bf16 %v4219, %v4217
        %v4229 = vmul.f32 %v4182, 0.17677669
        %v4230 = vmul.f32 %v4184, 0.17677669
        %v4231 = vmul.f32 %v4187, 0.17677669
        %v4232 = vmul.f32 %v4189, 0.17677669
        %v4233 = vmul.f32 %v4192, 0.17677669
        %v4234 = vmul.f32 %v4194, 0.17677669
        %v4235 = vmul.f32 %v4197, 0.17677669
        %v4236 = vmul.f32 %v4199, 0.17677669
        %v4237 = vmul.f32 %v4202, 0.17677669
        %v4238 = vmul.f32 %v4204, 0.17677669
        %v4239 = vmul.f32 %v4207, 0.17677669
        %v4240 = vmul.f32 %v4209, 0.17677669
        %v4241 = vmul.f32 %v4212, 0.17677669
        %v4242 = vmul.f32 %v4214, 0.17677669
        %v4243 = vmul.f32 %v4217, 0.17677669
        %v4244 = vmul.f32 %v4219, 0.17677669
        %v4245 = vpack.c.bf16 %v4230, %v4229
        %v4246 = vpack.c.bf16 %v4232, %v4231
        %v4247 = vpack.c.bf16 %v4234, %v4233
        %v4248 = vpack.c.bf16 %v4236, %v4235
        %v4249 = vpack.c.bf16 %v4238, %v4237
        %v4250 = vpack.c.bf16 %v4240, %v4239
        %v4251 = vpack.c.bf16 %v4242, %v4241
        %v4252 = vpack.c.bf16 %v4244, %v4243
        %v4254 = vsel %vm1130, %v4245, 0
        %v4257 = vsel %vm1130, %v4246, 0
        %v4260 = vsel %vm1130, %v4247, 0
        %v4263 = vsel %vm1130, %v4248, 0
        %v4266 = vsel %vm1130, %v4249, 0
        %v4269 = vsel %vm1130, %v4250, 0
        %v4272 = vsel %vm1130, %v4251, 0
        %v4275 = vsel %vm1130, %v4252, 0
        %v4278 = vsel %vm1130, %v4221, 0
        %v4281 = vsel %vm1130, %v4222, 0
        %v4284 = vsel %vm1130, %v4223, 0
        %v4287 = vsel %vm1130, %v4224, 0
        %v4290 = vsel %vm1130, %v4225, 0
        %v4293 = vsel %vm1130, %v4226, 0
        %v4296 = vsel %vm1130, %v4227, 0
        %v4299 = vsel %vm1130, %v4228, 0
        %4301 = vmatpush.bf16.xpose.msra.mxu0 %v4299
        %4302 = vmatpush.bf16.xpose.msra.mxu0 %v4296
        %4303 = vmatpush.bf16.xpose.msra.mxu0 %v4293
        %4304 = vmatpush.bf16.xpose.msra.mxu0 %v4290
        %4305 = vmatpush.bf16.xpose.msra.mxu0 %v4287
        %4306 = vmatpush.bf16.xpose.msra.mxu0 %v4284
        %4307 = vmatpush.bf16.xpose.msra.mxu0 %v4281
        %4308 = vmatpush.bf16.xpose.msra.mxu0 %v4278
        %4309 = vmatmul.bf16.gmra.mxu0 %v4254
        %v4310 = vpop.f32.mrf.mxu0
        %v4311 = vadd.f32 %v1086, %v4310
        %v4312 = vpop.f32.mrf.mxu0
        %v4313 = vadd.f32 %v1087, %v4312
        %4314 = vmatmul.bf16.gmra.mxu0 %v4257
        %v4315 = vpop.f32.mrf.mxu0
        %v4316 = vadd.f32 %v1088, %v4315
        %v4317 = vpop.f32.mrf.mxu0
        %v4318 = vadd.f32 %v1089, %v4317
        %4319 = vmatmul.bf16.gmra.mxu0 %v4260
        %v4320 = vpop.f32.mrf.mxu0
        %v4321 = vadd.f32 %v1090, %v4320
        %v4322 = vpop.f32.mrf.mxu0
        %v4323 = vadd.f32 %v1091, %v4322
        %4324 = vmatmul.bf16.gmra.mxu0 %v4263
        %v4325 = vpop.f32.mrf.mxu0
        %v4326 = vadd.f32 %v1092, %v4325
        %v4327 = vpop.f32.mrf.mxu0
        %v4328 = vadd.f32 %v1093, %v4327
        %4329 = vmatmul.bf16.gmra.mxu0 %v4266
        %v4330 = vpop.f32.mrf.mxu0
        %v4331 = vadd.f32 %v1094, %v4330
        %v4332 = vpop.f32.mrf.mxu0
        %v4333 = vadd.f32 %v1095, %v4332
        %4334 = vmatmul.bf16.gmra.mxu0 %v4269
        %v4335 = vpop.f32.mrf.mxu0
        %v4336 = vadd.f32 %v1096, %v4335
        %v4337 = vpop.f32.mrf.mxu0
        %v4338 = vadd.f32 %v1097, %v4337
        %4339 = vmatmul.bf16.gmra.mxu0 %v4272
        %v4340 = vpop.f32.mrf.mxu0
        %v4341 = vadd.f32 %v1098, %v4340
        %v4342 = vpop.f32.mrf.mxu0
        %v4343 = vadd.f32 %v1099, %v4342
        %4344 = vmatmul.bf16.gmra.mxu0 %v4275
        %v4345 = vpop.f32.mrf.mxu0
        %v4346 = vadd.f32 %v1100, %v4345
        %v4347 = vpop.f32.mrf.mxu0
        %v4348 = vadd.f32 %v1101, %v4347
        %4349 = vdwg.mxu0
        %4350 = vmax.xlane.f32.xlu0 %v4311
        %v4351 = vpop.xlane.xlu0 %4350
        %4352 = vmax.xlane.f32.xlu0 %v4313
        %v4353 = vpop.xlane.xlu0 %4352
        %4354 = vmax.xlane.f32.xlu0 %v4316
        %v4355 = vpop.xlane.xlu0 %4354
        %4356 = vmax.xlane.f32.xlu0 %v4318
        %v4357 = vpop.xlane.xlu0 %4356
        %4358 = vmax.xlane.f32.xlu0 %v4321
        %v4359 = vpop.xlane.xlu0 %4358
        %4360 = vmax.xlane.f32.xlu0 %v4323
        %v4361 = vpop.xlane.xlu0 %4360
        %4362 = vmax.xlane.f32.xlu0 %v4326
        %v4363 = vpop.xlane.xlu0 %4362
        %4364 = vmax.xlane.f32.xlu0 %v4328
        %v4365 = vpop.xlane.xlu0 %4364
        %4366 = vmax.xlane.f32.xlu0 %v4331
        %v4367 = vpop.xlane.xlu0 %4366
        %4368 = vmax.xlane.f32.xlu0 %v4333
        %v4369 = vpop.xlane.xlu0 %4368
        %4370 = vmax.xlane.f32.xlu0 %v4336
        %v4371 = vpop.xlane.xlu0 %4370
        %4372 = vmax.xlane.f32.xlu0 %v4338
        %v4373 = vpop.xlane.xlu0 %4372
        %4374 = vmax.xlane.f32.xlu0 %v4341
        %v4375 = vpop.xlane.xlu0 %4374
        %4376 = vmax.xlane.f32.xlu0 %v4343
        %v4377 = vpop.xlane.xlu0 %4376
        %4378 = vmax.xlane.f32.xlu0 %v4346
        %v4379 = vpop.xlane.xlu0 %4378
        %4380 = vmax.xlane.f32.xlu0 %v4348
        %v4381 = vpop.xlane.xlu0 %4380
        %v4382 = vsub.f32 %v4311, %v4351
        %v4383 = vsub.f32 %v4313, %v4353
        %v4384 = vsub.f32 %v4316, %v4355
        %v4385 = vsub.f32 %v4318, %v4357
        %v4386 = vsub.f32 %v4321, %v4359
        %v4387 = vsub.f32 %v4323, %v4361
        %v4388 = vsub.f32 %v4326, %v4363
        %v4389 = vsub.f32 %v4328, %v4365
        %v4390 = vsub.f32 %v4331, %v4367
        %v4391 = vsub.f32 %v4333, %v4369
        %v4392 = vsub.f32 %v4336, %v4371
        %v4393 = vsub.f32 %v4338, %v4373
        %v4394 = vsub.f32 %v4341, %v4375
        %v4395 = vsub.f32 %v4343, %v4377
        %v4396 = vsub.f32 %v4346, %v4379
        %v4397 = vsub.f32 %v4348, %v4381
        %v4398 = vmul.f32 %v4382, 1.442695
        %v4399 = vpow.pop %v4398
        %v4400 = vmul.f32 %v4383, 1.442695
        %v4401 = vpow.pop %v4400
        %v4402 = vmul.f32 %v4384, 1.442695
        %v4403 = vpow.pop %v4402
        %v4404 = vmul.f32 %v4385, 1.442695
        %v4405 = vpow.pop %v4404
        %v4406 = vmul.f32 %v4386, 1.442695
        %v4407 = vpow.pop %v4406
        %v4408 = vmul.f32 %v4387, 1.442695
        %v4409 = vpow.pop %v4408
        %v4410 = vmul.f32 %v4388, 1.442695
        %v4411 = vpow.pop %v4410
        %v4412 = vmul.f32 %v4389, 1.442695
        %v4413 = vpow.pop %v4412
        %v4414 = vmul.f32 %v4390, 1.442695
        %v4415 = vpow.pop %v4414
        %v4416 = vmul.f32 %v4391, 1.442695
        %v4417 = vpow.pop %v4416
        %v4418 = vmul.f32 %v4392, 1.442695
        %v4419 = vpow.pop %v4418
        %v4420 = vmul.f32 %v4393, 1.442695
        %v4421 = vpow.pop %v4420
        %v4422 = vmul.f32 %v4394, 1.442695
        %v4423 = vpow.pop %v4422
        %v4424 = vmul.f32 %v4395, 1.442695
        %v4425 = vpow.pop %v4424
        %v4426 = vmul.f32 %v4396, 1.442695
        %v4427 = vpow.pop %v4426
        %v4428 = vmul.f32 %v4397, 1.442695
        %v4429 = vpow.pop %v4428
        %4430 = vadd.xlane.f32.xlu0 %v4399
        %v4431 = vpop.xlane.xlu0 %4430
        %4432 = vadd.xlane.f32.xlu0 %v4401
        %v4433 = vpop.xlane.xlu0 %4432
        %4434 = vadd.xlane.f32.xlu0 %v4403
        %v4435 = vpop.xlane.xlu0 %4434
        %4436 = vadd.xlane.f32.xlu0 %v4405
        %v4437 = vpop.xlane.xlu0 %4436
        %4438 = vadd.xlane.f32.xlu0 %v4407
        %v4439 = vpop.xlane.xlu0 %4438
        %4440 = vadd.xlane.f32.xlu0 %v4409
        %v4441 = vpop.xlane.xlu0 %4440
        %4442 = vadd.xlane.f32.xlu0 %v4411
        %v4443 = vpop.xlane.xlu0 %4442
        %4444 = vadd.xlane.f32.xlu0 %v4413
        %v4445 = vpop.xlane.xlu0 %4444
        %4446 = vadd.xlane.f32.xlu0 %v4415
        %v4447 = vpop.xlane.xlu0 %4446
        %4448 = vadd.xlane.f32.xlu0 %v4417
        %v4449 = vpop.xlane.xlu0 %4448
        %4450 = vadd.xlane.f32.xlu0 %v4419
        %v4451 = vpop.xlane.xlu0 %4450
        %4452 = vadd.xlane.f32.xlu0 %v4421
        %v4453 = vpop.xlane.xlu0 %4452
        %4454 = vadd.xlane.f32.xlu0 %v4423
        %v4455 = vpop.xlane.xlu0 %4454
        %4456 = vadd.xlane.f32.xlu0 %v4425
        %v4457 = vpop.xlane.xlu0 %4456
        %4458 = vadd.xlane.f32.xlu0 %v4427
        %v4459 = vpop.xlane.xlu0 %4458
        %4460 = vadd.xlane.f32.xlu0 %v4429
        %v4461 = vpop.xlane.xlu0 %4460
        %v4462 = vrcp.pop %v4431
        %v4463 = vrcp.pop %v4433
        %v4464 = vrcp.pop %v4435
        %v4465 = vrcp.pop %v4437
        %v4466 = vrcp.pop %v4439
        %v4467 = vrcp.pop %v4441
        %v4468 = vrcp.pop %v4443
        %v4469 = vrcp.pop %v4445
        %v4470 = vrcp.pop %v4447
        %v4471 = vrcp.pop %v4449
        %v4472 = vrcp.pop %v4451
        %v4473 = vrcp.pop %v4453
        %v4474 = vrcp.pop %v4455
        %v4475 = vrcp.pop %v4457
        %v4476 = vrcp.pop %v4459
        %v4477 = vrcp.pop %v4461
        %v4478 = vmul.f32 %v4399, %v4462
        %v4479 = vmul.f32 %v4401, %v4463
        %v4480 = vmul.f32 %v4403, %v4464
        %v4481 = vmul.f32 %v4405, %v4465
        %v4482 = vmul.f32 %v4407, %v4466
        %v4483 = vmul.f32 %v4409, %v4467
        %v4484 = vmul.f32 %v4411, %v4468
        %v4485 = vmul.f32 %v4413, %v4469
        %v4486 = vmul.f32 %v4415, %v4470
        %v4487 = vmul.f32 %v4417, %v4471
        %v4488 = vmul.f32 %v4419, %v4472
        %v4489 = vmul.f32 %v4421, %v4473
        %v4490 = vmul.f32 %v4423, %v4474
        %v4491 = vmul.f32 %v4425, %v4475
        %v4492 = vmul.f32 %v4427, %v4476
        %v4493 = vmul.f32 %v4429, %v4477
        %v4494 = vmul.f32 %v4478, %v3894
        %v4495 = vmul.f32 %v4479, %v3899
        %v4496 = vmul.f32 %v4480, %v3904
        %v4497 = vmul.f32 %v4481, %v3909
        %v4498 = vmul.f32 %v4482, %v3914
        %v4499 = vmul.f32 %v4483, %v3919
        %v4500 = vmul.f32 %v4484, %v3924
        %v4501 = vmul.f32 %v4485, %v3929
        %v4502 = vmul.f32 %v4486, %v3934
        %v4503 = vmul.f32 %v4487, %v3939
        %v4504 = vmul.f32 %v4488, %v3944
        %v4505 = vmul.f32 %v4489, %v3949
        %v4506 = vmul.f32 %v4490, %v3954
        %v4507 = vmul.f32 %v4491, %v3959
        %v4508 = vmul.f32 %v4492, %v3964
        %v4509 = vmul.f32 %v4493, %v3969
        %v4510 = vpack.c.bf16 %v4495, %v4494
        %v4511 = vpack.c.bf16 %v4497, %v4496
        %v4512 = vpack.c.bf16 %v4499, %v4498
        %v4513 = vpack.c.bf16 %v4501, %v4500
        %v4514 = vpack.c.bf16 %v4503, %v4502
        %v4515 = vpack.c.bf16 %v4505, %v4504
        %v4516 = vpack.c.bf16 %v4507, %v4506
        %v4517 = vpack.c.bf16 %v4509, %v4508
        %v4518 = vld [vmem:[%s51] sm:$0xf]
        %v4519 = vld [vmem:[%s51 + $0x4] sm:$0xf]
        %v4520 = vld [vmem:[%s51 + $0x8] sm:$0xf]
        %v4521 = vld [vmem:[%s51 + $0xc] sm:$0xf]
        %v4522 = vld [vmem:[%s53] sm:$0x1]
        %v4524 = vperm.slane %v4522, 0
        %v4530 = vunpack.c.l.b16 %v4518
        %v4531 = vunpack.c.l.b16 %v4519
        %v4532 = vunpack.c.l.b16 %v4520
        %v4533 = vunpack.c.l.b16 %v4521
        %v4534 = vpack.c.b16 %v4531, %v4530
        %v4535 = vpack.c.b16 %v4533, %v4532
        %4538 = vmatpush.bf16.msra.mxu0 0
        %4539 = vmatpush.bf16.msra.mxu0 0
        %4540 = vmatpush.bf16.msra.mxu0 0
        %4541 = vmatpush.bf16.msra.mxu0 0
        %4542 = vmatpush.bf16.msra.mxu0 0
        %4543 = vmatpush.bf16.msra.mxu0 0
        %4544 = vmatpush.bf16.msra.mxu0 %v4535
        %4545 = vmatpush.bf16.msra.mxu0 %v4534
        %4546 = vmatmul.bf16.gmra.mxu0 %v4278
        %v4547 = vpop.f32.mrf.mxu0
        %v4548 = vadd.f32 %v4524, %v4547
        %v4549 = vpop.f32.mrf.mxu0
        %v4550 = vadd.f32 %v4524, %v4549
        %4551 = vmatmul.bf16.gmra.mxu0 %v4281
        %v4552 = vpop.f32.mrf.mxu0
        %v4553 = vadd.f32 %v4524, %v4552
        %v4554 = vpop.f32.mrf.mxu0
        %v4555 = vadd.f32 %v4524, %v4554
        %4556 = vmatmul.bf16.gmra.mxu0 %v4284
        %v4557 = vpop.f32.mrf.mxu0
        %v4558 = vadd.f32 %v4524, %v4557
        %v4559 = vpop.f32.mrf.mxu0
        %v4560 = vadd.f32 %v4524, %v4559
        %4561 = vmatmul.bf16.gmra.mxu0 %v4287
        %v4562 = vpop.f32.mrf.mxu0
        %v4563 = vadd.f32 %v4524, %v4562
        %v4564 = vpop.f32.mrf.mxu0
        %v4565 = vadd.f32 %v4524, %v4564
        %4566 = vmatmul.bf16.gmra.mxu0 %v4290
        %v4567 = vpop.f32.mrf.mxu0
        %v4568 = vadd.f32 %v4524, %v4567
        %v4569 = vpop.f32.mrf.mxu0
        %v4570 = vadd.f32 %v4524, %v4569
        %4571 = vmatmul.bf16.gmra.mxu0 %v4293
        %v4572 = vpop.f32.mrf.mxu0
        %v4573 = vadd.f32 %v4524, %v4572
        %v4574 = vpop.f32.mrf.mxu0
        %v4575 = vadd.f32 %v4524, %v4574
        %4576 = vmatmul.bf16.gmra.mxu0 %v4296
        %v4577 = vpop.f32.mrf.mxu0
        %v4578 = vadd.f32 %v4524, %v4577
        %v4579 = vpop.f32.mrf.mxu0
        %v4580 = vadd.f32 %v4524, %v4579
        %4581 = vmatmul.bf16.gmra.mxu0 %v4299
        %v4582 = vpop.f32.mrf.mxu0
        %v4583 = vadd.f32 %v4524, %v4582
        %v4584 = vpop.f32.mrf.mxu0
        %v4585 = vadd.f32 %v4524, %v4584
        %4586 = vdwg.mxu0
        %v4587 = vpack.c.bf16 %v4550, %v4548
        %v4588 = vpack.c.bf16 %v4555, %v4553
        %v4589 = vpack.c.bf16 %v4560, %v4558
        %v4590 = vpack.c.bf16 %v4565, %v4563
        %v4591 = vpack.c.bf16 %v4570, %v4568
        %v4592 = vpack.c.bf16 %v4575, %v4573
        %v4593 = vpack.c.bf16 %v4580, %v4578
        %v4594 = vpack.c.bf16 %v4585, %v4583
        %4595 = vmatpush.bf16.msra.mxu0 %v4594
        %4596 = vmatpush.bf16.msra.mxu0 %v4593
        %4597 = vmatpush.bf16.msra.mxu0 %v4592
        %4598 = vmatpush.bf16.msra.mxu0 %v4591
        %4599 = vmatpush.bf16.msra.mxu0 %v4590
        %4600 = vmatpush.bf16.msra.mxu0 %v4589
        %4601 = vmatpush.bf16.msra.mxu0 %v4588
        %4602 = vmatpush.bf16.msra.mxu0 %v4587
        %4603 = vmatmul.bf16.gmra.mxu0 %v4510
        %v4604 = vpop.f32.mrf.mxu0
        %v4605 = vadd.f32 0.0, %v4604
        %v4606 = vpop.f32.mrf.mxu0
        %v4607 = vadd.f32 0.0, %v4606
        %4608 = vmatmul.bf16.gmra.mxu0 %v4511
        %v4609 = vpop.f32.mrf.mxu0
        %v4610 = vadd.f32 0.0, %v4609
        %v4611 = vpop.f32.mrf.mxu0
        %v4612 = vadd.f32 0.0, %v4611
        %4613 = vmatmul.bf16.gmra.mxu0 %v4512
        %v4614 = vpop.f32.mrf.mxu0
        %v4615 = vadd.f32 0.0, %v4614
        %v4616 = vpop.f32.mrf.mxu0
        %v4617 = vadd.f32 0.0, %v4616
        %4618 = vmatmul.bf16.gmra.mxu0 %v4513
        %v4619 = vpop.f32.mrf.mxu0
        %v4620 = vadd.f32 0.0, %v4619
        %v4621 = vpop.f32.mrf.mxu0
        %v4622 = vadd.f32 0.0, %v4621
        %4623 = vmatmul.bf16.gmra.mxu0 %v4514
        %v4624 = vpop.f32.mrf.mxu0
        %v4625 = vadd.f32 0.0, %v4624
        %v4626 = vpop.f32.mrf.mxu0
        %v4627 = vadd.f32 0.0, %v4626
        %4628 = vmatmul.bf16.gmra.mxu0 %v4515
        %v4629 = vpop.f32.mrf.mxu0
        %v4630 = vadd.f32 0.0, %v4629
        %v4631 = vpop.f32.mrf.mxu0
        %v4632 = vadd.f32 0.0, %v4631
        %4633 = vmatmul.bf16.gmra.mxu0 %v4516
        %v4634 = vpop.f32.mrf.mxu0
        %v4635 = vadd.f32 0.0, %v4634
        %v4636 = vpop.f32.mrf.mxu0
        %v4637 = vadd.f32 0.0, %v4636
        %4638 = vmatmul.bf16.gmra.mxu0 %v4517
        %v4639 = vpop.f32.mrf.mxu0
        %v4640 = vadd.f32 0.0, %v4639
        %v4641 = vpop.f32.mrf.mxu0
        %v4642 = vadd.f32 0.0, %v4641
        %4643 = vdwg.mxu0
        %v4644 = vmax.f32 %v4605, 0.0
        %v4645 = vmax.f32 %v4607, 0.0
        %v4646 = vmax.f32 %v4610, 0.0
        %v4647 = vmax.f32 %v4612, 0.0
        %v4648 = vmax.f32 %v4615, 0.0
        %v4649 = vmax.f32 %v4617, 0.0
        %v4650 = vmax.f32 %v4620, 0.0
        %v4651 = vmax.f32 %v4622, 0.0
        %v4652 = vmax.f32 %v4625, 0.0
        %v4653 = vmax.f32 %v4627, 0.0
        %v4654 = vmax.f32 %v4630, 0.0
        %v4655 = vmax.f32 %v4632, 0.0
        %v4656 = vmax.f32 %v4635, 0.0
        %v4657 = vmax.f32 %v4637, 0.0
        %v4658 = vmax.f32 %v4640, 0.0
        %v4659 = vmax.f32 %v4642, 0.0
        %v4660 = vpack.c.bf16 %v4645, %v4644
        %v4661 = vpack.c.bf16 %v4647, %v4646
        %v4662 = vpack.c.bf16 %v4649, %v4648
        %v4663 = vpack.c.bf16 %v4651, %v4650
        %v4664 = vpack.c.bf16 %v4653, %v4652
        %v4665 = vpack.c.bf16 %v4655, %v4654
        %v4666 = vpack.c.bf16 %v4657, %v4656
        %v4667 = vpack.c.bf16 %v4659, %v4658
        %v4668 = vld [vmem:[%s55] sm:$0xf]
        %v4669 = vld [vmem:[%s55 + $0x4] sm:$0xf]
        %v4670 = vld [vmem:[%s55 + $0x8] sm:$0xf]
        %v4671 = vld [vmem:[%s55 + $0xc] sm:$0xf]
        %v4672 = vld [vmem:[%s55 + $0x10] sm:$0xf]
        %v4673 = vld [vmem:[%s55 + $0x14] sm:$0xf]
        %v4674 = vld [vmem:[%s55 + $0x18] sm:$0xf]
        %v4675 = vld [vmem:[%s55 + $0x1c] sm:$0xf]
        %v4676 = vld [vmem:[%s57] sm:$0x1]
        %v4678 = vperm.slane %v4676, 0
        %v4688 = vunpack.c.l.b16 %v4668
        %v4689 = vunpack.c.l.b16 %v4669
        %v4690 = vunpack.c.l.b16 %v4670
        %v4691 = vunpack.c.l.b16 %v4671
        %v4692 = vunpack.c.l.b16 %v4672
        %v4693 = vunpack.c.l.b16 %v4673
        %v4694 = vunpack.c.l.b16 %v4674
        %v4695 = vunpack.c.l.b16 %v4675
        %v4696 = vpack.c.b16 %v4689, %v4688
        %v4697 = vpack.c.b16 %v4691, %v4690
        %v4698 = vpack.c.b16 %v4693, %v4692
        %v4699 = vpack.c.b16 %v4695, %v4694
        %v4705 = vsel %vm3409, %v4660, 0
        %v4708 = vsel %vm3409, %v4661, 0
        %v4711 = vsel %vm3409, %v4662, 0
        %v4714 = vsel %vm3409, %v4663, 0
        %v4717 = vsel %vm3409, %v4664, 0
        %v4720 = vsel %vm3409, %v4665, 0
        %v4723 = vsel %vm3409, %v4666, 0
        %v4726 = vsel %vm3409, %v4667, 0
        %4728 = vmatpush.bf16.msra.mxu0 0
        %4729 = vmatpush.bf16.msra.mxu0 0
        %4730 = vmatpush.bf16.msra.mxu0 0
        %4731 = vmatpush.bf16.msra.mxu0 0
        %4732 = vmatpush.bf16.msra.mxu0 %v4699
        %4733 = vmatpush.bf16.msra.mxu0 %v4698
        %4734 = vmatpush.bf16.msra.mxu0 %v4697
        %4735 = vmatpush.bf16.msra.mxu0 %v4696
        %4736 = vmatmul.bf16.gmra.mxu0 %v4705
        %v4737 = vpop.f32.mrf.mxu0
        %v4738 = vadd.f32 %v4678, %v4737
        %v4739 = vpop.f32.mrf.mxu0
        %v4740 = vadd.f32 %v4678, %v4739
        %4741 = vmatmul.bf16.gmra.mxu0 %v4708
        %v4742 = vpop.f32.mrf.mxu0
        %v4743 = vadd.f32 %v4678, %v4742
        %v4744 = vpop.f32.mrf.mxu0
        %v4745 = vadd.f32 %v4678, %v4744
        %4746 = vmatmul.bf16.gmra.mxu0 %v4711
        %v4747 = vpop.f32.mrf.mxu0
        %v4748 = vadd.f32 %v4678, %v4747
        %v4749 = vpop.f32.mrf.mxu0
        %v4750 = vadd.f32 %v4678, %v4749
        %4751 = vmatmul.bf16.gmra.mxu0 %v4714
        %v4752 = vpop.f32.mrf.mxu0
        %v4753 = vadd.f32 %v4678, %v4752
        %v4754 = vpop.f32.mrf.mxu0
        %v4755 = vadd.f32 %v4678, %v4754
        %4756 = vmatmul.bf16.gmra.mxu0 %v4717
        %v4757 = vpop.f32.mrf.mxu0
        %v4758 = vadd.f32 %v4678, %v4757
        %v4759 = vpop.f32.mrf.mxu0
        %v4760 = vadd.f32 %v4678, %v4759
        %4761 = vmatmul.bf16.gmra.mxu0 %v4720
        %v4762 = vpop.f32.mrf.mxu0
        %v4763 = vadd.f32 %v4678, %v4762
        %v4764 = vpop.f32.mrf.mxu0
        %v4765 = vadd.f32 %v4678, %v4764
        %4766 = vmatmul.bf16.gmra.mxu0 %v4723
        %v4767 = vpop.f32.mrf.mxu0
        %v4768 = vadd.f32 %v4678, %v4767
        %v4769 = vpop.f32.mrf.mxu0
        %v4770 = vadd.f32 %v4678, %v4769
        %4771 = vmatmul.bf16.gmra.mxu0 %v4726
        %v4772 = vpop.f32.mrf.mxu0
        %v4773 = vadd.f32 %v4678, %v4772
        %v4774 = vpop.f32.mrf.mxu0
        %v4775 = vadd.f32 %v4678, %v4774
        %4776 = vdwg.mxu0
        %v4777 = vpack.c.bf16 %v4740, %v4738
        %v4778 = vpack.c.bf16 %v4745, %v4743
        %v4779 = vpack.c.bf16 %v4750, %v4748
        %v4780 = vpack.c.bf16 %v4755, %v4753
        %v4781 = vpack.c.bf16 %v4760, %v4758
        %v4782 = vpack.c.bf16 %v4765, %v4763
        %v4783 = vpack.c.bf16 %v4770, %v4768
        %v4784 = vpack.c.bf16 %v4775, %v4773
        %4785 = vmatpush.bf16.msra.mxu0 %v4784
        %4786 = vmatpush.bf16.msra.mxu0 %v4783
        %4787 = vmatpush.bf16.msra.mxu0 %v4782
        %4788 = vmatpush.bf16.msra.mxu0 %v4781
        %4789 = vmatpush.bf16.msra.mxu0 %v4780
        %4790 = vmatpush.bf16.msra.mxu0 %v4779
        %4791 = vmatpush.bf16.msra.mxu0 %v4778
        %4792 = vmatpush.bf16.msra.mxu0 %v4777
        %4793 = vmatmul.bf16.gmra.mxu0 %v4510
        %v4794 = vpop.f32.mrf.mxu0
        %v4795 = vadd.f32 0.0, %v4794
        %v4796 = vpop.f32.mrf.mxu0
        %v4797 = vadd.f32 0.0, %v4796
        %4798 = vmatmul.bf16.gmra.mxu0 %v4511
        %v4799 = vpop.f32.mrf.mxu0
        %v4800 = vadd.f32 0.0, %v4799
        %v4801 = vpop.f32.mrf.mxu0
        %v4802 = vadd.f32 0.0, %v4801
        %4803 = vmatmul.bf16.gmra.mxu0 %v4512
        %v4804 = vpop.f32.mrf.mxu0
        %v4805 = vadd.f32 0.0, %v4804
        %v4806 = vpop.f32.mrf.mxu0
        %v4807 = vadd.f32 0.0, %v4806
        %4808 = vmatmul.bf16.gmra.mxu0 %v4513
        %v4809 = vpop.f32.mrf.mxu0
        %v4810 = vadd.f32 0.0, %v4809
        %v4811 = vpop.f32.mrf.mxu0
        %v4812 = vadd.f32 0.0, %v4811
        %4813 = vmatmul.bf16.gmra.mxu0 %v4514
        %v4814 = vpop.f32.mrf.mxu0
        %v4815 = vadd.f32 0.0, %v4814
        %v4816 = vpop.f32.mrf.mxu0
        %v4817 = vadd.f32 0.0, %v4816
        %4818 = vmatmul.bf16.gmra.mxu0 %v4515
        %v4819 = vpop.f32.mrf.mxu0
        %v4820 = vadd.f32 0.0, %v4819
        %v4821 = vpop.f32.mrf.mxu0
        %v4822 = vadd.f32 0.0, %v4821
        %4823 = vmatmul.bf16.gmra.mxu0 %v4516
        %v4824 = vpop.f32.mrf.mxu0
        %v4825 = vadd.f32 0.0, %v4824
        %v4826 = vpop.f32.mrf.mxu0
        %v4827 = vadd.f32 0.0, %v4826
        %4828 = vmatmul.bf16.gmra.mxu0 %v4517
        %v4829 = vpop.f32.mrf.mxu0
        %v4830 = vadd.f32 0.0, %v4829
        %v4831 = vpop.f32.mrf.mxu0
        %v4832 = vadd.f32 0.0, %v4831
        %4833 = vdwg.mxu0
        %v4834 = vmul.f32 %v4795, %v3894
        %v4835 = vmul.f32 %v4797, %v3899
        %v4836 = vmul.f32 %v4800, %v3904
        %v4837 = vmul.f32 %v4802, %v3909
        %v4838 = vmul.f32 %v4805, %v3914
        %v4839 = vmul.f32 %v4807, %v3919
        %v4840 = vmul.f32 %v4810, %v3924
        %v4841 = vmul.f32 %v4812, %v3929
        %v4842 = vmul.f32 %v4815, %v3934
        %v4843 = vmul.f32 %v4817, %v3939
        %v4844 = vmul.f32 %v4820, %v3944
        %v4845 = vmul.f32 %v4822, %v3949
        %v4846 = vmul.f32 %v4825, %v3954
        %v4847 = vmul.f32 %v4827, %v3959
        %v4848 = vmul.f32 %v4830, %v3964
        %v4849 = vmul.f32 %v4832, %v3969
        %v4850 = vpack.c.bf16 %v4835, %v4834
        %v4851 = vpack.c.bf16 %v4837, %v4836
        %v4852 = vpack.c.bf16 %v4839, %v4838
        %v4853 = vpack.c.bf16 %v4841, %v4840
        %v4854 = vpack.c.bf16 %v4843, %v4842
        %v4855 = vpack.c.bf16 %v4845, %v4844
        %v4856 = vpack.c.bf16 %v4847, %v4846
        %v4857 = vpack.c.bf16 %v4849, %v4848
        %4858 = vmatpush.bf16.msra.mxu0 %v4857
        %4859 = vmatpush.bf16.msra.mxu0 %v4856
        %4860 = vmatpush.bf16.msra.mxu0 %v4855
        %4861 = vmatpush.bf16.msra.mxu0 %v4854
        %4862 = vmatpush.bf16.msra.mxu0 %v4853
        %4863 = vmatpush.bf16.msra.mxu0 %v4852
        %4864 = vmatpush.bf16.msra.mxu0 %v4851
        %4865 = vmatpush.bf16.msra.mxu0 %v4850
        %4866 = vmatmul.bf16.gmra.mxu0 %v4510
        %v4867 = vpop.f32.mrf.mxu0
        %v4868 = vadd.f32 0.0, %v4867
        %v4869 = vpop.f32.mrf.mxu0
        %v4870 = vadd.f32 0.0, %v4869
        %4871 = vmatmul.bf16.gmra.mxu0 %v4511
        %v4872 = vpop.f32.mrf.mxu0
        %v4873 = vadd.f32 0.0, %v4872
        %v4874 = vpop.f32.mrf.mxu0
        %v4875 = vadd.f32 0.0, %v4874
        %4876 = vmatmul.bf16.gmra.mxu0 %v4512
        %v4877 = vpop.f32.mrf.mxu0
        %v4878 = vadd.f32 0.0, %v4877
        %v4879 = vpop.f32.mrf.mxu0
        %v4880 = vadd.f32 0.0, %v4879
        %4881 = vmatmul.bf16.gmra.mxu0 %v4513
        %v4882 = vpop.f32.mrf.mxu0
        %v4883 = vadd.f32 0.0, %v4882
        %v4884 = vpop.f32.mrf.mxu0
        %v4885 = vadd.f32 0.0, %v4884
        %4886 = vmatmul.bf16.gmra.mxu0 %v4514
        %v4887 = vpop.f32.mrf.mxu0
        %v4888 = vadd.f32 0.0, %v4887
        %v4889 = vpop.f32.mrf.mxu0
        %v4890 = vadd.f32 0.0, %v4889
        %4891 = vmatmul.bf16.gmra.mxu0 %v4515
        %v4892 = vpop.f32.mrf.mxu0
        %v4893 = vadd.f32 0.0, %v4892
        %v4894 = vpop.f32.mrf.mxu0
        %v4895 = vadd.f32 0.0, %v4894
        %4896 = vmatmul.bf16.gmra.mxu0 %v4516
        %v4897 = vpop.f32.mrf.mxu0
        %v4898 = vadd.f32 0.0, %v4897
        %v4899 = vpop.f32.mrf.mxu0
        %v4900 = vadd.f32 0.0, %v4899
        %4901 = vmatmul.bf16.gmra.mxu0 %v4517
        %v4902 = vpop.f32.mrf.mxu0
        %v4903 = vadd.f32 0.0, %v4902
        %v4904 = vpop.f32.mrf.mxu0
        %v4905 = vadd.f32 0.0, %v4904
        %4906 = vdwg.mxu0
        %v4907 = vadd.f32 %v3971, %v4868
        %v4908 = vadd.f32 %v3972, %v4870
        %v4909 = vadd.f32 %v3973, %v4873
        %v4910 = vadd.f32 %v3974, %v4875
        %v4911 = vadd.f32 %v3975, %v4878
        %v4912 = vadd.f32 %v3976, %v4880
        %v4913 = vadd.f32 %v3977, %v4883
        %v4914 = vadd.f32 %v3978, %v4885
        %v4915 = vadd.f32 %v3979, %v4888
        %v4916 = vadd.f32 %v3980, %v4890
        %v4917 = vadd.f32 %v3981, %v4893
        %v4918 = vadd.f32 %v3982, %v4895
        %v4919 = vadd.f32 %v3983, %v4898
        %v4920 = vadd.f32 %v3984, %v4900
        %v4921 = vadd.f32 %v3985, %v4903
        %v4922 = vadd.f32 %v3986, %v4905
        %v4923 = vld [vmem:[%s59] sm:$0x1]
        %v4924 = vld [vmem:[%s61] sm:$0x1]
        %v4925 = vsel %vm1130, %v4907, 0.0
        %4926 = vadd.xlane.f32.xlu0 %v4925
        %v4927 = vpop.xlane.xlu0 %4926
        %v4928 = vsel %vm1130, %v4908, 0.0
        %4929 = vadd.xlane.f32.xlu0 %v4928
        %v4930 = vpop.xlane.xlu0 %4929
        %v4931 = vsel %vm1130, %v4909, 0.0
        %4932 = vadd.xlane.f32.xlu0 %v4931
        %v4933 = vpop.xlane.xlu0 %4932
        %v4934 = vsel %vm1130, %v4910, 0.0
        %4935 = vadd.xlane.f32.xlu0 %v4934
        %v4936 = vpop.xlane.xlu0 %4935
        %v4937 = vsel %vm1130, %v4911, 0.0
        %4938 = vadd.xlane.f32.xlu0 %v4937
        %v4939 = vpop.xlane.xlu0 %4938
        %v4940 = vsel %vm1130, %v4912, 0.0
        %4941 = vadd.xlane.f32.xlu0 %v4940
        %v4942 = vpop.xlane.xlu0 %4941
        %v4943 = vsel %vm1130, %v4913, 0.0
        %4944 = vadd.xlane.f32.xlu0 %v4943
        %v4945 = vpop.xlane.xlu0 %4944
        %v4946 = vsel %vm1130, %v4914, 0.0
        %4947 = vadd.xlane.f32.xlu0 %v4946
        %v4948 = vpop.xlane.xlu0 %4947
        %v4949 = vsel %vm1130, %v4915, 0.0
        %4950 = vadd.xlane.f32.xlu0 %v4949
        %v4951 = vpop.xlane.xlu0 %4950
        %v4952 = vsel %vm1130, %v4916, 0.0
        %4953 = vadd.xlane.f32.xlu0 %v4952
        %v4954 = vpop.xlane.xlu0 %4953
        %v4955 = vsel %vm1130, %v4917, 0.0
        %4956 = vadd.xlane.f32.xlu0 %v4955
        %v4957 = vpop.xlane.xlu0 %4956
        %v4958 = vsel %vm1130, %v4918, 0.0
        %4959 = vadd.xlane.f32.xlu0 %v4958
        %v4960 = vpop.xlane.xlu0 %4959
        %v4961 = vsel %vm1130, %v4919, 0.0
        %4962 = vadd.xlane.f32.xlu0 %v4961
        %v4963 = vpop.xlane.xlu0 %4962
        %v4964 = vsel %vm1130, %v4920, 0.0
        %4965 = vadd.xlane.f32.xlu0 %v4964
        %v4966 = vpop.xlane.xlu0 %4965
        %v4967 = vsel %vm1130, %v4921, 0.0
        %4968 = vadd.xlane.f32.xlu0 %v4967
        %v4969 = vpop.xlane.xlu0 %4968
        %v4970 = vsel %vm1130, %v4922, 0.0
        %4971 = vadd.xlane.f32.xlu0 %v4970
        %v4972 = vpop.xlane.xlu0 %4971
        %v4973 = vmul.f32 %v4927, %v2905
        %v4974 = vmul.f32 %v4930, %v2905
        %v4975 = vmul.f32 %v4933, %v2905
        %v4976 = vmul.f32 %v4936, %v2905
        %v4977 = vmul.f32 %v4939, %v2905
        %v4978 = vmul.f32 %v4942, %v2905
        %v4979 = vmul.f32 %v4945, %v2905
        %v4980 = vmul.f32 %v4948, %v2905
        %v4981 = vmul.f32 %v4951, %v2905
        %v4982 = vmul.f32 %v4954, %v2905
        %v4983 = vmul.f32 %v4957, %v2905
        %v4984 = vmul.f32 %v4960, %v2905
        %v4985 = vmul.f32 %v4963, %v2905
        %v4986 = vmul.f32 %v4966, %v2905
        %v4987 = vmul.f32 %v4969, %v2905
        %v4988 = vmul.f32 %v4972, %v2905
        %v4989 = vsub.f32 %v4907, %v4973
        %v4990 = vsub.f32 %v4908, %v4974
        %v4991 = vsub.f32 %v4909, %v4975
        %v4992 = vsub.f32 %v4910, %v4976
        %v4993 = vsub.f32 %v4911, %v4977
        %v4994 = vsub.f32 %v4912, %v4978
        %v4995 = vsub.f32 %v4913, %v4979
        %v4996 = vsub.f32 %v4914, %v4980
        %v4997 = vsub.f32 %v4915, %v4981
        %v4998 = vsub.f32 %v4916, %v4982
        %v4999 = vsub.f32 %v4917, %v4983
        %v5000 = vsub.f32 %v4918, %v4984
        %v5001 = vsub.f32 %v4919, %v4985
        %v5002 = vsub.f32 %v4920, %v4986
        %v5003 = vsub.f32 %v4921, %v4987
        %v5004 = vsub.f32 %v4922, %v4988
        %v5005 = vmul.f32 %v4989, %v4989
        %v5006 = vmul.f32 %v4990, %v4990
        %v5007 = vmul.f32 %v4991, %v4991
        %v5008 = vmul.f32 %v4992, %v4992
        %v5009 = vmul.f32 %v4993, %v4993
        %v5010 = vmul.f32 %v4994, %v4994
        %v5011 = vmul.f32 %v4995, %v4995
        %v5012 = vmul.f32 %v4996, %v4996
        %v5013 = vmul.f32 %v4997, %v4997
        %v5014 = vmul.f32 %v4998, %v4998
        %v5015 = vmul.f32 %v4999, %v4999
        %v5016 = vmul.f32 %v5000, %v5000
        %v5017 = vmul.f32 %v5001, %v5001
        %v5018 = vmul.f32 %v5002, %v5002
        %v5019 = vmul.f32 %v5003, %v5003
        %v5020 = vmul.f32 %v5004, %v5004
        %v5021 = vsel %vm1130, %v5005, 0.0
        %5022 = vadd.xlane.f32.xlu0 %v5021
        %v5023 = vpop.xlane.xlu0 %5022
        %v5024 = vsel %vm1130, %v5006, 0.0
        %5025 = vadd.xlane.f32.xlu0 %v5024
        %v5026 = vpop.xlane.xlu0 %5025
        %v5027 = vsel %vm1130, %v5007, 0.0
        %5028 = vadd.xlane.f32.xlu0 %v5027
        %v5029 = vpop.xlane.xlu0 %5028
        %v5030 = vsel %vm1130, %v5008, 0.0
        %5031 = vadd.xlane.f32.xlu0 %v5030
        %v5032 = vpop.xlane.xlu0 %5031
        %v5033 = vsel %vm1130, %v5009, 0.0
        %5034 = vadd.xlane.f32.xlu0 %v5033
        %v5035 = vpop.xlane.xlu0 %5034
        %v5036 = vsel %vm1130, %v5010, 0.0
        %5037 = vadd.xlane.f32.xlu0 %v5036
        %v5038 = vpop.xlane.xlu0 %5037
        %v5039 = vsel %vm1130, %v5011, 0.0
        %5040 = vadd.xlane.f32.xlu0 %v5039
        %v5041 = vpop.xlane.xlu0 %5040
        %v5042 = vsel %vm1130, %v5012, 0.0
        %5043 = vadd.xlane.f32.xlu0 %v5042
        %v5044 = vpop.xlane.xlu0 %5043
        %v5045 = vsel %vm1130, %v5013, 0.0
        %5046 = vadd.xlane.f32.xlu0 %v5045
        %v5047 = vpop.xlane.xlu0 %5046
        %v5048 = vsel %vm1130, %v5014, 0.0
        %5049 = vadd.xlane.f32.xlu0 %v5048
        %v5050 = vpop.xlane.xlu0 %5049
        %v5051 = vsel %vm1130, %v5015, 0.0
        %5052 = vadd.xlane.f32.xlu0 %v5051
        %v5053 = vpop.xlane.xlu0 %5052
        %v5054 = vsel %vm1130, %v5016, 0.0
        %5055 = vadd.xlane.f32.xlu0 %v5054
        %v5056 = vpop.xlane.xlu0 %5055
        %v5057 = vsel %vm1130, %v5017, 0.0
        %5058 = vadd.xlane.f32.xlu0 %v5057
        %v5059 = vpop.xlane.xlu0 %5058
        %v5060 = vsel %vm1130, %v5018, 0.0
        %5061 = vadd.xlane.f32.xlu0 %v5060
        %v5062 = vpop.xlane.xlu0 %5061
        %v5063 = vsel %vm1130, %v5019, 0.0
        %5064 = vadd.xlane.f32.xlu0 %v5063
        %v5065 = vpop.xlane.xlu0 %5064
        %v5066 = vsel %vm1130, %v5020, 0.0
        %5067 = vadd.xlane.f32.xlu0 %v5066
        %v5068 = vpop.xlane.xlu0 %5067
        %v5069 = vmul.f32 %v5023, %v2905
        %v5070 = vmul.f32 %v5026, %v2905
        %v5071 = vmul.f32 %v5029, %v2905
        %v5072 = vmul.f32 %v5032, %v2905
        %v5073 = vmul.f32 %v5035, %v2905
        %v5074 = vmul.f32 %v5038, %v2905
        %v5075 = vmul.f32 %v5041, %v2905
        %v5076 = vmul.f32 %v5044, %v2905
        %v5077 = vmul.f32 %v5047, %v2905
        %v5078 = vmul.f32 %v5050, %v2905
        %v5079 = vmul.f32 %v5053, %v2905
        %v5080 = vmul.f32 %v5056, %v2905
        %v5081 = vmul.f32 %v5059, %v2905
        %v5082 = vmul.f32 %v5062, %v2905
        %v5083 = vmul.f32 %v5065, %v2905
        %v5084 = vmul.f32 %v5068, %v2905
        %v5085 = vadd.f32 %v5069, 1e-05
        %v5086 = vadd.f32 %v5070, 1e-05
        %v5087 = vadd.f32 %v5071, 1e-05
        %v5088 = vadd.f32 %v5072, 1e-05
        %v5089 = vadd.f32 %v5073, 1e-05
        %v5090 = vadd.f32 %v5074, 1e-05
        %v5091 = vadd.f32 %v5075, 1e-05
        %v5092 = vadd.f32 %v5076, 1e-05
        %v5093 = vadd.f32 %v5077, 1e-05
        %v5094 = vadd.f32 %v5078, 1e-05
        %v5095 = vadd.f32 %v5079, 1e-05
        %v5096 = vadd.f32 %v5080, 1e-05
        %v5097 = vadd.f32 %v5081, 1e-05
        %v5098 = vadd.f32 %v5082, 1e-05
        %v5099 = vadd.f32 %v5083, 1e-05
        %v5100 = vadd.f32 %v5084, 1e-05
        %v5101 = vrsqrt.pop %v5085
        %v5102 = vmul.f32 %v5101, %v5085
        %v5103 = vmul.f32 %v5102, %v5101
        %v5104 = vmul.f32 0.5, %v5103
        %v5105 = vsub.f32 1.5, %v5104
        %v5106 = vmul.f32 %v5101, %v5105
        %vm5107 = vweird.f32 %v5085
        %vm5108 = vweird.f32 %v5101
        %vm5109 = vmor %vm5107, %vm5108
        %v5110 = vsel %vm5109, %v5101, %v5106
        %v5111 = vrsqrt.pop %v5086
        %v5112 = vmul.f32 %v5111, %v5086
        %v5113 = vmul.f32 %v5112, %v5111
        %v5114 = vmul.f32 0.5, %v5113
        %v5115 = vsub.f32 1.5, %v5114
        %v5116 = vmul.f32 %v5111, %v5115
        %vm5117 = vweird.f32 %v5086
        %vm5118 = vweird.f32 %v5111
        %vm5119 = vmor %vm5117, %vm5118
        %v5120 = vsel %vm5119, %v5111, %v5116
        %v5121 = vrsqrt.pop %v5087
        %v5122 = vmul.f32 %v5121, %v5087
        %v5123 = vmul.f32 %v5122, %v5121
        %v5124 = vmul.f32 0.5, %v5123
        %v5125 = vsub.f32 1.5, %v5124
        %v5126 = vmul.f32 %v5121, %v5125
        %vm5127 = vweird.f32 %v5087
        %vm5128 = vweird.f32 %v5121
        %vm5129 = vmor %vm5127, %vm5128
        %v5130 = vsel %vm5129, %v5121, %v5126
        %v5131 = vrsqrt.pop %v5088
        %v5132 = vmul.f32 %v5131, %v5088
        %v5133 = vmul.f32 %v5132, %v5131
        %v5134 = vmul.f32 0.5, %v5133
        %v5135 = vsub.f32 1.5, %v5134
        %v5136 = vmul.f32 %v5131, %v5135
        %vm5137 = vweird.f32 %v5088
        %vm5138 = vweird.f32 %v5131
        %vm5139 = vmor %vm5137, %vm5138
        %v5140 = vsel %vm5139, %v5131, %v5136
        %v5141 = vrsqrt.pop %v5089
        %v5142 = vmul.f32 %v5141, %v5089
        %v5143 = vmul.f32 %v5142, %v5141
        %v5144 = vmul.f32 0.5, %v5143
        %v5145 = vsub.f32 1.5, %v5144
        %v5146 = vmul.f32 %v5141, %v5145
        %vm5147 = vweird.f32 %v5089
        %vm5148 = vweird.f32 %v5141
        %vm5149 = vmor %vm5147, %vm5148
        %v5150 = vsel %vm5149, %v5141, %v5146
        %v5151 = vrsqrt.pop %v5090
        %v5152 = vmul.f32 %v5151, %v5090
        %v5153 = vmul.f32 %v5152, %v5151
        %v5154 = vmul.f32 0.5, %v5153
        %v5155 = vsub.f32 1.5, %v5154
        %v5156 = vmul.f32 %v5151, %v5155
        %vm5157 = vweird.f32 %v5090
        %vm5158 = vweird.f32 %v5151
        %vm5159 = vmor %vm5157, %vm5158
        %v5160 = vsel %vm5159, %v5151, %v5156
        %v5161 = vrsqrt.pop %v5091
        %v5162 = vmul.f32 %v5161, %v5091
        %v5163 = vmul.f32 %v5162, %v5161
        %v5164 = vmul.f32 0.5, %v5163
        %v5165 = vsub.f32 1.5, %v5164
        %v5166 = vmul.f32 %v5161, %v5165
        %vm5167 = vweird.f32 %v5091
        %vm5168 = vweird.f32 %v5161
        %vm5169 = vmor %vm5167, %vm5168
        %v5170 = vsel %vm5169, %v5161, %v5166
        %v5171 = vrsqrt.pop %v5092
        %v5172 = vmul.f32 %v5171, %v5092
        %v5173 = vmul.f32 %v5172, %v5171
        %v5174 = vmul.f32 0.5, %v5173
        %v5175 = vsub.f32 1.5, %v5174
        %v5176 = vmul.f32 %v5171, %v5175
        %vm5177 = vweird.f32 %v5092
        %vm5178 = vweird.f32 %v5171
        %vm5179 = vmor %vm5177, %vm5178
        %v5180 = vsel %vm5179, %v5171, %v5176
        %v5181 = vrsqrt.pop %v5093
        %v5182 = vmul.f32 %v5181, %v5093
        %v5183 = vmul.f32 %v5182, %v5181
        %v5184 = vmul.f32 0.5, %v5183
        %v5185 = vsub.f32 1.5, %v5184
        %v5186 = vmul.f32 %v5181, %v5185
        %vm5187 = vweird.f32 %v5093
        %vm5188 = vweird.f32 %v5181
        %vm5189 = vmor %vm5187, %vm5188
        %v5190 = vsel %vm5189, %v5181, %v5186
        %v5191 = vrsqrt.pop %v5094
        %v5192 = vmul.f32 %v5191, %v5094
        %v5193 = vmul.f32 %v5192, %v5191
        %v5194 = vmul.f32 0.5, %v5193
        %v5195 = vsub.f32 1.5, %v5194
        %v5196 = vmul.f32 %v5191, %v5195
        %vm5197 = vweird.f32 %v5094
        %vm5198 = vweird.f32 %v5191
        %vm5199 = vmor %vm5197, %vm5198
        %v5200 = vsel %vm5199, %v5191, %v5196
        %v5201 = vrsqrt.pop %v5095
        %v5202 = vmul.f32 %v5201, %v5095
        %v5203 = vmul.f32 %v5202, %v5201
        %v5204 = vmul.f32 0.5, %v5203
        %v5205 = vsub.f32 1.5, %v5204
        %v5206 = vmul.f32 %v5201, %v5205
        %vm5207 = vweird.f32 %v5095
        %vm5208 = vweird.f32 %v5201
        %vm5209 = vmor %vm5207, %vm5208
        %v5210 = vsel %vm5209, %v5201, %v5206
        %v5211 = vrsqrt.pop %v5096
        %v5212 = vmul.f32 %v5211, %v5096
        %v5213 = vmul.f32 %v5212, %v5211
        %v5214 = vmul.f32 0.5, %v5213
        %v5215 = vsub.f32 1.5, %v5214
        %v5216 = vmul.f32 %v5211, %v5215
        %vm5217 = vweird.f32 %v5096
        %vm5218 = vweird.f32 %v5211
        %vm5219 = vmor %vm5217, %vm5218
        %v5220 = vsel %vm5219, %v5211, %v5216
        %v5221 = vrsqrt.pop %v5097
        %v5222 = vmul.f32 %v5221, %v5097
        %v5223 = vmul.f32 %v5222, %v5221
        %v5224 = vmul.f32 0.5, %v5223
        %v5225 = vsub.f32 1.5, %v5224
        %v5226 = vmul.f32 %v5221, %v5225
        %vm5227 = vweird.f32 %v5097
        %vm5228 = vweird.f32 %v5221
        %vm5229 = vmor %vm5227, %vm5228
        %v5230 = vsel %vm5229, %v5221, %v5226
        %v5231 = vrsqrt.pop %v5098
        %v5232 = vmul.f32 %v5231, %v5098
        %v5233 = vmul.f32 %v5232, %v5231
        %v5234 = vmul.f32 0.5, %v5233
        %v5235 = vsub.f32 1.5, %v5234
        %v5236 = vmul.f32 %v5231, %v5235
        %vm5237 = vweird.f32 %v5098
        %vm5238 = vweird.f32 %v5231
        %vm5239 = vmor %vm5237, %vm5238
        %v5240 = vsel %vm5239, %v5231, %v5236
        %v5241 = vrsqrt.pop %v5099
        %v5242 = vmul.f32 %v5241, %v5099
        %v5243 = vmul.f32 %v5242, %v5241
        %v5244 = vmul.f32 0.5, %v5243
        %v5245 = vsub.f32 1.5, %v5244
        %v5246 = vmul.f32 %v5241, %v5245
        %vm5247 = vweird.f32 %v5099
        %vm5248 = vweird.f32 %v5241
        %vm5249 = vmor %vm5247, %vm5248
        %v5250 = vsel %vm5249, %v5241, %v5246
        %v5251 = vrsqrt.pop %v5100
        %v5252 = vmul.f32 %v5251, %v5100
        %v5253 = vmul.f32 %v5252, %v5251
        %v5254 = vmul.f32 0.5, %v5253
        %v5255 = vsub.f32 1.5, %v5254
        %v5256 = vmul.f32 %v5251, %v5255
        %vm5257 = vweird.f32 %v5100
        %vm5258 = vweird.f32 %v5251
        %vm5259 = vmor %vm5257, %vm5258
        %v5260 = vsel %vm5259, %v5251, %v5256
        %v5261 = vmul.f32 %v4989, %v5110
        %v5262 = vmul.f32 %v4990, %v5120
        %v5263 = vmul.f32 %v4991, %v5130
        %v5264 = vmul.f32 %v4992, %v5140
        %v5265 = vmul.f32 %v4993, %v5150
        %v5266 = vmul.f32 %v4994, %v5160
        %v5267 = vmul.f32 %v4995, %v5170
        %v5268 = vmul.f32 %v4996, %v5180
        %v5269 = vmul.f32 %v4997, %v5190
        %v5270 = vmul.f32 %v4998, %v5200
        %v5271 = vmul.f32 %v4999, %v5210
        %v5272 = vmul.f32 %v5000, %v5220
        %v5273 = vmul.f32 %v5001, %v5230
        %v5274 = vmul.f32 %v5002, %v5240
        %v5275 = vmul.f32 %v5003, %v5250
        %v5276 = vmul.f32 %v5004, %v5260
        %v5278 = vperm.slane %v4923, 0
        %v5280 = vmul.f32 %v5261, %v5278
        %v5281 = vmul.f32 %v5262, %v5278
        %v5282 = vmul.f32 %v5263, %v5278
        %v5283 = vmul.f32 %v5264, %v5278
        %v5284 = vmul.f32 %v5265, %v5278
        %v5285 = vmul.f32 %v5266, %v5278
        %v5286 = vmul.f32 %v5267, %v5278
        %v5287 = vmul.f32 %v5268, %v5278
        %v5288 = vmul.f32 %v5269, %v5278
        %v5289 = vmul.f32 %v5270, %v5278
        %v5290 = vmul.f32 %v5271, %v5278
        %v5291 = vmul.f32 %v5272, %v5278
        %v5292 = vmul.f32 %v5273, %v5278
        %v5293 = vmul.f32 %v5274, %v5278
        %v5294 = vmul.f32 %v5275, %v5278
        %v5295 = vmul.f32 %v5276, %v5278
        %v5297 = vperm.slane %v4924, 0
        %v5299 = vadd.f32 %v5280, %v5297
        %v5300 = vadd.f32 %v5281, %v5297
        %v5301 = vadd.f32 %v5282, %v5297
        %v5302 = vadd.f32 %v5283, %v5297
        %v5303 = vadd.f32 %v5284, %v5297
        %v5304 = vadd.f32 %v5285, %v5297
        %v5305 = vadd.f32 %v5286, %v5297
        %v5306 = vadd.f32 %v5287, %v5297
        %v5307 = vadd.f32 %v5288, %v5297
        %v5308 = vadd.f32 %v5289, %v5297
        %v5309 = vadd.f32 %v5290, %v5297
        %v5310 = vadd.f32 %v5291, %v5297
        %v5311 = vadd.f32 %v5292, %v5297
        %v5312 = vadd.f32 %v5293, %v5297
        %v5313 = vadd.f32 %v5294, %v5297
        %v5314 = vadd.f32 %v5295, %v5297
        %5315 = vxpose.xlu0.b32.start [1/16] %v5299, 128
        %5316 = vxpose.xlu0.b32.cont [2/16] %v5300, 128
        %5317 = vxpose.xlu0.b32.cont [3/16] %v5301, 128
        %5318 = vxpose.xlu0.b32.cont [4/16] %v5302, 128
        %5319 = vxpose.xlu0.b32.cont [5/16] %v5303, 128
        %5320 = vxpose.xlu0.b32.cont [6/16] %v5304, 128
        %5321 = vxpose.xlu0.b32.cont [7/16] %v5305, 128
        %5322 = vxpose.xlu0.b32.cont [8/16] %v5306, 128
        %5323 = vxpose.xlu0.b32.cont [9/16] %v5307, 128
        %5324 = vxpose.xlu0.b32.cont [10/16] %v5308, 128
        %5325 = vxpose.xlu0.b32.cont [11/16] %v5309, 128
        %5326 = vxpose.xlu0.b32.cont [12/16] %v5310, 128
        %5327 = vxpose.xlu0.b32.cont [13/16] %v5311, 128
        %5328 = vxpose.xlu0.b32.cont [14/16] %v5312, 128
        %5329 = vxpose.xlu0.b32.cont [15/16] %v5313, 128
        %5330 = vxpose.xlu0.b32.end [16/16] %v5314, 128
        %v5331 = vpop.trf.xlu0
        %v5332 = vpop.trf.xlu0
        %v5333 = vpop.trf.xlu0
        %v5334 = vpop.trf.xlu0
        %v5335 = vpop.trf.xlu0
        %v5336 = vpop.trf.xlu0
        %v5337 = vpop.trf.xlu0
        %v5338 = vpop.trf.xlu0
        %v5339 = vpop.trf.xlu0
        %v5340 = vpop.trf.xlu0
        %v5341 = vpop.trf.xlu0
        %v5342 = vpop.trf.xlu0
        %v5343 = vpop.trf.xlu0
        %v5344 = vpop.trf.xlu0
        %v5345 = vpop.trf.xlu0
        %v5346 = vpop.trf.xlu0
        %5347 = vst [vmem:[%s995] sm:$0xff] %v5331
        %5348 = vst [vmem:[%s995 + $0x8] sm:$0xff] %v5332
        %5349 = vst [vmem:[%s995 + $0x10] sm:$0xff] %v5333
        %5350 = vst [vmem:[%s995 + $0x18] sm:$0xff] %v5334
        %s5351 = sand.u32 %s756, 1
        %s5352 = scalar_lea.sflag [#allocation3], %s5351
        %s5353 = sand.u32 %s756, 1
        %s5354 = smul.addr %s5353, 32
        %s5355 = scalar_lea.vmem [#allocation2], %s5354
        // Predicated region
        $region145: #{tpu_custom_call.1} parent=143 // pred_check
          %p5356 = pneg %p766
        $region146: #{tpu_custom_call.1} parent=143 // pred_check_branch
          %5358 = sbr.rel (%p5356) target = $region148
        $region147: #{tpu_custom_call.1} parent=143 // pred_region
          %5360 = vsyncadd %s5352, 0
          %s5361 = smul.addr %s77, 8
          %s5362 = scalar_lea.hbm %s63, %s5361
          %s5363 = sshll.u32 %s5355, 4
          %s5364 = int_to_ptr.vmem [resolvable:$true] %s5363
          %s5365 = sshll.u32 %s5362, 4
          %s5366 = int_to_ptr.hbm [resolvable:$true] %s5365
          %5371 = dma.vmem_to_hbm [thread:$0]  %s5364, 512, %s5366, %s5352, 128, 256, 8
        $region148: #{tpu_custom_call.1} parent=143 // pred_fallthru
          _
      $region144: #{tpu_custom_call.1} parent=5 // pred_fallthru
        _
      %p5372 = scmp.le.s32.totalorder 2, %s72
      // Predicated region
      $region149: #{tpu_custom_call.1} parent=5 // pred_check
        %p5373 = pneg %p5372
      $region150: #{tpu_custom_call.1} parent=5 // pred_check_branch
        %5375 = sbr.rel (%p5373) target = $region152
      $region151: #{tpu_custom_call.1} parent=5 // pred_region
        %s5376 = ssub.s32 %s72, 2
        // Predicated region
        $region153: #{tpu_custom_call.1} parent=151 // pred_check
          %p5377 = pneg %p772
        $region154: #{tpu_custom_call.1} parent=151 // pred_check_branch
          %5379 = sbr.rel (%p5377) target = $region156
        $region155: #{tpu_custom_call.1} parent=151 // pred_region
          %s5380 = sand.u32 %s757, 1
          %s5381 = scalar_lea.sflag [#allocation3], %s5380
          %s5382 = sand.u32 %s757, 1
          %s5383 = smul.addr %s5382, 32
          %s5384 = scalar_lea.vmem [#allocation2], %s5383
          %5386 = dma.done %s5381, 512
        $region156: #{tpu_custom_call.1} parent=151 // pred_fallthru
          _
      $region152: #{tpu_custom_call.1} parent=5 // pred_fallthru
        _
    $region6: #{tpu_custom_call.1} parent=1 // loop_footer
      %s76 = sadd.s32 1, %s72
    $region7: #{tpu_custom_call.1} parent=1 // loop_footer_branch
      %71 = sbr.rel target = $region3
    $region8: #{tpu_custom_call.1} parent=1 // loop_exit
      _
    %5387 = vsyncpa [#allocation3], 1
    %s5388 = scalar_lea.sflag [#allocation3], 1
    %5389 = vsyncpa %s5388, 1

</llo_original>
